<compile_context>
chip_gen: v7x
topology: tpu7x:2x2x1
jax: 0.10.0
libtpu: 0.0.40
codegen_flags: <defaults>
</compile_context>

<pallas_src>
from functools import partial

import jax
import jax.numpy as jnp
from jax import lax
from jax.experimental import pallas as pl
from jax.experimental.pallas import tpu as pltpu

LANE = 128      # TPU lane width
_HALO = 16      # zero rows above/below the activation slab (>= K//2, multiple
                # of 16 so bf16 packed stores stay sublane-aligned)


def _round_up(v, m):
    return ((v + m - 1) // m) * m


# ----------------------------------------------------------------------------
# Fused forward kernel: TB batch samples per grid step.
# refs = [x, (w0,b0,s0,t0), (w,b,s,t)*n_rest, (fw1,fb1,fw2,fb2), out, hp]
#
# VMEM scratch `hp` (bf16, shape (2*_HALO + TB*SEG, CP)):
#   rows [0, _HALO)               zero top halo
#   rows [_HALO, _HALO + TB*SEG)  TB segments of SEG = L + G rows each:
#                                 L valid rows + G >= K//2 zero gap rows (the
#                                 gap is the SAME-pad halo of both neighbours)
#   rows [_HALO + TB*SEG, end)    zero bottom halo
# ----------------------------------------------------------------------------
def fused_kernel(*refs, K, L, TB, SEG, CP, n_rest):
    f32 = jnp.float32
    pad = K // 2
    G = SEG - L
    M = TB * SEG

    x_ref = refs[0]
    w0, b0, s0, t0 = refs[1:5]
    rest = refs[5:5 + 4 * n_rest]
    fw1, fb1, fw2, fb2 = refs[5 + 4 * n_rest:9 + 4 * n_rest]
    o_ref = refs[9 + 4 * n_rest]
    hp_ref = refs[10 + 4 * n_rest]

    nrows = hp_ref.shape[0]
    # Zero only the halo rows; the interior slab is fully rewritten each layer.
    # Done every step (not only step 0) because the "parallel" grid axis may be
    # sharded across TensorCores, each with its own scratch instance.
    hp_ref[0:_HALO, :] = jnp.zeros((_HALO, CP), hp_ref.dtype)
    hp_ref[_HALO + M:nrows, :] = jnp.zeros((nrows - _HALO - M, CP), hp_ref.dtype)

    # ---- layer 1 (Cin == 1): in-register VPU broadcast-MAC over the K taps.
    # (f32 on the VPU: v5e has no bf16 VPU; never a degenerate (L,1)@(1,C) dot
    # and no width-1 VMEM column traffic.)
    xv = x_ref[...].astype(f32)                               # (TB, L)
    zpad = jnp.zeros((TB, pad), f32)
    xp = jnp.concatenate([zpad, xv, zpad], axis=1)            # (TB, L + 2*pad)
    w0_all = w0[...]                                          # hoisted (K, CP)
    acc1 = jnp.zeros((TB, L, CP), f32)
    for k in range(K):                                        # static unroll
        acc1 = acc1 + xp[:, k:k + L, None] * w0_all[k:k + 1, :][None, :, :]
    hv = jnp.maximum(acc1 + b0[...][None], 0.0) * s0[...][None] + t0[...][None]
    # TODO(synk): Dropout(p=0.2) after BatchNorm is identity in eval mode.

    gap_zeros = jnp.zeros((TB, G, CP), f32)                   # hoisted

    # ---- layers 2..N: K accumulating bf16 MXU dots over the gapped slab -----
    for j in range(n_rest):
        w, b, s, t = rest[4 * j:4 * j + 4]
        slab = jnp.concatenate([hv, gap_zeros], axis=1).reshape(M, CP)
        hp_ref[_HALO:_HALO + M, :] = slab.astype(hp_ref.dtype)   # aligned store
        acc = jnp.zeros((M, CP), f32)
        for k in range(K):                                    # static unroll
            lhs = hp_ref[_HALO - pad + k:_HALO - pad + k + M, :]  # (M, CP) bf16
            acc = acc + jnp.dot(lhs, w[k], preferred_element_type=f32)
        y = jnp.maximum(acc + b[...], 0.0) * s[...] + t[...]  # f32 epilogue
        # Keep only the L valid rows per sample (drops gap-row garbage).
        hv = y.reshape(TB, SEG, CP)[:, :L, :]
        # TODO(synk): Dropout(p=0.2) after BatchNorm is identity in eval mode.

    # ---- head: mean pool over L, Linear(C->H) + ReLU + Linear(H->out) -------
    m = jnp.sum(hv, axis=1) * (1.0 / L)                       # (TB, CP) f32
    z = jnp.maximum(
        jnp.dot(m.astype(jnp.bfloat16), fw1[...], preferred_element_type=f32)
        + fb1[...], 0.0)
    # TODO(synk): Dropout(p=0.2) in the FC head is identity in eval mode.
    out = jnp.dot(z.astype(jnp.bfloat16), fw2[...], preferred_element_type=f32)
    out = out + fb2[...]
    o_ref[...] = out.astype(o_ref.dtype)                      # (TB, CP)


# ----------------------------------------------------------------------------
# Parameter preparation: pad channels to CP=128 lanes; conv (layers 2..N) and
# head weights in bf16 for the MXU, layer-1 / bias / BN terms kept f32.
# ----------------------------------------------------------------------------
def prepare_kernel_params(params, lane=LANE):
    convs = params["convs"]
    K, cin0, C = convs[0][0].shape
    assert cin0 == 1, "first conv must have Cin == 1"
    assert K % 2 == 1, "kernel_size must be odd for PyTorch-style SAME padding"
    CP = _round_up(max(C, lane), lane)

    def padrow(v):                               # (1, C) -> (1, CP) f32
        return jnp.pad(v.astype(jnp.float32), ((0, 0), (0, CP - v.shape[-1])))

    kp = {"K": K, "CP": CP}

    # layer 1 (VPU path): weight (K, 1, C) -> (K, CP) f32
    w0, b0, s0, t0 = convs[0]
    kp["w0"] = jnp.pad(w0[:, 0, :].astype(jnp.float32), ((0, 0), (0, CP - C)))
    kp["b0"], kp["s0"], kp["t0"] = padrow(b0), padrow(s0), padrow(t0)

    # layers 2..N (MXU path): (K, Ci, Co) -> zero-padded (K, CP, CP) bf16
    kp["conv_rest"] = []
    for (w, b, s, t) in convs[1:]:
        Kk, Ci, Co = w.shape
        wp = jnp.zeros((Kk, CP, CP), jnp.float32).at[:, :Ci, :Co].set(w)
        kp["conv_rest"].append(
            (wp.astype(jnp.bfloat16), padrow(b), padrow(s), padrow(t)))

    # head (MXU path): bf16 weights, f32 biases, lane-padded output
    H = params["w1"].shape[1]
    O = params["w2"].shape[1]
    kp["fw1"] = jnp.zeros((CP, H), jnp.float32).at[:C, :].set(
        params["w1"]).astype(jnp.bfloat16)
    kp["fb1"] = params["b1"].astype(jnp.float32)
    kp["fw2"] = jnp.zeros((H, CP), jnp.float32).at[:, :O].set(
        params["w2"]).astype(jnp.bfloat16)
    kp["fb2"] = jnp.zeros((1, CP), jnp.float32).at[:, :O].set(params["b2"])
    kp["H"], kp["O"] = H, O
    return kp


# ----------------------------------------------------------------------------
# Forward pass: one fused pallas_call, grid over batch tiles ("parallel").
# ----------------------------------------------------------------------------
def cnn_regressor_forward(x, kp, tb=8):
    # tb = samples per grid step.  8 keeps the grid even with small demo
    # batches; bump toward 16 on v6e/v7x to push the conv matmul M toward 256.
    B, L = x.shape
    K, CP, H, O = kp["K"], kp["CP"], kp["H"], kp["O"]
    n_rest = len(kp["conv_rest"])
    pad = K // 2
    assert pad <= _HALO

    TB = tb
    Bp = _round_up(B, TB)
    if Bp != B:
        x = jnp.concatenate([x, jnp.zeros((Bp - B, L), x.dtype)], axis=0)

    SEG = _round_up(L + pad, 8)          # per-sample segment: L valid + >=pad zero gap
    M = TB * SEG
    nrows = _HALO + M + _HALO
    # NOTE(v7x): at large L, budget VMEM explicitly (scratch + double-buffered
    # weights; 64 MiB physical vs 128 MiB on v5e/v6e).  Trivial at these shapes.

    operands = [x.astype(jnp.float32), kp["w0"], kp["b0"], kp["s0"], kp["t0"]]
    in_specs = [
        pl.BlockSpec((TB, L), lambda i: (i, 0)),             # lane-dense x block
        pl.BlockSpec((K, CP), lambda i: (0, 0)),
        pl.BlockSpec((1, CP), lambda i: (0, 0)),
        pl.BlockSpec((1, CP), lambda i: (0, 0)),
        pl.BlockSpec((1, CP), lambda i: (0, 0)),
    ]
    for (w, b, s, t) in kp["conv_rest"]:
        operands += [w, b, s, t]
        in_specs += [
            pl.BlockSpec((K, CP, CP), lambda i: (0, 0, 0)),
            pl.BlockSpec((1, CP), lambda i: (0, 0)),
            pl.BlockSpec((1, CP), lambda i: (0, 0)),
            pl.BlockSpec((1, CP), lambda i: (0, 0)),
        ]
    operands += [kp["fw1"], kp["fb1"], kp["fw2"], kp["fb2"]]
    in_specs += [
        pl.BlockSpec((CP, H), lambda i: (0, 0)),
        pl.BlockSpec((1, H), lambda i: (0, 0)),
        pl.BlockSpec((H, CP), lambda i: (0, 0)),
        pl.BlockSpec((1, CP), lambda i: (0, 0)),
    ]

    kernel = partial(fused_kernel, K=K, L=L, TB=TB, SEG=SEG, CP=CP, n_rest=n_rest)
    out = pl.pallas_call(
        kernel,
        out_shape=jax.ShapeDtypeStruct((Bp, CP), jnp.float32),
        grid=(Bp // TB,),
        in_specs=in_specs,
        out_specs=pl.BlockSpec((TB, CP), lambda i: (i, 0)),   # lane-dense output
        scratch_shapes=[pltpu.VMEM((nrows, CP), jnp.bfloat16)],
        compiler_params=pltpu.CompilerParams(
            dimension_semantics=("parallel",)),
    )(*operands)
    return out[:B, :O]                                        # (B, output_dim)


# ----------------------------------------------------------------------------
# Pure-JAX f32 reference (validation) and parameter init.
# ----------------------------------------------------------------------------
def cnn_regressor_ref(x, params):
    h = x[:, :, None].astype(jnp.float32)
    for (w, b, scale, shift) in params["convs"]:
        y = lax.conv_general_dilated(
            h, w, window_strides=(1,), padding="SAME",
            dimension_numbers=("NWC", "WIO", "NWC"))
        y = jnp.maximum(y + b, 0.0)          # Conv -> ReLU
        h = y * scale + shift                # -> BatchNorm(eval) affine
    m = jnp.mean(h, axis=1)
    z = jnp.maximum(m @ params["w1"] + params["b1"], 0.0)
    return z @ params["w2"] + params["b2"]


def init_params(key, num_filters=64, kernel_size=7, num_layers=3, output_dim=1):
    eps = 1e-5
    params = {"convs": []}
    cin = 1
    for _ in range(num_layers):
        key, kw, kb, kg, kbe, km, kv = jax.random.split(key, 7)
        w = 0.1 * jax.random.normal(kw, (kernel_size, cin, num_filters), jnp.float32)
        b = 0.1 * jax.random.normal(kb, (1, num_filters), jnp.float32)
        # BatchNorm1d eval-mode running stats folded to (scale, shift)
        gamma = 1.0 + 0.1 * jax.random.normal(kg, (num_filters,), jnp.float32)
        beta = 0.1 * jax.random.normal(kbe, (num_filters,), jnp.float32)
        rmean = 0.1 * jax.random.normal(km, (num_filters,), jnp.float32)
        rvar = 1.0 + 0.1 * jax.random.uniform(kv, (num_filters,), jnp.float32)
        inv = gamma / jnp.sqrt(rvar + eps)
        scale = inv.reshape(1, num_filters)
        shift = (beta - rmean * inv).reshape(1, num_filters)
        params["convs"].append((w, b, scale, shift))
        cin = num_filters
    key, k1, k2, k3, k4 = jax.random.split(key, 5)
    params["w1"] = 0.1 * jax.random.normal(k1, (num_filters, 128), jnp.float32)
    params["b1"] = 0.1 * jax.random.normal(k2, (1, 128), jnp.float32)
    params["w2"] = 0.1 * jax.random.normal(k3, (128, output_dim), jnp.float32)
    params["b2"] = 0.1 * jax.random.normal(k4, (1, output_dim), jnp.float32)
    return params


if __name__ == "__main__":
    key = jax.random.PRNGKey(0)
    batch, input_dim = 16, 16            # grid = (2,): even and >= 2 (v7x 2 TCs)
    key, kx = jax.random.split(key)
    x = jax.random.normal(kx, (batch, input_dim), jnp.float32)

    params = init_params(key)
    kparams = prepare_kernel_params(params)

    out = jax.block_until_ready(cnn_regressor_forward(x, kparams, tb=8))
    assert out.shape == (batch, 1), out.shape

    ref = cnn_regressor_ref(x, params)
    # bf16 MXU operands vs. full-f32 reference -> slightly loosened tolerance.
    max_err = float(jnp.max(jnp.abs(out - ref)))
    assert jnp.allclose(out, ref, rtol=3e-2, atol=3e-2), (max_err, out, ref)

    print("KERNEL_OK")
</pallas_src>

<mosaic_0001>
module attributes {stable_mosaic.version = 11 : i64} {
  func.func @fused_kernel(%arg0: i32, %arg1: memref<8x16xf32, #tpu.memory_space<vmem>>, %arg2: memref<7x128xf32, #tpu.memory_space<vmem>>, %arg3: memref<1x128xf32, #tpu.memory_space<vmem>>, %arg4: memref<1x128xf32, #tpu.memory_space<vmem>>, %arg5: memref<1x128xf32, #tpu.memory_space<vmem>>, %arg6: memref<7x128x128xbf16, #tpu.memory_space<vmem>>, %arg7: memref<1x128xf32, #tpu.memory_space<vmem>>, %arg8: memref<1x128xf32, #tpu.memory_space<vmem>>, %arg9: memref<1x128xf32, #tpu.memory_space<vmem>>, %arg10: memref<7x128x128xbf16, #tpu.memory_space<vmem>>, %arg11: memref<1x128xf32, #tpu.memory_space<vmem>>, %arg12: memref<1x128xf32, #tpu.memory_space<vmem>>, %arg13: memref<1x128xf32, #tpu.memory_space<vmem>>, %arg14: memref<128x128xbf16, #tpu.memory_space<vmem>>, %arg15: memref<1x128xf32, #tpu.memory_space<vmem>>, %arg16: memref<128x128xbf16, #tpu.memory_space<vmem>>, %arg17: memref<1x128xf32, #tpu.memory_space<vmem>>, %arg18: memref<8x128xf32, #tpu.memory_space<vmem>>, %arg19: memref<224x128xbf16, #tpu.memory_space<vmem>>) attributes {dimension_semantics = [#tpu.dimension_semantics<parallel>], iteration_bounds = array<i64: 2>, scalar_prefetch = 0 : i64, scratch_operands = 1 : i64, tpu.core_type = #tpu.core_type<tc>, window_params = [{transform_indices = @transform_0, window_bounds = array<i64: 8, 16>}, {pipeline_mode = #tpu.pipeline_mode<synchronous>, transform_indices = @transform_1, window_bounds = array<i64: 7, 128>}, {pipeline_mode = #tpu.pipeline_mode<synchronous>, transform_indices = @transform_2, window_bounds = array<i64: 1, 128>}, {pipeline_mode = #tpu.pipeline_mode<synchronous>, transform_indices = @transform_3, window_bounds = array<i64: 1, 128>}, {pipeline_mode = #tpu.pipeline_mode<synchronous>, transform_indices = @transform_4, window_bounds = array<i64: 1, 128>}, {pipeline_mode = #tpu.pipeline_mode<synchronous>, transform_indices = @transform_5, window_bounds = array<i64: 7, 128, 128>}, {pipeline_mode = #tpu.pipeline_mode<synchronous>, transform_indices = @transform_6, window_bounds = array<i64: 1, 128>}, {pipeline_mode = #tpu.pipeline_mode<synchronous>, transform_indices = @transform_7, window_bounds = array<i64: 1, 128>}, {pipeline_mode = #tpu.pipeline_mode<synchronous>, transform_indices = @transform_8, window_bounds = array<i64: 1, 128>}, {pipeline_mode = #tpu.pipeline_mode<synchronous>, transform_indices = @transform_9, window_bounds = array<i64: 7, 128, 128>}, {pipeline_mode = #tpu.pipeline_mode<synchronous>, transform_indices = @transform_10, window_bounds = array<i64: 1, 128>}, {pipeline_mode = #tpu.pipeline_mode<synchronous>, transform_indices = @transform_11, window_bounds = array<i64: 1, 128>}, {pipeline_mode = #tpu.pipeline_mode<synchronous>, transform_indices = @transform_12, window_bounds = array<i64: 1, 128>}, {pipeline_mode = #tpu.pipeline_mode<synchronous>, transform_indices = @transform_13, window_bounds = array<i64: 128, 128>}, {pipeline_mode = #tpu.pipeline_mode<synchronous>, transform_indices = @transform_14, window_bounds = array<i64: 1, 128>}, {pipeline_mode = #tpu.pipeline_mode<synchronous>, transform_indices = @transform_15, window_bounds = array<i64: 128, 128>}, {pipeline_mode = #tpu.pipeline_mode<synchronous>, transform_indices = @transform_16, window_bounds = array<i64: 1, 128>}, {transform_indices = @transform_17, window_bounds = array<i64: 8, 128>}]} {
    %cst = arith.constant 0.000000e+00 : bf16
    %0 = vector.broadcast %cst : bf16 to vector<16x128xbf16>
    %c0 = arith.constant 0 : index
    %c0_0 = arith.constant 0 : index
    %1 = vector.load %arg19[%c0, %c0_0] : memref<224x128xbf16, #tpu.memory_space<vmem>>, vector<16x128xbf16>
    tpu.vector_store %arg19[%c0, %c0_0], %0 {strides = array<i32>} : memref<224x128xbf16, #tpu.memory_space<vmem>>, vector<16x128xbf16>,
    %cst_1 = arith.constant 0.000000e+00 : bf16
    %2 = vector.broadcast %cst_1 : bf16 to vector<16x128xbf16>
    %c208 = arith.constant 208 : index
    %c0_2 = arith.constant 0 : index
    %3 = vector.load %arg19[%c208, %c0_2] : memref<224x128xbf16, #tpu.memory_space<vmem>>, vector<16x128xbf16>
    tpu.vector_store %arg19[%c208, %c0_2], %2 {strides = array<i32>} : memref<224x128xbf16, #tpu.memory_space<vmem>>, vector<16x128xbf16>,
    %c0_3 = arith.constant 0 : index
    %c0_4 = arith.constant 0 : index
    %4 = vector.load %arg1[%c0_3, %c0_4] : memref<8x16xf32, #tpu.memory_space<vmem>>, vector<8x16xf32>
    %cst_5 = arith.constant 0.000000e+00 : f32
    %5 = vector.broadcast %cst_5 : f32 to vector<8x3xf32>
    %6 = tpu.concatenate %5, %4, %5 in 1 : vector<8x3xf32>, vector<8x16xf32>, vector<8x3xf32> -> vector<8x22xf32>
    %c0_6 = arith.constant 0 : index
    %c0_7 = arith.constant 0 : index
    %7 = vector.load %arg2[%c0_6, %c0_7] : memref<7x128xf32, #tpu.memory_space<vmem>>, vector<7x128xf32>
    %cst_8 = arith.constant 0.000000e+00 : f32
    %8 = vector.broadcast %cst_8 : f32 to vector<8x16x128xf32>
    %9 = vector.extract_strided_slice %6 {offsets = [0, 0], sizes = [8, 16], strides = [1, 1]} : vector<8x22xf32> to vector<8x16xf32>
    %10 = vector.shape_cast %9 : vector<8x16xf32> to vector<8x16x1xf32>
    %11 = vector.extract_strided_slice %7 {offsets = [0, 0], sizes = [1, 128], strides = [1, 1]} : vector<7x128xf32> to vector<1x128xf32>
    %12 = vector.shape_cast %11 : vector<1x128xf32> to vector<1x1x128xf32>
    %13 = vector.broadcast %10 : vector<8x16x1xf32> to vector<8x16x128xf32>
    %14 = vector.broadcast %12 : vector<1x1x128xf32> to vector<8x16x128xf32>
    %15 = arith.mulf %13, %14 : vector<8x16x128xf32>
    %16 = arith.addf %8, %15 : vector<8x16x128xf32>
    %17 = vector.extract_strided_slice %6 {offsets = [0, 1], sizes = [8, 16], strides = [1, 1]} : vector<8x22xf32> to vector<8x16xf32>
    %18 = vector.shape_cast %17 : vector<8x16xf32> to vector<8x16x1xf32>
    %19 = vector.extract_strided_slice %7 {offsets = [1, 0], sizes = [1, 128], strides = [1, 1]} : vector<7x128xf32> to vector<1x128xf32>
    %20 = vector.shape_cast %19 : vector<1x128xf32> to vector<1x1x128xf32>
    %21 = vector.broadcast %18 : vector<8x16x1xf32> to vector<8x16x128xf32>
    %22 = vector.broadcast %20 : vector<1x1x128xf32> to vector<8x16x128xf32>
    %23 = arith.mulf %21, %22 : vector<8x16x128xf32>
    %24 = arith.addf %16, %23 : vector<8x16x128xf32>
    %25 = vector.extract_strided_slice %6 {offsets = [0, 2], sizes = [8, 16], strides = [1, 1]} : vector<8x22xf32> to vector<8x16xf32>
    %26 = vector.shape_cast %25 : vector<8x16xf32> to vector<8x16x1xf32>
    %27 = vector.extract_strided_slice %7 {offsets = [2, 0], sizes = [1, 128], strides = [1, 1]} : vector<7x128xf32> to vector<1x128xf32>
    %28 = vector.shape_cast %27 : vector<1x128xf32> to vector<1x1x128xf32>
    %29 = vector.broadcast %26 : vector<8x16x1xf32> to vector<8x16x128xf32>
    %30 = vector.broadcast %28 : vector<1x1x128xf32> to vector<8x16x128xf32>
    %31 = arith.mulf %29, %30 : vector<8x16x128xf32>
    %32 = arith.addf %24, %31 : vector<8x16x128xf32>
    %33 = vector.extract_strided_slice %6 {offsets = [0, 3], sizes = [8, 16], strides = [1, 1]} : vector<8x22xf32> to vector<8x16xf32>
    %34 = vector.shape_cast %33 : vector<8x16xf32> to vector<8x16x1xf32>
    %35 = vector.extract_strided_slice %7 {offsets = [3, 0], sizes = [1, 128], strides = [1, 1]} : vector<7x128xf32> to vector<1x128xf32>
    %36 = vector.shape_cast %35 : vector<1x128xf32> to vector<1x1x128xf32>
    %37 = vector.broadcast %34 : vector<8x16x1xf32> to vector<8x16x128xf32>
    %38 = vector.broadcast %36 : vector<1x1x128xf32> to vector<8x16x128xf32>
    %39 = arith.mulf %37, %38 : vector<8x16x128xf32>
    %40 = arith.addf %32, %39 : vector<8x16x128xf32>
    %41 = vector.extract_strided_slice %6 {offsets = [0, 4], sizes = [8, 16], strides = [1, 1]} : vector<8x22xf32> to vector<8x16xf32>
    %42 = vector.shape_cast %41 : vector<8x16xf32> to vector<8x16x1xf32>
    %43 = vector.extract_strided_slice %7 {offsets = [4, 0], sizes = [1, 128], strides = [1, 1]} : vector<7x128xf32> to vector<1x128xf32>
    %44 = vector.shape_cast %43 : vector<1x128xf32> to vector<1x1x128xf32>
    %45 = vector.broadcast %42 : vector<8x16x1xf32> to vector<8x16x128xf32>
    %46 = vector.broadcast %44 : vector<1x1x128xf32> to vector<8x16x128xf32>
    %47 = arith.mulf %45, %46 : vector<8x16x128xf32>
    %48 = arith.addf %40, %47 : vector<8x16x128xf32>
    %49 = vector.extract_strided_slice %6 {offsets = [0, 5], sizes = [8, 16], strides = [1, 1]} : vector<8x22xf32> to vector<8x16xf32>
    %50 = vector.shape_cast %49 : vector<8x16xf32> to vector<8x16x1xf32>
    %51 = vector.extract_strided_slice %7 {offsets = [5, 0], sizes = [1, 128], strides = [1, 1]} : vector<7x128xf32> to vector<1x128xf32>
    %52 = vector.shape_cast %51 : vector<1x128xf32> to vector<1x1x128xf32>
    %53 = vector.broadcast %50 : vector<8x16x1xf32> to vector<8x16x128xf32>
    %54 = vector.broadcast %52 : vector<1x1x128xf32> to vector<8x16x128xf32>
    %55 = arith.mulf %53, %54 : vector<8x16x128xf32>
    %56 = arith.addf %48, %55 : vector<8x16x128xf32>
    %57 = vector.extract_strided_slice %6 {offsets = [0, 6], sizes = [8, 16], strides = [1, 1]} : vector<8x22xf32> to vector<8x16xf32>
    %58 = vector.shape_cast %57 : vector<8x16xf32> to vector<8x16x1xf32>
    %59 = vector.extract_strided_slice %7 {offsets = [6, 0], sizes = [1, 128], strides = [1, 1]} : vector<7x128xf32> to vector<1x128xf32>
    %60 = vector.shape_cast %59 : vector<1x128xf32> to vector<1x1x128xf32>
    %61 = vector.broadcast %58 : vector<8x16x1xf32> to vector<8x16x128xf32>
    %62 = vector.broadcast %60 : vector<1x1x128xf32> to vector<8x16x128xf32>
    %63 = arith.mulf %61, %62 : vector<8x16x128xf32>
    %64 = arith.addf %56, %63 : vector<8x16x128xf32>
    %c0_9 = arith.constant 0 : index
    %c0_10 = arith.constant 0 : index
    %65 = vector.load %arg3[%c0_9, %c0_10] : memref<1x128xf32, #tpu.memory_space<vmem>>, vector<1x128xf32>
    %66 = vector.shape_cast %65 : vector<1x128xf32> to vector<1x1x128xf32>
    %67 = vector.broadcast %66 : vector<1x1x128xf32> to vector<8x16x128xf32>
    %68 = arith.addf %64, %67 : vector<8x16x128xf32>
    %cst_11 = arith.constant 0.000000e+00 : f32
    %69 = vector.broadcast %cst_11 : f32 to vector<8x16x128xf32>
    %70 = arith.maximumf %68, %69 : vector<8x16x128xf32>
    %c0_12 = arith.constant 0 : index
    %c0_13 = arith.constant 0 : index
    %71 = vector.load %arg4[%c0_12, %c0_13] : memref<1x128xf32, #tpu.memory_space<vmem>>, vector<1x128xf32>
    %72 = vector.shape_cast %71 : vector<1x128xf32> to vector<1x1x128xf32>
    %73 = vector.broadcast %72 : vector<1x1x128xf32> to vector<8x16x128xf32>
    %74 = arith.mulf %70, %73 : vector<8x16x128xf32>
    %c0_14 = arith.constant 0 : index
    %c0_15 = arith.constant 0 : index
    %75 = vector.load %arg5[%c0_14, %c0_15] : memref<1x128xf32, #tpu.memory_space<vmem>>, vector<1x128xf32>
    %76 = vector.shape_cast %75 : vector<1x128xf32> to vector<1x1x128xf32>
    %77 = vector.broadcast %76 : vector<1x1x128xf32> to vector<8x16x128xf32>
    %78 = arith.addf %74, %77 : vector<8x16x128xf32>
    %cst_16 = arith.constant 0.000000e+00 : f32
    %79 = vector.broadcast %cst_16 : f32 to vector<8x8x128xf32>
    %80 = tpu.concatenate %78, %79 in 1 : vector<8x16x128xf32>, vector<8x8x128xf32> -> vector<8x24x128xf32>
    %81 = vector.shape_cast %80 : vector<8x24x128xf32> to vector<192x128xf32>
    %82 = arith.truncf %81 : vector<192x128xf32> to vector<192x128xbf16>
    %c16 = arith.constant 16 : index
    %c0_17 = arith.constant 0 : index
    %83 = vector.load %arg19[%c16, %c0_17] : memref<224x128xbf16, #tpu.memory_space<vmem>>, vector<192x128xbf16>
    tpu.vector_store %arg19[%c16, %c0_17], %82 {strides = array<i32>} : memref<224x128xbf16, #tpu.memory_space<vmem>>, vector<192x128xbf16>,
    %cst_18 = arith.constant 0.000000e+00 : f32
    %84 = vector.broadcast %cst_18 : f32 to vector<192x128xf32>
    %c13 = arith.constant 13 : index
    %c0_19 = arith.constant 0 : index
    %85 = vector.load %arg19[%c13, %c0_19] : memref<224x128xbf16, #tpu.memory_space<vmem>>, vector<192x128xbf16>
    %c0_20 = arith.constant 0 : index
    %c0_21 = arith.constant 0 : index
    %c0_22 = arith.constant 0 : index
    %86 = vector.load %arg6[%c0_20, %c0_21, %c0_22] : memref<7x128x128xbf16, #tpu.memory_space<vmem>>, vector<1x128x128xbf16>
    %87 = vector.shape_cast %86 : vector<1x128x128xbf16> to vector<128x128xbf16>
    %cst_23 = arith.constant dense<0.000000e+00> : vector<192x128xf32>
    %88 = tpu.matmul %85, %87, %cst_23 {dimension_numbers = #tpu.dot_dimension_numbers<[1], [0], [0], [1], [0, 0, 1, 1], [], []>} : vector<192x128xbf16>, vector<128x128xbf16>, vector<192x128xf32> -> vector<192x128xf32>
    %89 = arith.addf %84, %88 : vector<192x128xf32>
    %c14 = arith.constant 14 : index
    %c0_24 = arith.constant 0 : index
    %90 = vector.load %arg19[%c14, %c0_24] : memref<224x128xbf16, #tpu.memory_space<vmem>>, vector<192x128xbf16>
    %c1 = arith.constant 1 : index
    %c0_25 = arith.constant 0 : index
    %c0_26 = arith.constant 0 : index
    %91 = vector.load %arg6[%c1, %c0_25, %c0_26] : memref<7x128x128xbf16, #tpu.memory_space<vmem>>, vector<1x128x128xbf16>
    %92 = vector.shape_cast %91 : vector<1x128x128xbf16> to vector<128x128xbf16>
    %cst_27 = arith.constant dense<0.000000e+00> : vector<192x128xf32>
    %93 = tpu.matmul %90, %92, %cst_27 {dimension_numbers = #tpu.dot_dimension_numbers<[1], [0], [0], [1], [0, 0, 1, 1], [], []>} : vector<192x128xbf16>, vector<128x128xbf16>, vector<192x128xf32> -> vector<192x128xf32>
    %94 = arith.addf %89, %93 : vector<192x128xf32>
    %c15 = arith.constant 15 : index
    %c0_28 = arith.constant 0 : index
    %95 = vector.load %arg19[%c15, %c0_28] : memref<224x128xbf16, #tpu.memory_space<vmem>>, vector<192x128xbf16>
    %c2 = arith.constant 2 : index
    %c0_29 = arith.constant 0 : index
    %c0_30 = arith.constant 0 : index
    %96 = vector.load %arg6[%c2, %c0_29, %c0_30] : memref<7x128x128xbf16, #tpu.memory_space<vmem>>, vector<1x128x128xbf16>
    %97 = vector.shape_cast %96 : vector<1x128x128xbf16> to vector<128x128xbf16>
    %cst_31 = arith.constant dense<0.000000e+00> : vector<192x128xf32>
    %98 = tpu.matmul %95, %97, %cst_31 {dimension_numbers = #tpu.dot_dimension_numbers<[1], [0], [0], [1], [0, 0, 1, 1], [], []>} : vector<192x128xbf16>, vector<128x128xbf16>, vector<192x128xf32> -> vector<192x128xf32>
    %99 = arith.addf %94, %98 : vector<192x128xf32>
    %c16_32 = arith.constant 16 : index
    %c0_33 = arith.constant 0 : index
    %100 = vector.load %arg19[%c16_32, %c0_33] : memref<224x128xbf16, #tpu.memory_space<vmem>>, vector<192x128xbf16>
    %c3 = arith.constant 3 : index
    %c0_34 = arith.constant 0 : index
    %c0_35 = arith.constant 0 : index
    %101 = vector.load %arg6[%c3, %c0_34, %c0_35] : memref<7x128x128xbf16, #tpu.memory_space<vmem>>, vector<1x128x128xbf16>
    %102 = vector.shape_cast %101 : vector<1x128x128xbf16> to vector<128x128xbf16>
    %cst_36 = arith.constant dense<0.000000e+00> : vector<192x128xf32>
    %103 = tpu.matmul %100, %102, %cst_36 {dimension_numbers = #tpu.dot_dimension_numbers<[1], [0], [0], [1], [0, 0, 1, 1], [], []>} : vector<192x128xbf16>, vector<128x128xbf16>, vector<192x128xf32> -> vector<192x128xf32>
    %104 = arith.addf %99, %103 : vector<192x128xf32>
    %c17 = arith.constant 17 : index
    %c0_37 = arith.constant 0 : index
    %105 = vector.load %arg19[%c17, %c0_37] : memref<224x128xbf16, #tpu.memory_space<vmem>>, vector<192x128xbf16>
    %c4 = arith.constant 4 : index
    %c0_38 = arith.constant 0 : index
    %c0_39 = arith.constant 0 : index
    %106 = vector.load %arg6[%c4, %c0_38, %c0_39] : memref<7x128x128xbf16, #tpu.memory_space<vmem>>, vector<1x128x128xbf16>
    %107 = vector.shape_cast %106 : vector<1x128x128xbf16> to vector<128x128xbf16>
    %cst_40 = arith.constant dense<0.000000e+00> : vector<192x128xf32>
    %108 = tpu.matmul %105, %107, %cst_40 {dimension_numbers = #tpu.dot_dimension_numbers<[1], [0], [0], [1], [0, 0, 1, 1], [], []>} : vector<192x128xbf16>, vector<128x128xbf16>, vector<192x128xf32> -> vector<192x128xf32>
    %109 = arith.addf %104, %108 : vector<192x128xf32>
    %c18 = arith.constant 18 : index
    %c0_41 = arith.constant 0 : index
    %110 = vector.load %arg19[%c18, %c0_41] : memref<224x128xbf16, #tpu.memory_space<vmem>>, vector<192x128xbf16>
    %c5 = arith.constant 5 : index
    %c0_42 = arith.constant 0 : index
    %c0_43 = arith.constant 0 : index
    %111 = vector.load %arg6[%c5, %c0_42, %c0_43] : memref<7x128x128xbf16, #tpu.memory_space<vmem>>, vector<1x128x128xbf16>
    %112 = vector.shape_cast %111 : vector<1x128x128xbf16> to vector<128x128xbf16>
    %cst_44 = arith.constant dense<0.000000e+00> : vector<192x128xf32>
    %113 = tpu.matmul %110, %112, %cst_44 {dimension_numbers = #tpu.dot_dimension_numbers<[1], [0], [0], [1], [0, 0, 1, 1], [], []>} : vector<192x128xbf16>, vector<128x128xbf16>, vector<192x128xf32> -> vector<192x128xf32>
    %114 = arith.addf %109, %113 : vector<192x128xf32>
    %c19 = arith.constant 19 : index
    %c0_45 = arith.constant 0 : index
    %115 = vector.load %arg19[%c19, %c0_45] : memref<224x128xbf16, #tpu.memory_space<vmem>>, vector<192x128xbf16>
    %c6 = arith.constant 6 : index
    %c0_46 = arith.constant 0 : index
    %c0_47 = arith.constant 0 : index
    %116 = vector.load %arg6[%c6, %c0_46, %c0_47] : memref<7x128x128xbf16, #tpu.memory_space<vmem>>, vector<1x128x128xbf16>
    %117 = vector.shape_cast %116 : vector<1x128x128xbf16> to vector<128x128xbf16>
    %cst_48 = arith.constant dense<0.000000e+00> : vector<192x128xf32>
    %118 = tpu.matmul %115, %117, %cst_48 {dimension_numbers = #tpu.dot_dimension_numbers<[1], [0], [0], [1], [0, 0, 1, 1], [], []>} : vector<192x128xbf16>, vector<128x128xbf16>, vector<192x128xf32> -> vector<192x128xf32>
    %119 = arith.addf %114, %118 : vector<192x128xf32>
    %c0_49 = arith.constant 0 : index
    %c0_50 = arith.constant 0 : index
    %120 = vector.load %arg7[%c0_49, %c0_50] : memref<1x128xf32, #tpu.memory_space<vmem>>, vector<1x128xf32>
    %121 = vector.broadcast %120 : vector<1x128xf32> to vector<192x128xf32>
    %122 = arith.addf %119, %121 : vector<192x128xf32>
    %cst_51 = arith.constant 0.000000e+00 : f32
    %123 = vector.broadcast %cst_51 : f32 to vector<192x128xf32>
    %124 = arith.maximumf %122, %123 : vector<192x128xf32>
    %c0_52 = arith.constant 0 : index
    %c0_53 = arith.constant 0 : index
    %125 = vector.load %arg8[%c0_52, %c0_53] : memref<1x128xf32, #tpu.memory_space<vmem>>, vector<1x128xf32>
    %126 = vector.broadcast %125 : vector<1x128xf32> to vector<192x128xf32>
    %127 = arith.mulf %124, %126 : vector<192x128xf32>
    %c0_54 = arith.constant 0 : index
    %c0_55 = arith.constant 0 : index
    %128 = vector.load %arg9[%c0_54, %c0_55] : memref<1x128xf32, #tpu.memory_space<vmem>>, vector<1x128xf32>
    %129 = vector.broadcast %128 : vector<1x128xf32> to vector<192x128xf32>
    %130 = arith.addf %127, %129 : vector<192x128xf32>
    %131 = vector.shape_cast %130 : vector<192x128xf32> to vector<8x24x128xf32>
    %132 = vector.extract_strided_slice %131 {offsets = [0, 0, 0], sizes = [8, 16, 128], strides = [1, 1, 1]} : vector<8x24x128xf32> to vector<8x16x128xf32>
    %133 = tpu.concatenate %132, %79 in 1 : vector<8x16x128xf32>, vector<8x8x128xf32> -> vector<8x24x128xf32>
    %134 = vector.shape_cast %133 : vector<8x24x128xf32> to vector<192x128xf32>
    %135 = arith.truncf %134 : vector<192x128xf32> to vector<192x128xbf16>
    %c16_56 = arith.constant 16 : index
    %c0_57 = arith.constant 0 : index
    %136 = vector.load %arg19[%c16_56, %c0_57] : memref<224x128xbf16, #tpu.memory_space<vmem>>, vector<192x128xbf16>
    tpu.vector_store %arg19[%c16_56, %c0_57], %135 {strides = array<i32>} : memref<224x128xbf16, #tpu.memory_space<vmem>>, vector<192x128xbf16>,
    %cst_58 = arith.constant 0.000000e+00 : f32
    %137 = vector.broadcast %cst_58 : f32 to vector<192x128xf32>
    %c13_59 = arith.constant 13 : index
    %c0_60 = arith.constant 0 : index
    %138 = vector.load %arg19[%c13_59, %c0_60] : memref<224x128xbf16, #tpu.memory_space<vmem>>, vector<192x128xbf16>
    %c0_61 = arith.constant 0 : index
    %c0_62 = arith.constant 0 : index
    %c0_63 = arith.constant 0 : index
    %139 = vector.load %arg10[%c0_61, %c0_62, %c0_63] : memref<7x128x128xbf16, #tpu.memory_space<vmem>>, vector<1x128x128xbf16>
    %140 = vector.shape_cast %139 : vector<1x128x128xbf16> to vector<128x128xbf16>
    %cst_64 = arith.constant dense<0.000000e+00> : vector<192x128xf32>
    %141 = tpu.matmul %138, %140, %cst_64 {dimension_numbers = #tpu.dot_dimension_numbers<[1], [0], [0], [1], [0, 0, 1, 1], [], []>} : vector<192x128xbf16>, vector<128x128xbf16>, vector<192x128xf32> -> vector<192x128xf32>
    %142 = arith.addf %137, %141 : vector<192x128xf32>
    %c14_65 = arith.constant 14 : index
    %c0_66 = arith.constant 0 : index
    %143 = vector.load %arg19[%c14_65, %c0_66] : memref<224x128xbf16, #tpu.memory_space<vmem>>, vector<192x128xbf16>
    %c1_67 = arith.constant 1 : index
    %c0_68 = arith.constant 0 : index
    %c0_69 = arith.constant 0 : index
    %144 = vector.load %arg10[%c1_67, %c0_68, %c0_69] : memref<7x128x128xbf16, #tpu.memory_space<vmem>>, vector<1x128x128xbf16>
    %145 = vector.shape_cast %144 : vector<1x128x128xbf16> to vector<128x128xbf16>
    %cst_70 = arith.constant dense<0.000000e+00> : vector<192x128xf32>
    %146 = tpu.matmul %143, %145, %cst_70 {dimension_numbers = #tpu.dot_dimension_numbers<[1], [0], [0], [1], [0, 0, 1, 1], [], []>} : vector<192x128xbf16>, vector<128x128xbf16>, vector<192x128xf32> -> vector<192x128xf32>
    %147 = arith.addf %142, %146 : vector<192x128xf32>
    %c15_71 = arith.constant 15 : index
    %c0_72 = arith.constant 0 : index
    %148 = vector.load %arg19[%c15_71, %c0_72] : memref<224x128xbf16, #tpu.memory_space<vmem>>, vector<192x128xbf16>
    %c2_73 = arith.constant 2 : index
    %c0_74 = arith.constant 0 : index
    %c0_75 = arith.constant 0 : index
    %149 = vector.load %arg10[%c2_73, %c0_74, %c0_75] : memref<7x128x128xbf16, #tpu.memory_space<vmem>>, vector<1x128x128xbf16>
    %150 = vector.shape_cast %149 : vector<1x128x128xbf16> to vector<128x128xbf16>
    %cst_76 = arith.constant dense<0.000000e+00> : vector<192x128xf32>
    %151 = tpu.matmul %148, %150, %cst_76 {dimension_numbers = #tpu.dot_dimension_numbers<[1], [0], [0], [1], [0, 0, 1, 1], [], []>} : vector<192x128xbf16>, vector<128x128xbf16>, vector<192x128xf32> -> vector<192x128xf32>
    %152 = arith.addf %147, %151 : vector<192x128xf32>
    %c16_77 = arith.constant 16 : index
    %c0_78 = arith.constant 0 : index
    %153 = vector.load %arg19[%c16_77, %c0_78] : memref<224x128xbf16, #tpu.memory_space<vmem>>, vector<192x128xbf16>
    %c3_79 = arith.constant 3 : index
    %c0_80 = arith.constant 0 : index
    %c0_81 = arith.constant 0 : index
    %154 = vector.load %arg10[%c3_79, %c0_80, %c0_81] : memref<7x128x128xbf16, #tpu.memory_space<vmem>>, vector<1x128x128xbf16>
    %155 = vector.shape_cast %154 : vector<1x128x128xbf16> to vector<128x128xbf16>
    %cst_82 = arith.constant dense<0.000000e+00> : vector<192x128xf32>
    %156 = tpu.matmul %153, %155, %cst_82 {dimension_numbers = #tpu.dot_dimension_numbers<[1], [0], [0], [1], [0, 0, 1, 1], [], []>} : vector<192x128xbf16>, vector<128x128xbf16>, vector<192x128xf32> -> vector<192x128xf32>
    %157 = arith.addf %152, %156 : vector<192x128xf32>
    %c17_83 = arith.constant 17 : index
    %c0_84 = arith.constant 0 : index
    %158 = vector.load %arg19[%c17_83, %c0_84] : memref<224x128xbf16, #tpu.memory_space<vmem>>, vector<192x128xbf16>
    %c4_85 = arith.constant 4 : index
    %c0_86 = arith.constant 0 : index
    %c0_87 = arith.constant 0 : index
    %159 = vector.load %arg10[%c4_85, %c0_86, %c0_87] : memref<7x128x128xbf16, #tpu.memory_space<vmem>>, vector<1x128x128xbf16>
    %160 = vector.shape_cast %159 : vector<1x128x128xbf16> to vector<128x128xbf16>
    %cst_88 = arith.constant dense<0.000000e+00> : vector<192x128xf32>
    %161 = tpu.matmul %158, %160, %cst_88 {dimension_numbers = #tpu.dot_dimension_numbers<[1], [0], [0], [1], [0, 0, 1, 1], [], []>} : vector<192x128xbf16>, vector<128x128xbf16>, vector<192x128xf32> -> vector<192x128xf32>
    %162 = arith.addf %157, %161 : vector<192x128xf32>
    %c18_89 = arith.constant 18 : index
    %c0_90 = arith.constant 0 : index
    %163 = vector.load %arg19[%c18_89, %c0_90] : memref<224x128xbf16, #tpu.memory_space<vmem>>, vector<192x128xbf16>
    %c5_91 = arith.constant 5 : index
    %c0_92 = arith.constant 0 : index
    %c0_93 = arith.constant 0 : index
    %164 = vector.load %arg10[%c5_91, %c0_92, %c0_93] : memref<7x128x128xbf16, #tpu.memory_space<vmem>>, vector<1x128x128xbf16>
    %165 = vector.shape_cast %164 : vector<1x128x128xbf16> to vector<128x128xbf16>
    %cst_94 = arith.constant dense<0.000000e+00> : vector<192x128xf32>
    %166 = tpu.matmul %163, %165, %cst_94 {dimension_numbers = #tpu.dot_dimension_numbers<[1], [0], [0], [1], [0, 0, 1, 1], [], []>} : vector<192x128xbf16>, vector<128x128xbf16>, vector<192x128xf32> -> vector<192x128xf32>
    %167 = arith.addf %162, %166 : vector<192x128xf32>
    %c19_95 = arith.constant 19 : index
    %c0_96 = arith.constant 0 : index
    %168 = vector.load %arg19[%c19_95, %c0_96] : memref<224x128xbf16, #tpu.memory_space<vmem>>, vector<192x128xbf16>
    %c6_97 = arith.constant 6 : index
    %c0_98 = arith.constant 0 : index
    %c0_99 = arith.constant 0 : index
    %169 = vector.load %arg10[%c6_97, %c0_98, %c0_99] : memref<7x128x128xbf16, #tpu.memory_space<vmem>>, vector<1x128x128xbf16>
    %170 = vector.shape_cast %169 : vector<1x128x128xbf16> to vector<128x128xbf16>
    %cst_100 = arith.constant dense<0.000000e+00> : vector<192x128xf32>
    %171 = tpu.matmul %168, %170, %cst_100 {dimension_numbers = #tpu.dot_dimension_numbers<[1], [0], [0], [1], [0, 0, 1, 1], [], []>} : vector<192x128xbf16>, vector<128x128xbf16>, vector<192x128xf32> -> vector<192x128xf32>
    %172 = arith.addf %167, %171 : vector<192x128xf32>
    %c0_101 = arith.constant 0 : index
    %c0_102 = arith.constant 0 : index
    %173 = vector.load %arg11[%c0_101, %c0_102] : memref<1x128xf32, #tpu.memory_space<vmem>>, vector<1x128xf32>
    %174 = vector.broadcast %173 : vector<1x128xf32> to vector<192x128xf32>
    %175 = arith.addf %172, %174 : vector<192x128xf32>
    %cst_103 = arith.constant 0.000000e+00 : f32
    %176 = vector.broadcast %cst_103 : f32 to vector<192x128xf32>
    %177 = arith.maximumf %175, %176 : vector<192x128xf32>
    %c0_104 = arith.constant 0 : index
    %c0_105 = arith.constant 0 : index
    %178 = vector.load %arg12[%c0_104, %c0_105] : memref<1x128xf32, #tpu.memory_space<vmem>>, vector<1x128xf32>
    %179 = vector.broadcast %178 : vector<1x128xf32> to vector<192x128xf32>
    %180 = arith.mulf %177, %179 : vector<192x128xf32>
    %c0_106 = arith.constant 0 : index
    %c0_107 = arith.constant 0 : index
    %181 = vector.load %arg13[%c0_106, %c0_107] : memref<1x128xf32, #tpu.memory_space<vmem>>, vector<1x128xf32>
    %182 = vector.broadcast %181 : vector<1x128xf32> to vector<192x128xf32>
    %183 = arith.addf %180, %182 : vector<192x128xf32>
    %184 = vector.shape_cast %183 : vector<192x128xf32> to vector<8x24x128xf32>
    %185 = vector.extract_strided_slice %184 {offsets = [0, 0, 0], sizes = [8, 16, 128], strides = [1, 1, 1]} : vector<8x24x128xf32> to vector<8x16x128xf32>
    %cst_108 = arith.constant dense<0.000000e+00> : vector<8x128xf32>
    %186 = vector.multi_reduction <add>, %185, %cst_108 [1] : vector<8x16x128xf32> to vector<8x128xf32>
    %cst_109 = arith.constant 6.250000e-02 : f32
    %187 = vector.broadcast %cst_109 : f32 to vector<8x128xf32>
    %188 = arith.mulf %186, %187 : vector<8x128xf32>
    %189 = arith.truncf %188 : vector<8x128xf32> to vector<8x128xbf16>
    %c0_110 = arith.constant 0 : index
    %c0_111 = arith.constant 0 : index
    %190 = vector.load %arg14[%c0_110, %c0_111] : memref<128x128xbf16, #tpu.memory_space<vmem>>, vector<128x128xbf16>
    %cst_112 = arith.constant dense<0.000000e+00> : vector<8x128xf32>
    %191 = tpu.matmul %189, %190, %cst_112 {dimension_numbers = #tpu.dot_dimension_numbers<[1], [0], [0], [1], [0, 0, 1, 1], [], []>} : vector<8x128xbf16>, vector<128x128xbf16>, vector<8x128xf32> -> vector<8x128xf32>
    %c0_113 = arith.constant 0 : index
    %c0_114 = arith.constant 0 : index
    %192 = vector.load %arg15[%c0_113, %c0_114] : memref<1x128xf32, #tpu.memory_space<vmem>>, vector<1x128xf32>
    %193 = vector.broadcast %192 : vector<1x128xf32> to vector<8x128xf32>
    %194 = arith.addf %191, %193 : vector<8x128xf32>
    %cst_115 = arith.constant 0.000000e+00 : f32
    %195 = vector.broadcast %cst_115 : f32 to vector<8x128xf32>
    %196 = arith.maximumf %194, %195 : vector<8x128xf32>
    %197 = arith.truncf %196 : vector<8x128xf32> to vector<8x128xbf16>
    %c0_116 = arith.constant 0 : index
    %c0_117 = arith.constant 0 : index
    %198 = vector.load %arg16[%c0_116, %c0_117] : memref<128x128xbf16, #tpu.memory_space<vmem>>, vector<128x128xbf16>
    %cst_118 = arith.constant dense<0.000000e+00> : vector<8x128xf32>
    %199 = tpu.matmul %197, %198, %cst_118 {dimension_numbers = #tpu.dot_dimension_numbers<[1], [0], [0], [1], [0, 0, 1, 1], [], []>} : vector<8x128xbf16>, vector<128x128xbf16>, vector<8x128xf32> -> vector<8x128xf32>
    %c0_119 = arith.constant 0 : index
    %c0_120 = arith.constant 0 : index
    %200 = vector.load %arg17[%c0_119, %c0_120] : memref<1x128xf32, #tpu.memory_space<vmem>>, vector<1x128xf32>
    %201 = vector.broadcast %200 : vector<1x128xf32> to vector<8x128xf32>
    %202 = arith.addf %199, %201 : vector<8x128xf32>
    %c0_121 = arith.constant 0 : index
    %c0_122 = arith.constant 0 : index
    %203 = vector.load %arg18[%c0_121, %c0_122] : memref<8x128xf32, #tpu.memory_space<vmem>>, vector<8x128xf32>
    tpu.vector_store %arg18[%c0_121, %c0_122], %202 {strides = array<i32>} : memref<8x128xf32, #tpu.memory_space<vmem>>, vector<8x128xf32>,
    return
  }
  func.func @transform_0(%arg0: i32) -> (i32, i32) {
    %c0_i32 = arith.constant 0 : i32
    %c0_i32_0 = arith.constant 0 : i32
    return %arg0, %c0_i32 : i32, i32
  }
  func.func @transform_1(%arg0: i32) -> (i32, i32) {
    %c0_i32 = arith.constant 0 : i32
    %c0_i32_0 = arith.constant 0 : i32
    %c0_i32_1 = arith.constant 0 : i32
    return %c0_i32, %c0_i32_0 : i32, i32
  }
  func.func @transform_2(%arg0: i32) -> (i32, i32) {
    %c0_i32 = arith.constant 0 : i32
    %c0_i32_0 = arith.constant 0 : i32
    %c0_i32_1 = arith.constant 0 : i32
    return %c0_i32, %c0_i32_0 : i32, i32
  }
  func.func @transform_3(%arg0: i32) -> (i32, i32) {
    %c0_i32 = arith.constant 0 : i32
    %c0_i32_0 = arith.constant 0 : i32
    %c0_i32_1 = arith.constant 0 : i32
    return %c0_i32, %c0_i32_0 : i32, i32
  }
  func.func @transform_4(%arg0: i32) -> (i32, i32) {
    %c0_i32 = arith.constant 0 : i32
    %c0_i32_0 = arith.constant 0 : i32
    %c0_i32_1 = arith.constant 0 : i32
    return %c0_i32, %c0_i32_0 : i32, i32
  }
  func.func @transform_5(%arg0: i32) -> (i32, i32, i32) {
    %c0_i32 = arith.constant 0 : i32
    %c0_i32_0 = arith.constant 0 : i32
    %c0_i32_1 = arith.constant 0 : i32
    %c0_i32_2 = arith.constant 0 : i32
    return %c0_i32, %c0_i32_0, %c0_i32_1 : i32, i32, i32
  }
  func.func @transform_6(%arg0: i32) -> (i32, i32) {
    %c0_i32 = arith.constant 0 : i32
    %c0_i32_0 = arith.constant 0 : i32
    %c0_i32_1 = arith.constant 0 : i32
    return %c0_i32, %c0_i32_0 : i32, i32
  }
  func.func @transform_7(%arg0: i32) -> (i32, i32) {
    %c0_i32 = arith.constant 0 : i32
    %c0_i32_0 = arith.constant 0 : i32
    %c0_i32_1 = arith.constant 0 : i32
    return %c0_i32, %c0_i32_0 : i32, i32
  }
  func.func @transform_8(%arg0: i32) -> (i32, i32) {
    %c0_i32 = arith.constant 0 : i32
    %c0_i32_0 = arith.constant 0 : i32
    %c0_i32_1 = arith.constant 0 : i32
    return %c0_i32, %c0_i32_0 : i32, i32
  }
  func.func @transform_9(%arg0: i32) -> (i32, i32, i32) {
    %c0_i32 = arith.constant 0 : i32
    %c0_i32_0 = arith.constant 0 : i32
    %c0_i32_1 = arith.constant 0 : i32
    %c0_i32_2 = arith.constant 0 : i32
    return %c0_i32, %c0_i32_0, %c0_i32_1 : i32, i32, i32
  }
  func.func @transform_10(%arg0: i32) -> (i32, i32) {
    %c0_i32 = arith.constant 0 : i32
    %c0_i32_0 = arith.constant 0 : i32
    %c0_i32_1 = arith.constant 0 : i32
    return %c0_i32, %c0_i32_0 : i32, i32
  }
  func.func @transform_11(%arg0: i32) -> (i32, i32) {
    %c0_i32 = arith.constant 0 : i32
    %c0_i32_0 = arith.constant 0 : i32
    %c0_i32_1 = arith.constant 0 : i32
    return %c0_i32, %c0_i32_0 : i32, i32
  }
  func.func @transform_12(%arg0: i32) -> (i32, i32) {
    %c0_i32 = arith.constant 0 : i32
    %c0_i32_0 = arith.constant 0 : i32
    %c0_i32_1 = arith.constant 0 : i32
    return %c0_i32, %c0_i32_0 : i32, i32
  }
  func.func @transform_13(%arg0: i32) -> (i32, i32) {
    %c0_i32 = arith.constant 0 : i32
    %c0_i32_0 = arith.constant 0 : i32
    %c0_i32_1 = arith.constant 0 : i32
    return %c0_i32, %c0_i32_0 : i32, i32
  }
  func.func @transform_14(%arg0: i32) -> (i32, i32) {
    %c0_i32 = arith.constant 0 : i32
    %c0_i32_0 = arith.constant 0 : i32
    %c0_i32_1 = arith.constant 0 : i32
    return %c0_i32, %c0_i32_0 : i32, i32
  }
  func.func @transform_15(%arg0: i32) -> (i32, i32) {
    %c0_i32 = arith.constant 0 : i32
    %c0_i32_0 = arith.constant 0 : i32
    %c0_i32_1 = arith.constant 0 : i32
    return %c0_i32, %c0_i32_0 : i32, i32
  }
  func.func @transform_16(%arg0: i32) -> (i32, i32) {
    %c0_i32 = arith.constant 0 : i32
    %c0_i32_0 = arith.constant 0 : i32
    %c0_i32_1 = arith.constant 0 : i32
    return %c0_i32, %c0_i32_0 : i32, i32
  }
  func.func @transform_17(%arg0: i32) -> (i32, i32) {
    %c0_i32 = arith.constant 0 : i32
    %c0_i32_0 = arith.constant 0 : i32
    return %arg0, %c0_i32 : i32, i32
  }
}

</mosaic_0001>

<llo_original>
// kernel: tpu_custom_call.1
$region0: #{tpu_custom_call.1}
  #allocation0 [shape = 'u32[]', space=smem, size = 0x4, offset = 0x4, fixed_abs, tag = 'smem constant byte address 0x4 - core index']
  #allocation1 [shape = 'u32[144,128]{1,0:T(1,128)}', space=vmem, size = 0x12000, scoped, tag = 'internal scratch']
  #allocation2 [shape = 'bf16[224,128]{1,0:T(16,128)(2,1)}', space=vmem, size = 0xe000, scoped, tag = 'scratch operand']
  %s0 = inlined_call_operand.hbm [shape: f32[16,16], index: 0, kind: input, shape index: {}]
  %s1 = inlined_call_operand.hbm [shape: f32[7,128], index: 1, kind: input, shape index: {}]
  %s2 = inlined_call_operand.vmem [shape: f32[1,128], index: 2, kind: input, shape index: {}]
  %s3 = inlined_call_operand.vmem [shape: f32[1,128], index: 3, kind: input, shape index: {}]
  %s4 = inlined_call_operand.vmem [shape: f32[1,128], index: 4, kind: input, shape index: {}]
  %s5 = inlined_call_operand.hbm [shape: bf16[7,128,128], index: 5, kind: input, shape index: {}]
  %s6 = inlined_call_operand.vmem [shape: f32[1,128], index: 6, kind: input, shape index: {}]
  %s7 = inlined_call_operand.vmem [shape: f32[1,128], index: 7, kind: input, shape index: {}]
  %s8 = inlined_call_operand.vmem [shape: f32[1,128], index: 8, kind: input, shape index: {}]
  %s9 = inlined_call_operand.hbm [shape: bf16[7,128,128], index: 9, kind: input, shape index: {}]
  %s10 = inlined_call_operand.vmem [shape: f32[1,128], index: 10, kind: input, shape index: {}]
  %s11 = inlined_call_operand.vmem [shape: f32[1,128], index: 11, kind: input, shape index: {}]
  %s12 = inlined_call_operand.vmem [shape: f32[1,128], index: 12, kind: input, shape index: {}]
  %s13 = inlined_call_operand.hbm [shape: bf16[128,128], index: 13, kind: input, shape index: {}]
  %s14 = inlined_call_operand.vmem [shape: f32[1,128], index: 14, kind: input, shape index: {}]
  %s15 = inlined_call_operand.hbm [shape: bf16[128,128], index: 15, kind: input, shape index: {}]
  %s16 = inlined_call_operand.vmem [shape: f32[1,128], index: 16, kind: input, shape index: {}]
  %s17 = inlined_call_operand.hbm [shape: f32[16,128], index: 17, kind: output, shape index: {}]
  %s18 = sld [smem:[#allocation0]]
  $region125: #{tpu_custom_call.1} parent=0
    _
  %s20 = ssub.s32 1, %s18
  %s21 = scalar_select 0, %s20, %s18
  $region1: #{tpu_custom_call.1} parent=0
    #allocation3 [shape = 'u8[8192]{0}', space=vmem, size = 0x2000, scoped, tag = 'input window, operand 0']
    #allocation4 [shape = 's32[2]{0}', space=sflag, size = 0x8, scoped, tag = 'scoped memory for tpu_custom_call.1']
    #allocation5 [shape = 's32[2]{0}', space=sflag, size = 0x8, scoped, tag = 'scoped memory for tpu_custom_call.1']
    #allocation6 [shape = 'u8[4096]{0}', space=vmem, size = 0x1000, scoped, tag = 'input window, operand 1, single buffered']
    #allocation7 [shape = 's32[1]{0}', space=sflag, size = 0x4, scoped, tag = 'scoped memory for tpu_custom_call.1']
    #allocation8 [shape = 'u8[229376]{0}', space=vmem, size = 0x38000, scoped, tag = 'input window, operand 5, single buffered']
    #allocation9 [shape = 'u8[229376]{0}', space=vmem, size = 0x38000, scoped, tag = 'input window, operand 9, single buffered']
    #allocation10 [shape = 's32[1]{0}', space=sflag, size = 0x4, scoped, tag = 'scoped memory for tpu_custom_call.1']
    #allocation11 [shape = 'u8[32768]{0}', space=vmem, size = 0x8000, scoped, tag = 'input window, operand 13, single buffered']
    #allocation12 [shape = 'u8[32768]{0}', space=vmem, size = 0x8000, scoped, tag = 'input window, operand 15, single buffered']
    #allocation13 [shape = 's32[1]{0}', space=sflag, size = 0x4, scoped, tag = 'scoped memory for tpu_custom_call.1']
    #allocation14 [shape = 'u8[8192]{0}', space=vmem, size = 0x2000, scoped, tag = 'output window, operand 0']
    %22 = vsyncpa [#allocation4], 0
    %s23 = scalar_lea.sflag [#allocation4], 1
    %24 = vsyncpa %s23, 0
    %25 = vsyncpa [#allocation7], 0
    %26 = vsyncpa [#allocation10], 0
    %27 = vsyncpa [#allocation13], 0
    %28 = vsyncpa [#allocation5], 0
    %s29 = scalar_lea.sflag [#allocation5], 1
    %30 = vsyncpa %s29, 0
    loop: start=0, step=1, limit=4
    $region2: #{tpu_custom_call.1} parent=1 // loop_pre_header
      _
    $region3: #{tpu_custom_call.1} parent=1 // loop_header
      %s32 = sphi 0, %s36
      %p33 = scmp.ge.s32.totalorder %s32, 4
      %s42 = sphi 0, %s44
      %s45 = sphi 0, %s42
      %s46 = sphi 0, %s45
      %s62 = sphi 0, %s46
      %s66 = sphi 0, %s66
      %s68 = sphi 0, %s66
      %s69 = sphi 0, %s68
      %s83 = sphi 0, %s69
      %s87 = sphi 0, %s87
      %s89 = sphi 0, %s87
      %s90 = sphi 0, %s89
      %s104 = sphi 0, %s90
      %s108 = sphi 0, %s108
      %s110 = sphi 0, %s108
      %s111 = sphi 0, %s110
      %s125 = sphi 0, %s111
      %s129 = sphi 0, %s129
      %s131 = sphi 0, %s129
      %s132 = sphi 0, %s131
      %s146 = sphi 0, %s132
      %s150 = sphi 0, %s150
      %s152 = sphi 0, %s150
      %s153 = sphi 0, %s152
      %s167 = sphi 0, %s153
      %s171 = sphi 0, %s171
      %s173 = sphi 0, %s171
      %s174 = sphi 0, %s173
      %s188 = sphi 0, %s174
      %s192 = sphi 0, %s192
      %s194 = sphi 0, %s192
      %s195 = sphi 0, %s194
      %s209 = sphi 0, %s195
      %s213 = sphi 0, %s213
      %s215 = sphi 0, %s213
      %s216 = sphi 0, %s215
      %s230 = sphi 0, %s216
      %s234 = sphi 0, %s234
      %s236 = sphi 0, %s234
      %s237 = sphi 0, %s236
      %s251 = sphi 0, %s237
      %s255 = sphi 0, %s255
      %s257 = sphi 0, %s255
      %s258 = sphi 0, %s257
      %s272 = sphi 0, %s258
      %s276 = sphi 0, %s276
      %s278 = sphi 0, %s276
      %s279 = sphi 0, %s278
      %s293 = sphi 0, %s279
      %s297 = sphi 0, %s297
      %s299 = sphi 0, %s297
      %s300 = sphi 0, %s299
      %s314 = sphi 0, %s300
      %s318 = sphi 0, %s318
      %s320 = sphi 0, %s318
      %s321 = sphi 0, %s320
      %s335 = sphi 0, %s321
      %s339 = sphi 0, %s339
      %s341 = sphi 0, %s339
      %s342 = sphi 0, %s341
      %s356 = sphi 0, %s342
      %s360 = sphi 0, %s360
      %s362 = sphi 0, %s360
      %s363 = sphi 0, %s362
      %s377 = sphi 0, %s363
      %s381 = sphi 0, %s381
      %s383 = sphi 0, %s381
      %s384 = sphi 0, %s383
      %s398 = sphi 0, %s384
      %s404 = sphi 0, %s406
      %s407 = sphi 0, %s404
      %s408 = sphi 0, %s407
      %s424 = sphi 0, %s408
    $region4: #{tpu_custom_call.1} parent=1 // loop_header_branch
      %35 = sbr.rel (%p33) target = $region8
    $region5: #{tpu_custom_call.1} parent=1 // loop_body
      %s37 = ssub.s32 %s32, 1
      %s38 = ssub.s32 %s32, 2
      %s39 = sadd.s32 %s32, 1
      %s40 = ssub.s32 %s32, %s39
      %p41 = scmp.eq.s32.totalorder %s40, 0
      %s43 = sadd.s32 %s42, 1
      %s44 = scalar_select %p41, %s42, %s43
      %p47 = pneg %p41
      %p48 = scmp.eq.s32.totalorder %s32, 1
      %p49 = por %p47, %p48
      %p50 = scmp.ne.s32.totalorder %s42, %s45
      %p51 = scmp.eq.s32.totalorder %s32, 0
      %p52 = por %p50, %p51
      %p53 = scmp.ne.s32.totalorder %s42, %s45
      %p54 = scmp.eq.s32.totalorder %s37, 1
      %p55 = por %p53, %p54
      %p56 = scmp.ne.s32.totalorder %s45, %s46
      %p57 = scmp.eq.s32.totalorder %s37, 0
      %p58 = por %p56, %p57
      %p59 = scmp.ne.s32.totalorder %s45, %s46
      %p60 = scmp.eq.s32.totalorder %s38, 1
      %p61 = por %p59, %p60
      %p63 = scmp.ne.s32.totalorder %s46, %s62
      %p64 = scmp.eq.s32.totalorder %s38, 0
      %p65 = por %p63, %p64
      %s67 = sadd.s32 %s66, 1
      %p70 = scmp.eq.s32.totalorder %s32, 1
      %p71 = scmp.ne.s32.totalorder %s66, %s68
      %p72 = scmp.eq.s32.totalorder %s32, 0
      %p73 = por %p71, %p72
      %p74 = scmp.ne.s32.totalorder %s66, %s68
      %p75 = scmp.eq.s32.totalorder %s37, 1
      %p76 = por %p74, %p75
      %p77 = scmp.ne.s32.totalorder %s68, %s69
      %p78 = scmp.eq.s32.totalorder %s37, 0
      %p79 = por %p77, %p78
      %p80 = scmp.ne.s32.totalorder %s68, %s69
      %p81 = scmp.eq.s32.totalorder %s38, 1
      %p82 = por %p80, %p81
      %p84 = scmp.ne.s32.totalorder %s69, %s83
      %p85 = scmp.eq.s32.totalorder %s38, 0
      %p86 = por %p84, %p85
      %s88 = sadd.s32 %s87, 1
      %p91 = scmp.eq.s32.totalorder %s32, 1
      %p92 = scmp.ne.s32.totalorder %s87, %s89
      %p93 = scmp.eq.s32.totalorder %s32, 0
      %p94 = por %p92, %p93
      %p95 = scmp.ne.s32.totalorder %s87, %s89
      %p96 = scmp.eq.s32.totalorder %s37, 1
      %p97 = por %p95, %p96
      %p98 = scmp.ne.s32.totalorder %s89, %s90
      %p99 = scmp.eq.s32.totalorder %s37, 0
      %p100 = por %p98, %p99
      %p101 = scmp.ne.s32.totalorder %s89, %s90
      %p102 = scmp.eq.s32.totalorder %s38, 1
      %p103 = por %p101, %p102
      %p105 = scmp.ne.s32.totalorder %s90, %s104
      %p106 = scmp.eq.s32.totalorder %s38, 0
      %p107 = por %p105, %p106
      %s109 = sadd.s32 %s108, 1
      %p112 = scmp.eq.s32.totalorder %s32, 1
      %p113 = scmp.ne.s32.totalorder %s108, %s110
      %p114 = scmp.eq.s32.totalorder %s32, 0
      %p115 = por %p113, %p114
      %p116 = scmp.ne.s32.totalorder %s108, %s110
      %p117 = scmp.eq.s32.totalorder %s37, 1
      %p118 = por %p116, %p117
      %p119 = scmp.ne.s32.totalorder %s110, %s111
      %p120 = scmp.eq.s32.totalorder %s37, 0
      %p121 = por %p119, %p120
      %p122 = scmp.ne.s32.totalorder %s110, %s111
      %p123 = scmp.eq.s32.totalorder %s38, 1
      %p124 = por %p122, %p123
      %p126 = scmp.ne.s32.totalorder %s111, %s125
      %p127 = scmp.eq.s32.totalorder %s38, 0
      %p128 = por %p126, %p127
      %s130 = sadd.s32 %s129, 1
      %p133 = scmp.eq.s32.totalorder %s32, 1
      %p134 = scmp.ne.s32.totalorder %s129, %s131
      %p135 = scmp.eq.s32.totalorder %s32, 0
      %p136 = por %p134, %p135
      %p137 = scmp.ne.s32.totalorder %s129, %s131
      %p138 = scmp.eq.s32.totalorder %s37, 1
      %p139 = por %p137, %p138
      %p140 = scmp.ne.s32.totalorder %s131, %s132
      %p141 = scmp.eq.s32.totalorder %s37, 0
      %p142 = por %p140, %p141
      %p143 = scmp.ne.s32.totalorder %s131, %s132
      %p144 = scmp.eq.s32.totalorder %s38, 1
      %p145 = por %p143, %p144
      %p147 = scmp.ne.s32.totalorder %s132, %s146
      %p148 = scmp.eq.s32.totalorder %s38, 0
      %p149 = por %p147, %p148
      %s151 = sadd.s32 %s150, 1
      %p154 = scmp.eq.s32.totalorder %s32, 1
      %p155 = scmp.ne.s32.totalorder %s150, %s152
      %p156 = scmp.eq.s32.totalorder %s32, 0
      %p157 = por %p155, %p156
      %p158 = scmp.ne.s32.totalorder %s150, %s152
      %p159 = scmp.eq.s32.totalorder %s37, 1
      %p160 = por %p158, %p159
      %p161 = scmp.ne.s32.totalorder %s152, %s153
      %p162 = scmp.eq.s32.totalorder %s37, 0
      %p163 = por %p161, %p162
      %p164 = scmp.ne.s32.totalorder %s152, %s153
      %p165 = scmp.eq.s32.totalorder %s38, 1
      %p166 = por %p164, %p165
      %p168 = scmp.ne.s32.totalorder %s153, %s167
      %p169 = scmp.eq.s32.totalorder %s38, 0
      %p170 = por %p168, %p169
      %s172 = sadd.s32 %s171, 1
      %p175 = scmp.eq.s32.totalorder %s32, 1
      %p176 = scmp.ne.s32.totalorder %s171, %s173
      %p177 = scmp.eq.s32.totalorder %s32, 0
      %p178 = por %p176, %p177
      %p179 = scmp.ne.s32.totalorder %s171, %s173
      %p180 = scmp.eq.s32.totalorder %s37, 1
      %p181 = por %p179, %p180
      %p182 = scmp.ne.s32.totalorder %s173, %s174
      %p183 = scmp.eq.s32.totalorder %s37, 0
      %p184 = por %p182, %p183
      %p185 = scmp.ne.s32.totalorder %s173, %s174
      %p186 = scmp.eq.s32.totalorder %s38, 1
      %p187 = por %p185, %p186
      %p189 = scmp.ne.s32.totalorder %s174, %s188
      %p190 = scmp.eq.s32.totalorder %s38, 0
      %p191 = por %p189, %p190
      %s193 = sadd.s32 %s192, 1
      %p196 = scmp.eq.s32.totalorder %s32, 1
      %p197 = scmp.ne.s32.totalorder %s192, %s194
      %p198 = scmp.eq.s32.totalorder %s32, 0
      %p199 = por %p197, %p198
      %p200 = scmp.ne.s32.totalorder %s192, %s194
      %p201 = scmp.eq.s32.totalorder %s37, 1
      %p202 = por %p200, %p201
      %p203 = scmp.ne.s32.totalorder %s194, %s195
      %p204 = scmp.eq.s32.totalorder %s37, 0
      %p205 = por %p203, %p204
      %p206 = scmp.ne.s32.totalorder %s194, %s195
      %p207 = scmp.eq.s32.totalorder %s38, 1
      %p208 = por %p206, %p207
      %p210 = scmp.ne.s32.totalorder %s195, %s209
      %p211 = scmp.eq.s32.totalorder %s38, 0
      %p212 = por %p210, %p211
      %s214 = sadd.s32 %s213, 1
      %p217 = scmp.eq.s32.totalorder %s32, 1
      %p218 = scmp.ne.s32.totalorder %s213, %s215
      %p219 = scmp.eq.s32.totalorder %s32, 0
      %p220 = por %p218, %p219
      %p221 = scmp.ne.s32.totalorder %s213, %s215
      %p222 = scmp.eq.s32.totalorder %s37, 1
      %p223 = por %p221, %p222
      %p224 = scmp.ne.s32.totalorder %s215, %s216
      %p225 = scmp.eq.s32.totalorder %s37, 0
      %p226 = por %p224, %p225
      %p227 = scmp.ne.s32.totalorder %s215, %s216
      %p228 = scmp.eq.s32.totalorder %s38, 1
      %p229 = por %p227, %p228
      %p231 = scmp.ne.s32.totalorder %s216, %s230
      %p232 = scmp.eq.s32.totalorder %s38, 0
      %p233 = por %p231, %p232
      %s235 = sadd.s32 %s234, 1
      %p238 = scmp.eq.s32.totalorder %s32, 1
      %p239 = scmp.ne.s32.totalorder %s234, %s236
      %p240 = scmp.eq.s32.totalorder %s32, 0
      %p241 = por %p239, %p240
      %p242 = scmp.ne.s32.totalorder %s234, %s236
      %p243 = scmp.eq.s32.totalorder %s37, 1
      %p244 = por %p242, %p243
      %p245 = scmp.ne.s32.totalorder %s236, %s237
      %p246 = scmp.eq.s32.totalorder %s37, 0
      %p247 = por %p245, %p246
      %p248 = scmp.ne.s32.totalorder %s236, %s237
      %p249 = scmp.eq.s32.totalorder %s38, 1
      %p250 = por %p248, %p249
      %p252 = scmp.ne.s32.totalorder %s237, %s251
      %p253 = scmp.eq.s32.totalorder %s38, 0
      %p254 = por %p252, %p253
      %s256 = sadd.s32 %s255, 1
      %p259 = scmp.eq.s32.totalorder %s32, 1
      %p260 = scmp.ne.s32.totalorder %s255, %s257
      %p261 = scmp.eq.s32.totalorder %s32, 0
      %p262 = por %p260, %p261
      %p263 = scmp.ne.s32.totalorder %s255, %s257
      %p264 = scmp.eq.s32.totalorder %s37, 1
      %p265 = por %p263, %p264
      %p266 = scmp.ne.s32.totalorder %s257, %s258
      %p267 = scmp.eq.s32.totalorder %s37, 0
      %p268 = por %p266, %p267
      %p269 = scmp.ne.s32.totalorder %s257, %s258
      %p270 = scmp.eq.s32.totalorder %s38, 1
      %p271 = por %p269, %p270
      %p273 = scmp.ne.s32.totalorder %s258, %s272
      %p274 = scmp.eq.s32.totalorder %s38, 0
      %p275 = por %p273, %p274
      %s277 = sadd.s32 %s276, 1
      %p280 = scmp.eq.s32.totalorder %s32, 1
      %p281 = scmp.ne.s32.totalorder %s276, %s278
      %p282 = scmp.eq.s32.totalorder %s32, 0
      %p283 = por %p281, %p282
      %p284 = scmp.ne.s32.totalorder %s276, %s278
      %p285 = scmp.eq.s32.totalorder %s37, 1
      %p286 = por %p284, %p285
      %p287 = scmp.ne.s32.totalorder %s278, %s279
      %p288 = scmp.eq.s32.totalorder %s37, 0
      %p289 = por %p287, %p288
      %p290 = scmp.ne.s32.totalorder %s278, %s279
      %p291 = scmp.eq.s32.totalorder %s38, 1
      %p292 = por %p290, %p291
      %p294 = scmp.ne.s32.totalorder %s279, %s293
      %p295 = scmp.eq.s32.totalorder %s38, 0
      %p296 = por %p294, %p295
      %s298 = sadd.s32 %s297, 1
      %p301 = scmp.eq.s32.totalorder %s32, 1
      %p302 = scmp.ne.s32.totalorder %s297, %s299
      %p303 = scmp.eq.s32.totalorder %s32, 0
      %p304 = por %p302, %p303
      %p305 = scmp.ne.s32.totalorder %s297, %s299
      %p306 = scmp.eq.s32.totalorder %s37, 1
      %p307 = por %p305, %p306
      %p308 = scmp.ne.s32.totalorder %s299, %s300
      %p309 = scmp.eq.s32.totalorder %s37, 0
      %p310 = por %p308, %p309
      %p311 = scmp.ne.s32.totalorder %s299, %s300
      %p312 = scmp.eq.s32.totalorder %s38, 1
      %p313 = por %p311, %p312
      %p315 = scmp.ne.s32.totalorder %s300, %s314
      %p316 = scmp.eq.s32.totalorder %s38, 0
      %p317 = por %p315, %p316
      %s319 = sadd.s32 %s318, 1
      %p322 = scmp.eq.s32.totalorder %s32, 1
      %p323 = scmp.ne.s32.totalorder %s318, %s320
      %p324 = scmp.eq.s32.totalorder %s32, 0
      %p325 = por %p323, %p324
      %p326 = scmp.ne.s32.totalorder %s318, %s320
      %p327 = scmp.eq.s32.totalorder %s37, 1
      %p328 = por %p326, %p327
      %p329 = scmp.ne.s32.totalorder %s320, %s321
      %p330 = scmp.eq.s32.totalorder %s37, 0
      %p331 = por %p329, %p330
      %p332 = scmp.ne.s32.totalorder %s320, %s321
      %p333 = scmp.eq.s32.totalorder %s38, 1
      %p334 = por %p332, %p333
      %p336 = scmp.ne.s32.totalorder %s321, %s335
      %p337 = scmp.eq.s32.totalorder %s38, 0
      %p338 = por %p336, %p337
      %s340 = sadd.s32 %s339, 1
      %p343 = scmp.eq.s32.totalorder %s32, 1
      %p344 = scmp.ne.s32.totalorder %s339, %s341
      %p345 = scmp.eq.s32.totalorder %s32, 0
      %p346 = por %p344, %p345
      %p347 = scmp.ne.s32.totalorder %s339, %s341
      %p348 = scmp.eq.s32.totalorder %s37, 1
      %p349 = por %p347, %p348
      %p350 = scmp.ne.s32.totalorder %s341, %s342
      %p351 = scmp.eq.s32.totalorder %s37, 0
      %p352 = por %p350, %p351
      %p353 = scmp.ne.s32.totalorder %s341, %s342
      %p354 = scmp.eq.s32.totalorder %s38, 1
      %p355 = por %p353, %p354
      %p357 = scmp.ne.s32.totalorder %s342, %s356
      %p358 = scmp.eq.s32.totalorder %s38, 0
      %p359 = por %p357, %p358
      %s361 = sadd.s32 %s360, 1
      %p364 = scmp.eq.s32.totalorder %s32, 1
      %p365 = scmp.ne.s32.totalorder %s360, %s362
      %p366 = scmp.eq.s32.totalorder %s32, 0
      %p367 = por %p365, %p366
      %p368 = scmp.ne.s32.totalorder %s360, %s362
      %p369 = scmp.eq.s32.totalorder %s37, 1
      %p370 = por %p368, %p369
      %p371 = scmp.ne.s32.totalorder %s362, %s363
      %p372 = scmp.eq.s32.totalorder %s37, 0
      %p373 = por %p371, %p372
      %p374 = scmp.ne.s32.totalorder %s362, %s363
      %p375 = scmp.eq.s32.totalorder %s38, 1
      %p376 = por %p374, %p375
      %p378 = scmp.ne.s32.totalorder %s363, %s377
      %p379 = scmp.eq.s32.totalorder %s38, 0
      %p380 = por %p378, %p379
      %s382 = sadd.s32 %s381, 1
      %p385 = scmp.eq.s32.totalorder %s32, 1
      %p386 = scmp.ne.s32.totalorder %s381, %s383
      %p387 = scmp.eq.s32.totalorder %s32, 0
      %p388 = por %p386, %p387
      %p389 = scmp.ne.s32.totalorder %s381, %s383
      %p390 = scmp.eq.s32.totalorder %s37, 1
      %p391 = por %p389, %p390
      %p392 = scmp.ne.s32.totalorder %s383, %s384
      %p393 = scmp.eq.s32.totalorder %s37, 0
      %p394 = por %p392, %p393
      %p395 = scmp.ne.s32.totalorder %s383, %s384
      %p396 = scmp.eq.s32.totalorder %s38, 1
      %p397 = por %p395, %p396
      %p399 = scmp.ne.s32.totalorder %s384, %s398
      %p400 = scmp.eq.s32.totalorder %s38, 0
      %p401 = por %p399, %p400
      %s402 = ssub.s32 %s32, %s39
      %p403 = scmp.eq.s32.totalorder %s402, 0
      %s405 = sadd.s32 %s404, 1
      %s406 = scalar_select %p403, %s404, %s405
      %p409 = pneg %p403
      %p410 = scmp.eq.s32.totalorder %s32, 1
      %p411 = por %p409, %p410
      %p412 = scmp.ne.s32.totalorder %s404, %s407
      %p413 = scmp.eq.s32.totalorder %s32, 0
      %p414 = por %p412, %p413
      %p415 = scmp.ne.s32.totalorder %s404, %s407
      %p416 = scmp.eq.s32.totalorder %s37, 1
      %p417 = por %p415, %p416
      %p418 = scmp.ne.s32.totalorder %s407, %s408
      %p419 = scmp.eq.s32.totalorder %s37, 0
      %p420 = por %p418, %p419
      %p421 = scmp.ne.s32.totalorder %s407, %s408
      %p422 = scmp.eq.s32.totalorder %s38, 1
      %p423 = por %p421, %p422
      %p425 = scmp.ne.s32.totalorder %s408, %s424
      %p426 = scmp.eq.s32.totalorder %s38, 0
      %p427 = por %p425, %p426
      %p428 = scmp.le.s32.totalorder 1, %s32
      %p429 = scmp.lt.s32.totalorder %s32, 3
      %p430 = pnand %p428, %p429
      %p431 = pneg %p430
      // Predicated region
      $region9: #{tpu_custom_call.1} parent=5 // pred_check
        _
      $region10: #{tpu_custom_call.1} parent=5 // pred_check_branch
        %433 = sbr.rel (%p430) target = $region12
      $region11: #{tpu_custom_call.1} parent=5 // pred_region
        %s434 = ssub.s32 %s32, 1
        // Predicated region
        $region13: #{tpu_custom_call.1} parent=11 // pred_check
          %p435 = pneg %p79
        $region14: #{tpu_custom_call.1} parent=11 // pred_check_branch
          %437 = sbr.rel (%p435) target = $region16
        $region15: #{tpu_custom_call.1} parent=11 // pred_region
          %s439 = ssub.s32 128, 128
          %440 = vsyncadd [#allocation7], %s439
          %s442 = sshll.u32 [#allocation6], 4
          %s443 = int_to_ptr.vmem [resolvable:$true] %s442
          %445 = dma.hbm_to_vmem [thread:$0]  %s1, 128, %s443, [#allocation7]
        $region16: #{tpu_custom_call.1} parent=11 // pred_fallthru
          _
        // Predicated region
        $region17: #{tpu_custom_call.1} parent=11 // pred_check
          %p446 = pneg %p100
        $region18: #{tpu_custom_call.1} parent=11 // pred_check_branch
          %448 = sbr.rel (%p446) target = $region20
        $region19: #{tpu_custom_call.1} parent=11 // pred_region
          _
        $region20: #{tpu_custom_call.1} parent=11 // pred_fallthru
          _
        // Predicated region
        $region21: #{tpu_custom_call.1} parent=11 // pred_check
          %p449 = pneg %p121
        $region22: #{tpu_custom_call.1} parent=11 // pred_check_branch
          %451 = sbr.rel (%p449) target = $region24
        $region23: #{tpu_custom_call.1} parent=11 // pred_region
          _
        $region24: #{tpu_custom_call.1} parent=11 // pred_fallthru
          _
        // Predicated region
        $region25: #{tpu_custom_call.1} parent=11 // pred_check
          %p452 = pneg %p142
        $region26: #{tpu_custom_call.1} parent=11 // pred_check_branch
          %454 = sbr.rel (%p452) target = $region28
        $region27: #{tpu_custom_call.1} parent=11 // pred_region
          _
        $region28: #{tpu_custom_call.1} parent=11 // pred_fallthru
          _
        // Predicated region
        $region29: #{tpu_custom_call.1} parent=11 // pred_check
          %p455 = pneg %p163
        $region30: #{tpu_custom_call.1} parent=11 // pred_check_branch
          %457 = sbr.rel (%p455) target = $region32
        $region31: #{tpu_custom_call.1} parent=11 // pred_region
          %s459 = ssub.s32 7168, 7168
          %460 = vsyncadd [#allocation7], %s459
          %s461 = sshll.u32 [#allocation8], 4
          %s462 = int_to_ptr.vmem [resolvable:$true] %s461
          %467 = dma.hbm_to_vmem [thread:$0]  %s5, 7168, %s462, [#allocation7], 64, 64, 4
        $region32: #{tpu_custom_call.1} parent=11 // pred_fallthru
          _
        // Predicated region
        $region33: #{tpu_custom_call.1} parent=11 // pred_check
          %p468 = pneg %p184
        $region34: #{tpu_custom_call.1} parent=11 // pred_check_branch
          %470 = sbr.rel (%p468) target = $region36
        $region35: #{tpu_custom_call.1} parent=11 // pred_region
          _
        $region36: #{tpu_custom_call.1} parent=11 // pred_fallthru
          _
        // Predicated region
        $region37: #{tpu_custom_call.1} parent=11 // pred_check
          %p471 = pneg %p205
        $region38: #{tpu_custom_call.1} parent=11 // pred_check_branch
          %473 = sbr.rel (%p471) target = $region40
        $region39: #{tpu_custom_call.1} parent=11 // pred_region
          _
        $region40: #{tpu_custom_call.1} parent=11 // pred_fallthru
          _
        // Predicated region
        $region41: #{tpu_custom_call.1} parent=11 // pred_check
          %p474 = pneg %p226
        $region42: #{tpu_custom_call.1} parent=11 // pred_check_branch
          %476 = sbr.rel (%p474) target = $region44
        $region43: #{tpu_custom_call.1} parent=11 // pred_region
          _
        $region44: #{tpu_custom_call.1} parent=11 // pred_fallthru
          _
        // Predicated region
        $region45: #{tpu_custom_call.1} parent=11 // pred_check
          %p477 = pneg %p247
        $region46: #{tpu_custom_call.1} parent=11 // pred_check_branch
          %479 = sbr.rel (%p477) target = $region48
        $region47: #{tpu_custom_call.1} parent=11 // pred_region
          %s481 = ssub.s32 7168, 7168
          %482 = vsyncadd [#allocation10], %s481
          %s483 = sshll.u32 [#allocation9], 4
          %s484 = int_to_ptr.vmem [resolvable:$true] %s483
          %489 = dma.hbm_to_vmem [thread:$0]  %s9, 7168, %s484, [#allocation10], 64, 64, 4
        $region48: #{tpu_custom_call.1} parent=11 // pred_fallthru
          _
        // Predicated region
        $region49: #{tpu_custom_call.1} parent=11 // pred_check
          %p490 = pneg %p268
        $region50: #{tpu_custom_call.1} parent=11 // pred_check_branch
          %492 = sbr.rel (%p490) target = $region52
        $region51: #{tpu_custom_call.1} parent=11 // pred_region
          _
        $region52: #{tpu_custom_call.1} parent=11 // pred_fallthru
          _
        // Predicated region
        $region53: #{tpu_custom_call.1} parent=11 // pred_check
          %p493 = pneg %p289
        $region54: #{tpu_custom_call.1} parent=11 // pred_check_branch
          %495 = sbr.rel (%p493) target = $region56
        $region55: #{tpu_custom_call.1} parent=11 // pred_region
          _
        $region56: #{tpu_custom_call.1} parent=11 // pred_fallthru
          _
        // Predicated region
        $region57: #{tpu_custom_call.1} parent=11 // pred_check
          %p496 = pneg %p310
        $region58: #{tpu_custom_call.1} parent=11 // pred_check_branch
          %498 = sbr.rel (%p496) target = $region60
        $region59: #{tpu_custom_call.1} parent=11 // pred_region
          _
        $region60: #{tpu_custom_call.1} parent=11 // pred_fallthru
          _
        // Predicated region
        $region61: #{tpu_custom_call.1} parent=11 // pred_check
          %p499 = pneg %p331
        $region62: #{tpu_custom_call.1} parent=11 // pred_check_branch
          %501 = sbr.rel (%p499) target = $region64
        $region63: #{tpu_custom_call.1} parent=11 // pred_region
          %s503 = ssub.s32 1024, 1024
          %504 = vsyncadd [#allocation10], %s503
          %s505 = sshll.u32 [#allocation11], 4
          %s506 = int_to_ptr.vmem [resolvable:$true] %s505
          %511 = dma.hbm_to_vmem [thread:$0]  %s13, 1024, %s506, [#allocation10], 64, 64, 4
        $region64: #{tpu_custom_call.1} parent=11 // pred_fallthru
          _
        // Predicated region
        $region65: #{tpu_custom_call.1} parent=11 // pred_check
          %p512 = pneg %p352
        $region66: #{tpu_custom_call.1} parent=11 // pred_check_branch
          %514 = sbr.rel (%p512) target = $region68
        $region67: #{tpu_custom_call.1} parent=11 // pred_region
          _
        $region68: #{tpu_custom_call.1} parent=11 // pred_fallthru
          _
        // Predicated region
        $region69: #{tpu_custom_call.1} parent=11 // pred_check
          %p515 = pneg %p373
        $region70: #{tpu_custom_call.1} parent=11 // pred_check_branch
          %517 = sbr.rel (%p515) target = $region72
        $region71: #{tpu_custom_call.1} parent=11 // pred_region
          %s519 = ssub.s32 1024, 1024
          %520 = vsyncadd [#allocation13], %s519
          %s521 = sshll.u32 [#allocation12], 4
          %s522 = int_to_ptr.vmem [resolvable:$true] %s521
          %527 = dma.hbm_to_vmem [thread:$0]  %s15, 1024, %s522, [#allocation13], 64, 64, 4
        $region72: #{tpu_custom_call.1} parent=11 // pred_fallthru
          _
        // Predicated region
        $region73: #{tpu_custom_call.1} parent=11 // pred_check
          %p528 = pneg %p394
        $region74: #{tpu_custom_call.1} parent=11 // pred_check_branch
          %530 = sbr.rel (%p528) target = $region76
        $region75: #{tpu_custom_call.1} parent=11 // pred_region
          _
        $region76: #{tpu_custom_call.1} parent=11 // pred_fallthru
          _
      $region12: #{tpu_custom_call.1} parent=5 // pred_fallthru
        _
      %p531 = scmp.lt.s32.totalorder %s32, 2
      // Predicated region
      $region77: #{tpu_custom_call.1} parent=5 // pred_check
        %p532 = pneg %p531
      $region78: #{tpu_custom_call.1} parent=5 // pred_check_branch
        %534 = sbr.rel (%p532) target = $region80
      $region79: #{tpu_custom_call.1} parent=5 // pred_region
        // Predicated region
        $region81: #{tpu_custom_call.1} parent=79 // pred_check
          %p535 = pneg %p52
        $region82: #{tpu_custom_call.1} parent=79 // pred_check_branch
          %537 = sbr.rel (%p535) target = $region84
        $region83: #{tpu_custom_call.1} parent=79 // pred_region
          %s538 = sand.u32 %s42, 1
          %s539 = scalar_lea.sflag [#allocation4], %s538
          %s540 = sand.u32 %s42, 1
          %s541 = smul.addr %s540, 8
          %s542 = scalar_lea.vmem [#allocation3], %s541
          %s544 = ssub.s32 128, 128
          %545 = vsyncadd %s539, %s544
          %s546 = smul.addr %s32, 128
          %s547 = scalar_lea.hbm %s0, %s546
          %s549 = sshll.u32 %s542, 4
          %s550 = int_to_ptr.vmem [resolvable:$true] %s549
          %552 = dma.hbm_to_vmem [thread:$0]  %s547, 128, %s550, %s539
        $region84: #{tpu_custom_call.1} parent=79 // pred_fallthru
          _
      $region80: #{tpu_custom_call.1} parent=5 // pred_fallthru
        _
      %p553 = scmp.le.s32.totalorder 1, %s32
      %p554 = scmp.lt.s32.totalorder %s32, 3
      %p555 = pnand %p553, %p554
      %p556 = pneg %p555
      // Predicated region
      $region85: #{tpu_custom_call.1} parent=5 // pred_check
        _
      $region86: #{tpu_custom_call.1} parent=5 // pred_check_branch
        %558 = sbr.rel (%p555) target = $region88
      $region87: #{tpu_custom_call.1} parent=5 // pred_region
        %s559 = ssub.s32 %s32, 1
        %s560 = sand.u32 %s45, 1
        %s561 = scalar_lea.sflag [#allocation4], %s560
        %s562 = sand.u32 %s45, 1
        %s563 = smul.addr %s562, 8
        %s564 = scalar_lea.vmem [#allocation3], %s563
        // Predicated region
        $region89: #{tpu_custom_call.1} parent=87 // pred_check
          %p565 = pneg %p58
        $region90: #{tpu_custom_call.1} parent=87 // pred_check_branch
          %567 = sbr.rel (%p565) target = $region92
        $region91: #{tpu_custom_call.1} parent=87 // pred_region
          %568 = dma.done %s561, 128
        $region92: #{tpu_custom_call.1} parent=87 // pred_fallthru
          _
        // Predicated region
        $region93: #{tpu_custom_call.1} parent=87 // pred_check
          %p569 = pneg %p79
        $region94: #{tpu_custom_call.1} parent=87 // pred_check_branch
          %571 = sbr.rel (%p569) target = $region96
        $region95: #{tpu_custom_call.1} parent=87 // pred_region
          %572 = dma.done [#allocation7], 128
        $region96: #{tpu_custom_call.1} parent=87 // pred_fallthru
          _
        // Predicated region
        $region97: #{tpu_custom_call.1} parent=87 // pred_check
          %p573 = pneg %p163
        $region98: #{tpu_custom_call.1} parent=87 // pred_check_branch
          %575 = sbr.rel (%p573) target = $region100
        $region99: #{tpu_custom_call.1} parent=87 // pred_region
          %576 = dma.done [#allocation7], 7168
        $region100: #{tpu_custom_call.1} parent=87 // pred_fallthru
          _
        // Predicated region
        $region101: #{tpu_custom_call.1} parent=87 // pred_check
          %p577 = pneg %p247
        $region102: #{tpu_custom_call.1} parent=87 // pred_check_branch
          %579 = sbr.rel (%p577) target = $region104
        $region103: #{tpu_custom_call.1} parent=87 // pred_region
          %580 = dma.done [#allocation10], 7168
        $region104: #{tpu_custom_call.1} parent=87 // pred_fallthru
          _
        // Predicated region
        $region105: #{tpu_custom_call.1} parent=87 // pred_check
          %p581 = pneg %p331
        $region106: #{tpu_custom_call.1} parent=87 // pred_check_branch
          %583 = sbr.rel (%p581) target = $region108
        $region107: #{tpu_custom_call.1} parent=87 // pred_region
          %584 = dma.done [#allocation10], 1024
        $region108: #{tpu_custom_call.1} parent=87 // pred_fallthru
          _
        // Predicated region
        $region109: #{tpu_custom_call.1} parent=87 // pred_check
          %p585 = pneg %p373
        $region110: #{tpu_custom_call.1} parent=87 // pred_check_branch
          %587 = sbr.rel (%p585) target = $region112
        $region111: #{tpu_custom_call.1} parent=87 // pred_region
          %588 = dma.done [#allocation13], 1024
        $region112: #{tpu_custom_call.1} parent=87 // pred_fallthru
          _
        %s589 = sand.u32 %s45, 1
        %s590 = scalar_lea.sflag [#allocation4], %s589
        %s591 = sand.u32 %s45, 1
        %s592 = smul.addr %s591, 8
        %s593 = scalar_lea.vmem [#allocation3], %s592
        %p594 = pneg %p58
        %p595 = pneg %p55
        %p596 = pneg %p79
        %p597 = pneg %p76
        %p598 = pneg %p100
        %p599 = pneg %p97
        %p600 = pneg %p121
        %p601 = pneg %p118
        %p602 = pneg %p142
        %p603 = pneg %p139
        %p604 = pneg %p163
        %p605 = pneg %p160
        %p606 = pneg %p184
        %p607 = pneg %p181
        %p608 = pneg %p205
        %p609 = pneg %p202
        %p610 = pneg %p226
        %p611 = pneg %p223
        %p612 = pneg %p247
        %p613 = pneg %p244
        %p614 = pneg %p268
        %p615 = pneg %p265
        %p616 = pneg %p289
        %p617 = pneg %p286
        %p618 = pneg %p310
        %p619 = pneg %p307
        %p620 = pneg %p331
        %p621 = pneg %p328
        %p622 = pneg %p352
        %p623 = pneg %p349
        %p624 = pneg %p373
        %p625 = pneg %p370
        %p626 = pneg %p394
        %p627 = pneg %p391
        %p628 = pneg %p420
        %p629 = pneg %p417
        %s630 = sand.u32 %s407, 1
        %s631 = scalar_lea.sflag [#allocation5], %s630
        %s632 = sand.u32 %s407, 1
        %s633 = smul.addr %s632, 8
        %s634 = scalar_lea.vmem [#allocation14], %s633
        %636 = vst [vmem:[#allocation2] sm:$0xff] 0
        %637 = vst [vmem:[#allocation2 + $0x68] sm:$0xff] 0
        %v638 = vld [vmem:[%s564] sm:$0xff]
        %640 = vrot.lane.b32.xlu0 %v638, 3
        %v641 = vpop.permute.xlu0 %640
        %vm643 = vcmask 23552
        %v644 = vsel %vm643, 0.0, %v641
        %vm645 = vcmask 154624
        %v646 = vsel %vm645, %v644, 0.0
        %v647 = vld [vmem:[#allocation6] sm:$0x7f]
        %v648 = vlaneseq
        %v649 = vshrl.u32 %v648, 7
        %v650 = vsub.s32 0, %v649
        %v651 = vrot.slane %v646, %v650
        %653 = vbcast.lane.b32.xlu0 %v651, 256
        %v654 = vpop.permute.xlu0 %653
        %s656 = sor.u32 256, 8
        %657 = vbcast.lane.b32.xlu0 %v651, %s656
        %v658 = vpop.permute.xlu0 %657
        %v659 = vlaneseq
        %v660 = vshrl.u32 %v659, 7
        %v661 = vsub.s32 1, %v660
        %v662 = vrot.slane %v646, %v661
        %664 = vbcast.lane.b32.xlu0 %v662, 256
        %v665 = vpop.permute.xlu0 %664
        %s667 = sor.u32 256, 8
        %668 = vbcast.lane.b32.xlu0 %v662, %s667
        %v669 = vpop.permute.xlu0 %668
        %v670 = vlaneseq
        %v671 = vshrl.u32 %v670, 7
        %v672 = vsub.s32 2, %v671
        %v673 = vrot.slane %v646, %v672
        %675 = vbcast.lane.b32.xlu0 %v673, 256
        %v676 = vpop.permute.xlu0 %675
        %s678 = sor.u32 256, 8
        %679 = vbcast.lane.b32.xlu0 %v673, %s678
        %v680 = vpop.permute.xlu0 %679
        %v681 = vlaneseq
        %v682 = vshrl.u32 %v681, 7
        %v683 = vsub.s32 3, %v682
        %v684 = vrot.slane %v646, %v683
        %686 = vbcast.lane.b32.xlu0 %v684, 256
        %v687 = vpop.permute.xlu0 %686
        %s689 = sor.u32 256, 8
        %690 = vbcast.lane.b32.xlu0 %v684, %s689
        %v691 = vpop.permute.xlu0 %690
        %v692 = vlaneseq
        %v693 = vshrl.u32 %v692, 7
        %v694 = vsub.s32 4, %v693
        %v695 = vrot.slane %v646, %v694
        %697 = vbcast.lane.b32.xlu0 %v695, 256
        %v698 = vpop.permute.xlu0 %697
        %s700 = sor.u32 256, 8
        %701 = vbcast.lane.b32.xlu0 %v695, %s700
        %v702 = vpop.permute.xlu0 %701
        %v703 = vlaneseq
        %v704 = vshrl.u32 %v703, 7
        %v705 = vsub.s32 5, %v704
        %v706 = vrot.slane %v646, %v705
        %708 = vbcast.lane.b32.xlu0 %v706, 256
        %v709 = vpop.permute.xlu0 %708
        %s711 = sor.u32 256, 8
        %712 = vbcast.lane.b32.xlu0 %v706, %s711
        %v713 = vpop.permute.xlu0 %712
        %v714 = vlaneseq
        %v715 = vshrl.u32 %v714, 7
        %v716 = vsub.s32 6, %v715
        %v717 = vrot.slane %v646, %v716
        %719 = vbcast.lane.b32.xlu0 %v717, 256
        %v720 = vpop.permute.xlu0 %719
        %s722 = sor.u32 256, 8
        %723 = vbcast.lane.b32.xlu0 %v717, %s722
        %v724 = vpop.permute.xlu0 %723
        %v725 = vlaneseq
        %v726 = vshrl.u32 %v725, 7
        %v727 = vsub.s32 7, %v726
        %v728 = vrot.slane %v646, %v727
        %730 = vbcast.lane.b32.xlu0 %v728, 256
        %v731 = vpop.permute.xlu0 %730
        %s733 = sor.u32 256, 8
        %734 = vbcast.lane.b32.xlu0 %v728, %s733
        %v735 = vpop.permute.xlu0 %734
        %v736 = vlaneseq
        %v737 = vshrl.u32 %v736, 7
        %v738 = vsub.s32 0, %v737
        %v739 = vrot.slane %v647, %v738
        %v740 = vmul.f32 %v654, %v739
        %v741 = vmul.f32 %v658, %v739
        %v742 = vmul.f32 %v665, %v739
        %v743 = vmul.f32 %v669, %v739
        %v744 = vmul.f32 %v676, %v739
        %v745 = vmul.f32 %v680, %v739
        %v746 = vmul.f32 %v687, %v739
        %v747 = vmul.f32 %v691, %v739
        %v748 = vmul.f32 %v698, %v739
        %v749 = vmul.f32 %v702, %v739
        %v750 = vmul.f32 %v709, %v739
        %v751 = vmul.f32 %v713, %v739
        %v752 = vmul.f32 %v720, %v739
        %v753 = vmul.f32 %v724, %v739
        %v754 = vmul.f32 %v731, %v739
        %v755 = vmul.f32 %v735, %v739
        %v756 = vadd.f32 %v740, 0.0
        %v757 = vadd.f32 %v741, 0.0
        %v758 = vadd.f32 %v742, 0.0
        %v759 = vadd.f32 %v743, 0.0
        %v760 = vadd.f32 %v744, 0.0
        %v761 = vadd.f32 %v745, 0.0
        %v762 = vadd.f32 %v746, 0.0
        %v763 = vadd.f32 %v747, 0.0
        %v764 = vadd.f32 %v748, 0.0
        %v765 = vadd.f32 %v749, 0.0
        %v766 = vadd.f32 %v750, 0.0
        %v767 = vadd.f32 %v751, 0.0
        %v768 = vadd.f32 %v752, 0.0
        %v769 = vadd.f32 %v753, 0.0
        %v770 = vadd.f32 %v754, 0.0
        %v771 = vadd.f32 %v755, 0.0
        %s773 = sor.u32 256, 1
        %774 = vbcast.lane.b32.xlu0 %v651, %s773
        %v775 = vpop.permute.xlu0 %774
        %s777 = sor.u32 256, 9
        %778 = vbcast.lane.b32.xlu0 %v651, %s777
        %v779 = vpop.permute.xlu0 %778
        %s781 = sor.u32 256, 1
        %782 = vbcast.lane.b32.xlu0 %v662, %s781
        %v783 = vpop.permute.xlu0 %782
        %s785 = sor.u32 256, 9
        %786 = vbcast.lane.b32.xlu0 %v662, %s785
        %v787 = vpop.permute.xlu0 %786
        %s789 = sor.u32 256, 1
        %790 = vbcast.lane.b32.xlu0 %v673, %s789
        %v791 = vpop.permute.xlu0 %790
        %s793 = sor.u32 256, 9
        %794 = vbcast.lane.b32.xlu0 %v673, %s793
        %v795 = vpop.permute.xlu0 %794
        %s797 = sor.u32 256, 1
        %798 = vbcast.lane.b32.xlu0 %v684, %s797
        %v799 = vpop.permute.xlu0 %798
        %s801 = sor.u32 256, 9
        %802 = vbcast.lane.b32.xlu0 %v684, %s801
        %v803 = vpop.permute.xlu0 %802
        %s805 = sor.u32 256, 1
        %806 = vbcast.lane.b32.xlu0 %v695, %s805
        %v807 = vpop.permute.xlu0 %806
        %s809 = sor.u32 256, 9
        %810 = vbcast.lane.b32.xlu0 %v695, %s809
        %v811 = vpop.permute.xlu0 %810
        %s813 = sor.u32 256, 1
        %814 = vbcast.lane.b32.xlu0 %v706, %s813
        %v815 = vpop.permute.xlu0 %814
        %s817 = sor.u32 256, 9
        %818 = vbcast.lane.b32.xlu0 %v706, %s817
        %v819 = vpop.permute.xlu0 %818
        %s821 = sor.u32 256, 1
        %822 = vbcast.lane.b32.xlu0 %v717, %s821
        %v823 = vpop.permute.xlu0 %822
        %s825 = sor.u32 256, 9
        %826 = vbcast.lane.b32.xlu0 %v717, %s825
        %v827 = vpop.permute.xlu0 %826
        %s829 = sor.u32 256, 1
        %830 = vbcast.lane.b32.xlu0 %v728, %s829
        %v831 = vpop.permute.xlu0 %830
        %s833 = sor.u32 256, 9
        %834 = vbcast.lane.b32.xlu0 %v728, %s833
        %v835 = vpop.permute.xlu0 %834
        %v836 = vlaneseq
        %v837 = vshrl.u32 %v836, 7
        %v838 = vsub.s32 1, %v837
        %v839 = vrot.slane %v647, %v838
        %v840 = vmul.f32 %v775, %v839
        %v841 = vmul.f32 %v779, %v839
        %v842 = vmul.f32 %v783, %v839
        %v843 = vmul.f32 %v787, %v839
        %v844 = vmul.f32 %v791, %v839
        %v845 = vmul.f32 %v795, %v839
        %v846 = vmul.f32 %v799, %v839
        %v847 = vmul.f32 %v803, %v839
        %v848 = vmul.f32 %v807, %v839
        %v849 = vmul.f32 %v811, %v839
        %v850 = vmul.f32 %v815, %v839
        %v851 = vmul.f32 %v819, %v839
        %v852 = vmul.f32 %v823, %v839
        %v853 = vmul.f32 %v827, %v839
        %v854 = vmul.f32 %v831, %v839
        %v855 = vmul.f32 %v835, %v839
        %v856 = vadd.f32 %v756, %v840
        %v857 = vadd.f32 %v757, %v841
        %v858 = vadd.f32 %v758, %v842
        %v859 = vadd.f32 %v759, %v843
        %v860 = vadd.f32 %v760, %v844
        %v861 = vadd.f32 %v761, %v845
        %v862 = vadd.f32 %v762, %v846
        %v863 = vadd.f32 %v763, %v847
        %v864 = vadd.f32 %v764, %v848
        %v865 = vadd.f32 %v765, %v849
        %v866 = vadd.f32 %v766, %v850
        %v867 = vadd.f32 %v767, %v851
        %v868 = vadd.f32 %v768, %v852
        %v869 = vadd.f32 %v769, %v853
        %v870 = vadd.f32 %v770, %v854
        %v871 = vadd.f32 %v771, %v855
        %s873 = sor.u32 256, 2
        %874 = vbcast.lane.b32.xlu0 %v651, %s873
        %v875 = vpop.permute.xlu0 %874
        %s877 = sor.u32 256, 10
        %878 = vbcast.lane.b32.xlu0 %v651, %s877
        %v879 = vpop.permute.xlu0 %878
        %s881 = sor.u32 256, 2
        %882 = vbcast.lane.b32.xlu0 %v662, %s881
        %v883 = vpop.permute.xlu0 %882
        %s885 = sor.u32 256, 10
        %886 = vbcast.lane.b32.xlu0 %v662, %s885
        %v887 = vpop.permute.xlu0 %886
        %s889 = sor.u32 256, 2
        %890 = vbcast.lane.b32.xlu0 %v673, %s889
        %v891 = vpop.permute.xlu0 %890
        %s893 = sor.u32 256, 10
        %894 = vbcast.lane.b32.xlu0 %v673, %s893
        %v895 = vpop.permute.xlu0 %894
        %s897 = sor.u32 256, 2
        %898 = vbcast.lane.b32.xlu0 %v684, %s897
        %v899 = vpop.permute.xlu0 %898
        %s901 = sor.u32 256, 10
        %902 = vbcast.lane.b32.xlu0 %v684, %s901
        %v903 = vpop.permute.xlu0 %902
        %s905 = sor.u32 256, 2
        %906 = vbcast.lane.b32.xlu0 %v695, %s905
        %v907 = vpop.permute.xlu0 %906
        %s909 = sor.u32 256, 10
        %910 = vbcast.lane.b32.xlu0 %v695, %s909
        %v911 = vpop.permute.xlu0 %910
        %s913 = sor.u32 256, 2
        %914 = vbcast.lane.b32.xlu0 %v706, %s913
        %v915 = vpop.permute.xlu0 %914
        %s917 = sor.u32 256, 10
        %918 = vbcast.lane.b32.xlu0 %v706, %s917
        %v919 = vpop.permute.xlu0 %918
        %s921 = sor.u32 256, 2
        %922 = vbcast.lane.b32.xlu0 %v717, %s921
        %v923 = vpop.permute.xlu0 %922
        %s925 = sor.u32 256, 10
        %926 = vbcast.lane.b32.xlu0 %v717, %s925
        %v927 = vpop.permute.xlu0 %926
        %s929 = sor.u32 256, 2
        %930 = vbcast.lane.b32.xlu0 %v728, %s929
        %v931 = vpop.permute.xlu0 %930
        %s933 = sor.u32 256, 10
        %934 = vbcast.lane.b32.xlu0 %v728, %s933
        %v935 = vpop.permute.xlu0 %934
        %v936 = vlaneseq
        %v937 = vshrl.u32 %v936, 7
        %v938 = vsub.s32 2, %v937
        %v939 = vrot.slane %v647, %v938
        %v940 = vmul.f32 %v875, %v939
        %v941 = vmul.f32 %v879, %v939
        %v942 = vmul.f32 %v883, %v939
        %v943 = vmul.f32 %v887, %v939
        %v944 = vmul.f32 %v891, %v939
        %v945 = vmul.f32 %v895, %v939
        %v946 = vmul.f32 %v899, %v939
        %v947 = vmul.f32 %v903, %v939
        %v948 = vmul.f32 %v907, %v939
        %v949 = vmul.f32 %v911, %v939
        %v950 = vmul.f32 %v915, %v939
        %v951 = vmul.f32 %v919, %v939
        %v952 = vmul.f32 %v923, %v939
        %v953 = vmul.f32 %v927, %v939
        %v954 = vmul.f32 %v931, %v939
        %v955 = vmul.f32 %v935, %v939
        %v956 = vadd.f32 %v856, %v940
        %v957 = vadd.f32 %v857, %v941
        %v958 = vadd.f32 %v858, %v942
        %v959 = vadd.f32 %v859, %v943
        %v960 = vadd.f32 %v860, %v944
        %v961 = vadd.f32 %v861, %v945
        %v962 = vadd.f32 %v862, %v946
        %v963 = vadd.f32 %v863, %v947
        %v964 = vadd.f32 %v864, %v948
        %v965 = vadd.f32 %v865, %v949
        %v966 = vadd.f32 %v866, %v950
        %v967 = vadd.f32 %v867, %v951
        %v968 = vadd.f32 %v868, %v952
        %v969 = vadd.f32 %v869, %v953
        %v970 = vadd.f32 %v870, %v954
        %v971 = vadd.f32 %v871, %v955
        %s973 = sor.u32 256, 3
        %974 = vbcast.lane.b32.xlu0 %v651, %s973
        %v975 = vpop.permute.xlu0 %974
        %s977 = sor.u32 256, 11
        %978 = vbcast.lane.b32.xlu0 %v651, %s977
        %v979 = vpop.permute.xlu0 %978
        %s981 = sor.u32 256, 3
        %982 = vbcast.lane.b32.xlu0 %v662, %s981
        %v983 = vpop.permute.xlu0 %982
        %s985 = sor.u32 256, 11
        %986 = vbcast.lane.b32.xlu0 %v662, %s985
        %v987 = vpop.permute.xlu0 %986
        %s989 = sor.u32 256, 3
        %990 = vbcast.lane.b32.xlu0 %v673, %s989
        %v991 = vpop.permute.xlu0 %990
        %s993 = sor.u32 256, 11
        %994 = vbcast.lane.b32.xlu0 %v673, %s993
        %v995 = vpop.permute.xlu0 %994
        %s997 = sor.u32 256, 3
        %998 = vbcast.lane.b32.xlu0 %v684, %s997
        %v999 = vpop.permute.xlu0 %998
        %s1001 = sor.u32 256, 11
        %1002 = vbcast.lane.b32.xlu0 %v684, %s1001
        %v1003 = vpop.permute.xlu0 %1002
        %s1005 = sor.u32 256, 3
        %1006 = vbcast.lane.b32.xlu0 %v695, %s1005
        %v1007 = vpop.permute.xlu0 %1006
        %s1009 = sor.u32 256, 11
        %1010 = vbcast.lane.b32.xlu0 %v695, %s1009
        %v1011 = vpop.permute.xlu0 %1010
        %s1013 = sor.u32 256, 3
        %1014 = vbcast.lane.b32.xlu0 %v706, %s1013
        %v1015 = vpop.permute.xlu0 %1014
        %s1017 = sor.u32 256, 11
        %1018 = vbcast.lane.b32.xlu0 %v706, %s1017
        %v1019 = vpop.permute.xlu0 %1018
        %s1021 = sor.u32 256, 3
        %1022 = vbcast.lane.b32.xlu0 %v717, %s1021
        %v1023 = vpop.permute.xlu0 %1022
        %s1025 = sor.u32 256, 11
        %1026 = vbcast.lane.b32.xlu0 %v717, %s1025
        %v1027 = vpop.permute.xlu0 %1026
        %s1029 = sor.u32 256, 3
        %1030 = vbcast.lane.b32.xlu0 %v728, %s1029
        %v1031 = vpop.permute.xlu0 %1030
        %s1033 = sor.u32 256, 11
        %1034 = vbcast.lane.b32.xlu0 %v728, %s1033
        %v1035 = vpop.permute.xlu0 %1034
        %v1036 = vlaneseq
        %v1037 = vshrl.u32 %v1036, 7
        %v1038 = vsub.s32 3, %v1037
        %v1039 = vrot.slane %v647, %v1038
        %v1040 = vmul.f32 %v975, %v1039
        %v1041 = vmul.f32 %v979, %v1039
        %v1042 = vmul.f32 %v983, %v1039
        %v1043 = vmul.f32 %v987, %v1039
        %v1044 = vmul.f32 %v991, %v1039
        %v1045 = vmul.f32 %v995, %v1039
        %v1046 = vmul.f32 %v999, %v1039
        %v1047 = vmul.f32 %v1003, %v1039
        %v1048 = vmul.f32 %v1007, %v1039
        %v1049 = vmul.f32 %v1011, %v1039
        %v1050 = vmul.f32 %v1015, %v1039
        %v1051 = vmul.f32 %v1019, %v1039
        %v1052 = vmul.f32 %v1023, %v1039
        %v1053 = vmul.f32 %v1027, %v1039
        %v1054 = vmul.f32 %v1031, %v1039
        %v1055 = vmul.f32 %v1035, %v1039
        %v1056 = vadd.f32 %v956, %v1040
        %v1057 = vadd.f32 %v957, %v1041
        %v1058 = vadd.f32 %v958, %v1042
        %v1059 = vadd.f32 %v959, %v1043
        %v1060 = vadd.f32 %v960, %v1044
        %v1061 = vadd.f32 %v961, %v1045
        %v1062 = vadd.f32 %v962, %v1046
        %v1063 = vadd.f32 %v963, %v1047
        %v1064 = vadd.f32 %v964, %v1048
        %v1065 = vadd.f32 %v965, %v1049
        %v1066 = vadd.f32 %v966, %v1050
        %v1067 = vadd.f32 %v967, %v1051
        %v1068 = vadd.f32 %v968, %v1052
        %v1069 = vadd.f32 %v969, %v1053
        %v1070 = vadd.f32 %v970, %v1054
        %v1071 = vadd.f32 %v971, %v1055
        %s1073 = sor.u32 256, 4
        %1074 = vbcast.lane.b32.xlu0 %v651, %s1073
        %v1075 = vpop.permute.xlu0 %1074
        %s1077 = sor.u32 256, 12
        %1078 = vbcast.lane.b32.xlu0 %v651, %s1077
        %v1079 = vpop.permute.xlu0 %1078
        %s1081 = sor.u32 256, 4
        %1082 = vbcast.lane.b32.xlu0 %v662, %s1081
        %v1083 = vpop.permute.xlu0 %1082
        %s1085 = sor.u32 256, 12
        %1086 = vbcast.lane.b32.xlu0 %v662, %s1085
        %v1087 = vpop.permute.xlu0 %1086
        %s1089 = sor.u32 256, 4
        %1090 = vbcast.lane.b32.xlu0 %v673, %s1089
        %v1091 = vpop.permute.xlu0 %1090
        %s1093 = sor.u32 256, 12
        %1094 = vbcast.lane.b32.xlu0 %v673, %s1093
        %v1095 = vpop.permute.xlu0 %1094
        %s1097 = sor.u32 256, 4
        %1098 = vbcast.lane.b32.xlu0 %v684, %s1097
        %v1099 = vpop.permute.xlu0 %1098
        %s1101 = sor.u32 256, 12
        %1102 = vbcast.lane.b32.xlu0 %v684, %s1101
        %v1103 = vpop.permute.xlu0 %1102
        %s1105 = sor.u32 256, 4
        %1106 = vbcast.lane.b32.xlu0 %v695, %s1105
        %v1107 = vpop.permute.xlu0 %1106
        %s1109 = sor.u32 256, 12
        %1110 = vbcast.lane.b32.xlu0 %v695, %s1109
        %v1111 = vpop.permute.xlu0 %1110
        %s1113 = sor.u32 256, 4
        %1114 = vbcast.lane.b32.xlu0 %v706, %s1113
        %v1115 = vpop.permute.xlu0 %1114
        %s1117 = sor.u32 256, 12
        %1118 = vbcast.lane.b32.xlu0 %v706, %s1117
        %v1119 = vpop.permute.xlu0 %1118
        %s1121 = sor.u32 256, 4
        %1122 = vbcast.lane.b32.xlu0 %v717, %s1121
        %v1123 = vpop.permute.xlu0 %1122
        %s1125 = sor.u32 256, 12
        %1126 = vbcast.lane.b32.xlu0 %v717, %s1125
        %v1127 = vpop.permute.xlu0 %1126
        %s1129 = sor.u32 256, 4
        %1130 = vbcast.lane.b32.xlu0 %v728, %s1129
        %v1131 = vpop.permute.xlu0 %1130
        %s1133 = sor.u32 256, 12
        %1134 = vbcast.lane.b32.xlu0 %v728, %s1133
        %v1135 = vpop.permute.xlu0 %1134
        %v1136 = vlaneseq
        %v1137 = vshrl.u32 %v1136, 7
        %v1138 = vsub.s32 4, %v1137
        %v1139 = vrot.slane %v647, %v1138
        %v1140 = vmul.f32 %v1075, %v1139
        %v1141 = vmul.f32 %v1079, %v1139
        %v1142 = vmul.f32 %v1083, %v1139
        %v1143 = vmul.f32 %v1087, %v1139
        %v1144 = vmul.f32 %v1091, %v1139
        %v1145 = vmul.f32 %v1095, %v1139
        %v1146 = vmul.f32 %v1099, %v1139
        %v1147 = vmul.f32 %v1103, %v1139
        %v1148 = vmul.f32 %v1107, %v1139
        %v1149 = vmul.f32 %v1111, %v1139
        %v1150 = vmul.f32 %v1115, %v1139
        %v1151 = vmul.f32 %v1119, %v1139
        %v1152 = vmul.f32 %v1123, %v1139
        %v1153 = vmul.f32 %v1127, %v1139
        %v1154 = vmul.f32 %v1131, %v1139
        %v1155 = vmul.f32 %v1135, %v1139
        %v1156 = vadd.f32 %v1056, %v1140
        %v1157 = vadd.f32 %v1057, %v1141
        %v1158 = vadd.f32 %v1058, %v1142
        %v1159 = vadd.f32 %v1059, %v1143
        %v1160 = vadd.f32 %v1060, %v1144
        %v1161 = vadd.f32 %v1061, %v1145
        %v1162 = vadd.f32 %v1062, %v1146
        %v1163 = vadd.f32 %v1063, %v1147
        %v1164 = vadd.f32 %v1064, %v1148
        %v1165 = vadd.f32 %v1065, %v1149
        %v1166 = vadd.f32 %v1066, %v1150
        %v1167 = vadd.f32 %v1067, %v1151
        %v1168 = vadd.f32 %v1068, %v1152
        %v1169 = vadd.f32 %v1069, %v1153
        %v1170 = vadd.f32 %v1070, %v1154
        %v1171 = vadd.f32 %v1071, %v1155
        %s1173 = sor.u32 256, 5
        %1174 = vbcast.lane.b32.xlu0 %v651, %s1173
        %v1175 = vpop.permute.xlu0 %1174
        %s1177 = sor.u32 256, 13
        %1178 = vbcast.lane.b32.xlu0 %v651, %s1177
        %v1179 = vpop.permute.xlu0 %1178
        %s1181 = sor.u32 256, 5
        %1182 = vbcast.lane.b32.xlu0 %v662, %s1181
        %v1183 = vpop.permute.xlu0 %1182
        %s1185 = sor.u32 256, 13
        %1186 = vbcast.lane.b32.xlu0 %v662, %s1185
        %v1187 = vpop.permute.xlu0 %1186
        %s1189 = sor.u32 256, 5
        %1190 = vbcast.lane.b32.xlu0 %v673, %s1189
        %v1191 = vpop.permute.xlu0 %1190
        %s1193 = sor.u32 256, 13
        %1194 = vbcast.lane.b32.xlu0 %v673, %s1193
        %v1195 = vpop.permute.xlu0 %1194
        %s1197 = sor.u32 256, 5
        %1198 = vbcast.lane.b32.xlu0 %v684, %s1197
        %v1199 = vpop.permute.xlu0 %1198
        %s1201 = sor.u32 256, 13
        %1202 = vbcast.lane.b32.xlu0 %v684, %s1201
        %v1203 = vpop.permute.xlu0 %1202
        %s1205 = sor.u32 256, 5
        %1206 = vbcast.lane.b32.xlu0 %v695, %s1205
        %v1207 = vpop.permute.xlu0 %1206
        %s1209 = sor.u32 256, 13
        %1210 = vbcast.lane.b32.xlu0 %v695, %s1209
        %v1211 = vpop.permute.xlu0 %1210
        %s1213 = sor.u32 256, 5
        %1214 = vbcast.lane.b32.xlu0 %v706, %s1213
        %v1215 = vpop.permute.xlu0 %1214
        %s1217 = sor.u32 256, 13
        %1218 = vbcast.lane.b32.xlu0 %v706, %s1217
        %v1219 = vpop.permute.xlu0 %1218
        %s1221 = sor.u32 256, 5
        %1222 = vbcast.lane.b32.xlu0 %v717, %s1221
        %v1223 = vpop.permute.xlu0 %1222
        %s1225 = sor.u32 256, 13
        %1226 = vbcast.lane.b32.xlu0 %v717, %s1225
        %v1227 = vpop.permute.xlu0 %1226
        %s1229 = sor.u32 256, 5
        %1230 = vbcast.lane.b32.xlu0 %v728, %s1229
        %v1231 = vpop.permute.xlu0 %1230
        %s1233 = sor.u32 256, 13
        %1234 = vbcast.lane.b32.xlu0 %v728, %s1233
        %v1235 = vpop.permute.xlu0 %1234
        %v1236 = vlaneseq
        %v1237 = vshrl.u32 %v1236, 7
        %v1238 = vsub.s32 5, %v1237
        %v1239 = vrot.slane %v647, %v1238
        %v1240 = vmul.f32 %v1175, %v1239
        %v1241 = vmul.f32 %v1179, %v1239
        %v1242 = vmul.f32 %v1183, %v1239
        %v1243 = vmul.f32 %v1187, %v1239
        %v1244 = vmul.f32 %v1191, %v1239
        %v1245 = vmul.f32 %v1195, %v1239
        %v1246 = vmul.f32 %v1199, %v1239
        %v1247 = vmul.f32 %v1203, %v1239
        %v1248 = vmul.f32 %v1207, %v1239
        %v1249 = vmul.f32 %v1211, %v1239
        %v1250 = vmul.f32 %v1215, %v1239
        %v1251 = vmul.f32 %v1219, %v1239
        %v1252 = vmul.f32 %v1223, %v1239
        %v1253 = vmul.f32 %v1227, %v1239
        %v1254 = vmul.f32 %v1231, %v1239
        %v1255 = vmul.f32 %v1235, %v1239
        %v1256 = vadd.f32 %v1156, %v1240
        %v1257 = vadd.f32 %v1157, %v1241
        %v1258 = vadd.f32 %v1158, %v1242
        %v1259 = vadd.f32 %v1159, %v1243
        %v1260 = vadd.f32 %v1160, %v1244
        %v1261 = vadd.f32 %v1161, %v1245
        %v1262 = vadd.f32 %v1162, %v1246
        %v1263 = vadd.f32 %v1163, %v1247
        %v1264 = vadd.f32 %v1164, %v1248
        %v1265 = vadd.f32 %v1165, %v1249
        %v1266 = vadd.f32 %v1166, %v1250
        %v1267 = vadd.f32 %v1167, %v1251
        %v1268 = vadd.f32 %v1168, %v1252
        %v1269 = vadd.f32 %v1169, %v1253
        %v1270 = vadd.f32 %v1170, %v1254
        %v1271 = vadd.f32 %v1171, %v1255
        %s1273 = sor.u32 256, 6
        %1274 = vbcast.lane.b32.xlu0 %v651, %s1273
        %v1275 = vpop.permute.xlu0 %1274
        %s1277 = sor.u32 256, 14
        %1278 = vbcast.lane.b32.xlu0 %v651, %s1277
        %v1279 = vpop.permute.xlu0 %1278
        %s1281 = sor.u32 256, 6
        %1282 = vbcast.lane.b32.xlu0 %v662, %s1281
        %v1283 = vpop.permute.xlu0 %1282
        %s1285 = sor.u32 256, 14
        %1286 = vbcast.lane.b32.xlu0 %v662, %s1285
        %v1287 = vpop.permute.xlu0 %1286
        %s1289 = sor.u32 256, 6
        %1290 = vbcast.lane.b32.xlu0 %v673, %s1289
        %v1291 = vpop.permute.xlu0 %1290
        %s1293 = sor.u32 256, 14
        %1294 = vbcast.lane.b32.xlu0 %v673, %s1293
        %v1295 = vpop.permute.xlu0 %1294
        %s1297 = sor.u32 256, 6
        %1298 = vbcast.lane.b32.xlu0 %v684, %s1297
        %v1299 = vpop.permute.xlu0 %1298
        %s1301 = sor.u32 256, 14
        %1302 = vbcast.lane.b32.xlu0 %v684, %s1301
        %v1303 = vpop.permute.xlu0 %1302
        %s1305 = sor.u32 256, 6
        %1306 = vbcast.lane.b32.xlu0 %v695, %s1305
        %v1307 = vpop.permute.xlu0 %1306
        %s1309 = sor.u32 256, 14
        %1310 = vbcast.lane.b32.xlu0 %v695, %s1309
        %v1311 = vpop.permute.xlu0 %1310
        %s1313 = sor.u32 256, 6
        %1314 = vbcast.lane.b32.xlu0 %v706, %s1313
        %v1315 = vpop.permute.xlu0 %1314
        %s1317 = sor.u32 256, 14
        %1318 = vbcast.lane.b32.xlu0 %v706, %s1317
        %v1319 = vpop.permute.xlu0 %1318
        %s1321 = sor.u32 256, 6
        %1322 = vbcast.lane.b32.xlu0 %v717, %s1321
        %v1323 = vpop.permute.xlu0 %1322
        %s1325 = sor.u32 256, 14
        %1326 = vbcast.lane.b32.xlu0 %v717, %s1325
        %v1327 = vpop.permute.xlu0 %1326
        %s1329 = sor.u32 256, 6
        %1330 = vbcast.lane.b32.xlu0 %v728, %s1329
        %v1331 = vpop.permute.xlu0 %1330
        %s1333 = sor.u32 256, 14
        %1334 = vbcast.lane.b32.xlu0 %v728, %s1333
        %v1335 = vpop.permute.xlu0 %1334
        %v1336 = vlaneseq
        %v1337 = vshrl.u32 %v1336, 7
        %v1338 = vsub.s32 6, %v1337
        %v1339 = vrot.slane %v647, %v1338
        %v1340 = vmul.f32 %v1275, %v1339
        %v1341 = vmul.f32 %v1279, %v1339
        %v1342 = vmul.f32 %v1283, %v1339
        %v1343 = vmul.f32 %v1287, %v1339
        %v1344 = vmul.f32 %v1291, %v1339
        %v1345 = vmul.f32 %v1295, %v1339
        %v1346 = vmul.f32 %v1299, %v1339
        %v1347 = vmul.f32 %v1303, %v1339
        %v1348 = vmul.f32 %v1307, %v1339
        %v1349 = vmul.f32 %v1311, %v1339
        %v1350 = vmul.f32 %v1315, %v1339
        %v1351 = vmul.f32 %v1319, %v1339
        %v1352 = vmul.f32 %v1323, %v1339
        %v1353 = vmul.f32 %v1327, %v1339
        %v1354 = vmul.f32 %v1331, %v1339
        %v1355 = vmul.f32 %v1335, %v1339
        %v1356 = vadd.f32 %v1256, %v1340
        %v1357 = vadd.f32 %v1257, %v1341
        %v1358 = vadd.f32 %v1258, %v1342
        %v1359 = vadd.f32 %v1259, %v1343
        %v1360 = vadd.f32 %v1260, %v1344
        %v1361 = vadd.f32 %v1261, %v1345
        %v1362 = vadd.f32 %v1262, %v1346
        %v1363 = vadd.f32 %v1263, %v1347
        %v1364 = vadd.f32 %v1264, %v1348
        %v1365 = vadd.f32 %v1265, %v1349
        %v1366 = vadd.f32 %v1266, %v1350
        %v1367 = vadd.f32 %v1267, %v1351
        %v1368 = vadd.f32 %v1268, %v1352
        %v1369 = vadd.f32 %v1269, %v1353
        %v1370 = vadd.f32 %v1270, %v1354
        %v1371 = vadd.f32 %v1271, %v1355
        %v1372 = vld [vmem:[%s2] sm:$0x1]
        %v1374 = vlaneseq
        %v1375 = vshrl.u32 %v1374, 7
        %v1376 = vsub.s32 0, %v1375
        %v1377 = vrot.slane %v1372, %v1376
        %v1379 = vadd.f32 %v1356, %v1377
        %v1380 = vadd.f32 %v1357, %v1377
        %v1381 = vadd.f32 %v1358, %v1377
        %v1382 = vadd.f32 %v1359, %v1377
        %v1383 = vadd.f32 %v1360, %v1377
        %v1384 = vadd.f32 %v1361, %v1377
        %v1385 = vadd.f32 %v1362, %v1377
        %v1386 = vadd.f32 %v1363, %v1377
        %v1387 = vadd.f32 %v1364, %v1377
        %v1388 = vadd.f32 %v1365, %v1377
        %v1389 = vadd.f32 %v1366, %v1377
        %v1390 = vadd.f32 %v1367, %v1377
        %v1391 = vadd.f32 %v1368, %v1377
        %v1392 = vadd.f32 %v1369, %v1377
        %v1393 = vadd.f32 %v1370, %v1377
        %v1394 = vadd.f32 %v1371, %v1377
        %v1395 = vmax.f32 %v1379, 0.0
        %v1396 = vmax.f32 %v1380, 0.0
        %v1397 = vmax.f32 %v1381, 0.0
        %v1398 = vmax.f32 %v1382, 0.0
        %v1399 = vmax.f32 %v1383, 0.0
        %v1400 = vmax.f32 %v1384, 0.0
        %v1401 = vmax.f32 %v1385, 0.0
        %v1402 = vmax.f32 %v1386, 0.0
        %v1403 = vmax.f32 %v1387, 0.0
        %v1404 = vmax.f32 %v1388, 0.0
        %v1405 = vmax.f32 %v1389, 0.0
        %v1406 = vmax.f32 %v1390, 0.0
        %v1407 = vmax.f32 %v1391, 0.0
        %v1408 = vmax.f32 %v1392, 0.0
        %v1409 = vmax.f32 %v1393, 0.0
        %v1410 = vmax.f32 %v1394, 0.0
        %v1411 = vld [vmem:[%s3] sm:$0x1]
        %v1413 = vlaneseq
        %v1414 = vshrl.u32 %v1413, 7
        %v1415 = vsub.s32 0, %v1414
        %v1416 = vrot.slane %v1411, %v1415
        %v1418 = vmul.f32 %v1395, %v1416
        %v1419 = vmul.f32 %v1396, %v1416
        %v1420 = vmul.f32 %v1397, %v1416
        %v1421 = vmul.f32 %v1398, %v1416
        %v1422 = vmul.f32 %v1399, %v1416
        %v1423 = vmul.f32 %v1400, %v1416
        %v1424 = vmul.f32 %v1401, %v1416
        %v1425 = vmul.f32 %v1402, %v1416
        %v1426 = vmul.f32 %v1403, %v1416
        %v1427 = vmul.f32 %v1404, %v1416
        %v1428 = vmul.f32 %v1405, %v1416
        %v1429 = vmul.f32 %v1406, %v1416
        %v1430 = vmul.f32 %v1407, %v1416
        %v1431 = vmul.f32 %v1408, %v1416
        %v1432 = vmul.f32 %v1409, %v1416
        %v1433 = vmul.f32 %v1410, %v1416
        %v1434 = vld [vmem:[%s4] sm:$0x1]
        %v1436 = vlaneseq
        %v1437 = vshrl.u32 %v1436, 7
        %v1438 = vsub.s32 0, %v1437
        %v1439 = vrot.slane %v1434, %v1438
        %v1441 = vadd.f32 %v1418, %v1439
        %v1442 = vadd.f32 %v1419, %v1439
        %v1443 = vadd.f32 %v1420, %v1439
        %v1444 = vadd.f32 %v1421, %v1439
        %v1445 = vadd.f32 %v1422, %v1439
        %v1446 = vadd.f32 %v1423, %v1439
        %v1447 = vadd.f32 %v1424, %v1439
        %v1448 = vadd.f32 %v1425, %v1439
        %v1449 = vadd.f32 %v1426, %v1439
        %v1450 = vadd.f32 %v1427, %v1439
        %v1451 = vadd.f32 %v1428, %v1439
        %v1452 = vadd.f32 %v1429, %v1439
        %v1453 = vadd.f32 %v1430, %v1439
        %v1454 = vadd.f32 %v1431, %v1439
        %v1455 = vadd.f32 %v1432, %v1439
        %v1456 = vadd.f32 %v1433, %v1439
        %v1457 = vpack.c.bf16 %v1442, %v1441
        %v1458 = vpack.c.bf16 %v1443, 0.0
        %v1459 = vpack.c.bf16 0.0, %v1444
        %v1460 = vpack.c.bf16 %v1446, %v1445
        %v1461 = vpack.c.bf16 %v1447, 0.0
        %v1462 = vpack.c.bf16 0.0, %v1448
        %v1463 = vpack.c.bf16 %v1450, %v1449
        %v1464 = vpack.c.bf16 %v1451, 0.0
        %v1465 = vpack.c.bf16 0.0, %v1452
        %v1466 = vpack.c.bf16 %v1454, %v1453
        %v1467 = vpack.c.bf16 %v1455, 0.0
        %v1468 = vpack.c.bf16 0.0, %v1456
        %1469 = vst [vmem:[#allocation2 + $0x8] sm:$0xff] %v1457
        %1470 = vst [vmem:[#allocation2 + $0x10] sm:$0xff] %v1458
        %1471 = vst [vmem:[#allocation2 + $0x18] sm:$0xff] %v1459
        %1472 = vst [vmem:[#allocation2 + $0x20] sm:$0xff] %v1460
        %1473 = vst [vmem:[#allocation2 + $0x28] sm:$0xff] %v1461
        %1474 = vst [vmem:[#allocation2 + $0x30] sm:$0xff] %v1462
        %1475 = vst [vmem:[#allocation2 + $0x38] sm:$0xff] %v1463
        %1476 = vst [vmem:[#allocation2 + $0x40] sm:$0xff] %v1464
        %1477 = vst [vmem:[#allocation2 + $0x48] sm:$0xff] %v1465
        %1478 = vst [vmem:[#allocation2 + $0x50] sm:$0xff] %v1466
        %1479 = vst [vmem:[#allocation2 + $0x58] sm:$0xff] %v1467
        %1480 = vst [vmem:[#allocation2 + $0x60] sm:$0xff] %v1468
        %v1481 = vld [vmem:[#allocation2] sm:$0xc0]
        %v1482 = vld [vmem:[#allocation2 + $0x8] sm:$0xff]
        %v1483 = vld [vmem:[#allocation2 + $0x10] sm:$0xff]
        %v1484 = vld [vmem:[#allocation2 + $0x18] sm:$0xff]
        %v1485 = vld [vmem:[#allocation2 + $0x20] sm:$0xff]
        %v1486 = vld [vmem:[#allocation2 + $0x28] sm:$0xff]
        %v1487 = vld [vmem:[#allocation2 + $0x30] sm:$0xff]
        %v1488 = vld [vmem:[#allocation2 + $0x38] sm:$0xff]
        %v1489 = vld [vmem:[#allocation2 + $0x40] sm:$0xff]
        %v1490 = vld [vmem:[#allocation2 + $0x48] sm:$0xff]
        %v1491 = vld [vmem:[#allocation2 + $0x50] sm:$0xff]
        %v1492 = vld [vmem:[#allocation2 + $0x58] sm:$0xff]
        %v1493 = vld [vmem:[#allocation2 + $0x60] sm:$0x7f]
        %v1494 = vld [vmem:[#allocation8] sm:$0xf]
        %v1495 = vld [vmem:[#allocation8 + $0x4] sm:$0xf]
        %v1496 = vld [vmem:[#allocation8 + $0x8] sm:$0xf]
        %v1497 = vld [vmem:[#allocation8 + $0xc] sm:$0xf]
        %v1498 = vld [vmem:[#allocation8 + $0x10] sm:$0xf]
        %v1499 = vld [vmem:[#allocation8 + $0x14] sm:$0xf]
        %v1500 = vld [vmem:[#allocation8 + $0x18] sm:$0xf]
        %v1501 = vld [vmem:[#allocation8 + $0x1c] sm:$0xf]
        %v1502 = vld [vmem:[#allocation8 + $0x20] sm:$0xf]
        %v1503 = vld [vmem:[#allocation8 + $0x24] sm:$0xf]
        %v1504 = vld [vmem:[#allocation8 + $0x28] sm:$0xf]
        %v1505 = vld [vmem:[#allocation8 + $0x2c] sm:$0xf]
        %v1506 = vld [vmem:[#allocation8 + $0x30] sm:$0xf]
        %v1507 = vld [vmem:[#allocation8 + $0x34] sm:$0xf]
        %v1508 = vld [vmem:[#allocation8 + $0x38] sm:$0xf]
        %v1509 = vld [vmem:[#allocation8 + $0x3c] sm:$0xf]
        %v1510 = vld [vmem:[#allocation2] sm:$0x80]
        %s1511 = scalar_lea.vmem [#allocation8], 64
        %v1512 = vld [vmem:[%s1511] sm:$0xf]
        %v1513 = vld [vmem:[%s1511 + $0x4] sm:$0xf]
        %v1514 = vld [vmem:[%s1511 + $0x8] sm:$0xf]
        %v1515 = vld [vmem:[%s1511 + $0xc] sm:$0xf]
        %v1516 = vld [vmem:[%s1511 + $0x10] sm:$0xf]
        %v1517 = vld [vmem:[%s1511 + $0x14] sm:$0xf]
        %v1518 = vld [vmem:[%s1511 + $0x18] sm:$0xf]
        %v1519 = vld [vmem:[%s1511 + $0x1c] sm:$0xf]
        %v1520 = vld [vmem:[%s1511 + $0x20] sm:$0xf]
        %v1521 = vld [vmem:[%s1511 + $0x24] sm:$0xf]
        %v1522 = vld [vmem:[%s1511 + $0x28] sm:$0xf]
        %v1523 = vld [vmem:[%s1511 + $0x2c] sm:$0xf]
        %v1524 = vld [vmem:[%s1511 + $0x30] sm:$0xf]
        %v1525 = vld [vmem:[%s1511 + $0x34] sm:$0xf]
        %v1526 = vld [vmem:[%s1511 + $0x38] sm:$0xf]
        %v1527 = vld [vmem:[%s1511 + $0x3c] sm:$0xf]
        %vm1541 = vcmask 1040384
        %v1542 = vrot.slane %v1510, 7
        %v1543 = vrot.slane %v1482, 7
        %v1544 = vsel %vm1541, %v1542, %v1543
        %v1545 = vrot.slane %v1483, 7
        %v1546 = vsel %vm1541, %v1543, %v1545
        %v1547 = vrot.slane %v1484, 7
        %v1548 = vsel %vm1541, %v1545, %v1547
        %v1549 = vrot.slane %v1485, 7
        %v1550 = vsel %vm1541, %v1547, %v1549
        %v1551 = vrot.slane %v1486, 7
        %v1552 = vsel %vm1541, %v1549, %v1551
        %v1553 = vrot.slane %v1487, 7
        %v1554 = vsel %vm1541, %v1551, %v1553
        %v1555 = vrot.slane %v1488, 7
        %v1556 = vsel %vm1541, %v1553, %v1555
        %v1557 = vrot.slane %v1489, 7
        %v1558 = vsel %vm1541, %v1555, %v1557
        %v1559 = vrot.slane %v1490, 7
        %v1560 = vsel %vm1541, %v1557, %v1559
        %v1561 = vrot.slane %v1491, 7
        %v1562 = vsel %vm1541, %v1559, %v1561
        %v1563 = vrot.slane %v1492, 7
        %v1564 = vsel %vm1541, %v1561, %v1563
        %v1565 = vrot.slane %v1493, 7
        %v1566 = vsel %vm1541, %v1563, %v1565
        %v1595 = vunpack.c.l.b16 %v1512
        %v1596 = vunpack.c.l.b16 %v1513
        %v1597 = vunpack.c.l.b16 %v1514
        %v1598 = vunpack.c.l.b16 %v1515
        %v1599 = vunpack.c.l.b16 %v1516
        %v1600 = vunpack.c.l.b16 %v1517
        %v1601 = vunpack.c.l.b16 %v1518
        %v1602 = vunpack.c.l.b16 %v1519
        %v1603 = vunpack.c.l.b16 %v1520
        %v1604 = vunpack.c.l.b16 %v1521
        %v1605 = vunpack.c.l.b16 %v1522
        %v1606 = vunpack.c.l.b16 %v1523
        %v1607 = vunpack.c.l.b16 %v1524
        %v1608 = vunpack.c.l.b16 %v1525
        %v1609 = vunpack.c.l.b16 %v1526
        %v1610 = vunpack.c.l.b16 %v1527
        %v1611 = vpack.c.b16 %v1596, %v1595
        %v1612 = vpack.c.b16 %v1598, %v1597
        %v1613 = vpack.c.b16 %v1600, %v1599
        %v1614 = vpack.c.b16 %v1602, %v1601
        %v1615 = vpack.c.b16 %v1604, %v1603
        %v1616 = vpack.c.b16 %v1606, %v1605
        %v1617 = vpack.c.b16 %v1608, %v1607
        %v1618 = vpack.c.b16 %v1610, %v1609
        %1627 = vmatprep.subr.bf16.mxu0 0
        %1628 = vmatpush1.bf16.msra.mxu0 %v1611
        %1629 = vmatprep.subr.bf16.mxu0 0
        %1630 = vmatpush1.bf16.msra.mxu0 %v1612
        %1631 = vmatprep.subr.bf16.mxu0 0
        %1632 = vmatpush1.bf16.msra.mxu0 %v1613
        %1633 = vmatprep.subr.bf16.mxu0 0
        %1634 = vmatpush1.bf16.msra.mxu0 %v1614
        %1635 = vmatprep.subr.bf16.mxu0 0
        %1636 = vmatpush1.bf16.msra.mxu0 %v1615
        %1637 = vmatprep.subr.bf16.mxu0 0
        %1638 = vmatpush1.bf16.msra.mxu0 %v1616
        %1639 = vmatprep.subr.bf16.mxu0 0
        %1640 = vmatpush1.bf16.msra.mxu0 %v1617
        %1641 = vmatprep.subr.bf16.mxu0 0
        %1642 = vmatpush1.bf16.msra.mxu0 %v1618
        %1643 = vmatprep.subr.bf16.mxu0 0
        %1644 = vmatpush1.bf16.msra.mxu0 0
        %1645 = vmatprep.subr.bf16.mxu0 0
        %1646 = vmatpush1.bf16.msra.mxu0 0
        %1647 = vmatprep.subr.bf16.mxu0 0
        %1648 = vmatpush1.bf16.msra.mxu0 0
        %1649 = vmatprep.subr.bf16.mxu0 0
        %1650 = vmatpush1.bf16.msra.mxu0 0
        %1651 = vmatprep.subr.bf16.mxu0 0
        %1652 = vmatpush1.bf16.msra.mxu0 0
        %1653 = vmatprep.subr.bf16.mxu0 0
        %1654 = vmatpush1.bf16.msra.mxu0 0
        %1655 = vmatprep.subr.bf16.mxu0 0
        %1656 = vmatpush1.bf16.msra.mxu0 0
        %1657 = vmatprep.subr.bf16.mxu0 0
        %1658 = vmatpush1.bf16.msra.mxu0 0
        %1659 = vmatprep.mubr.bf16.mxu0 0
        %1660 = vmatmul.mubr.bf16.gmra.mrb[0].mxu0 %v1544
        %v1661 = vpop.f32.mrb[0].mxu0
        %v1662 = vadd.f32 0.0, %v1661
        %v1663 = vpop.f32.mrb[0].mxu0
        %v1664 = vpop.f32.mrb[0].mxu0
        %v1665 = vadd.f32 0.0, %v1664
        %v1666 = vpop.f32.mrb[0].mxu0
        %1667 = vmatprep.mubr.bf16.mxu0 0
        %1668 = vmatmul.mubr.bf16.gmra.mrb[0].mxu0 %v1546
        %v1669 = vpop.f32.mrb[0].mxu0
        %v1670 = vpop.f32.mrb[0].mxu0
        %v1671 = vpop.f32.mrb[0].mxu0
        %v1672 = vadd.f32 0.0, %v1671
        %v1673 = vpop.f32.mrb[0].mxu0
        %1674 = vmatprep.mubr.bf16.mxu0 0
        %1675 = vmatmul.mubr.bf16.gmra.mrb[0].mxu0 %v1548
        %v1676 = vpop.f32.mrb[0].mxu0
        %v1677 = vadd.f32 0.0, %v1676
        %v1678 = vpop.f32.mrb[0].mxu0
        %v1679 = vpop.f32.mrb[0].mxu0
        %v1680 = vpop.f32.mrb[0].mxu0
        %1681 = vmatprep.mubr.bf16.mxu0 0
        %1682 = vmatmul.mubr.bf16.gmra.mrb[0].mxu0 %v1550
        %v1683 = vpop.f32.mrb[0].mxu0
        %v1684 = vadd.f32 0.0, %v1683
        %v1685 = vpop.f32.mrb[0].mxu0
        %v1686 = vpop.f32.mrb[0].mxu0
        %v1687 = vadd.f32 0.0, %v1686
        %v1688 = vpop.f32.mrb[0].mxu0
        %1689 = vmatprep.mubr.bf16.mxu0 0
        %1690 = vmatmul.mubr.bf16.gmra.mrb[0].mxu0 %v1552
        %v1691 = vpop.f32.mrb[0].mxu0
        %v1692 = vpop.f32.mrb[0].mxu0
        %v1693 = vpop.f32.mrb[0].mxu0
        %v1694 = vadd.f32 0.0, %v1693
        %v1695 = vpop.f32.mrb[0].mxu0
        %1696 = vmatprep.mubr.bf16.mxu0 0
        %1697 = vmatmul.mubr.bf16.gmra.mrb[0].mxu0 %v1554
        %v1698 = vpop.f32.mrb[0].mxu0
        %v1699 = vadd.f32 0.0, %v1698
        %v1700 = vpop.f32.mrb[0].mxu0
        %v1701 = vpop.f32.mrb[0].mxu0
        %v1702 = vpop.f32.mrb[0].mxu0
        %1703 = vmatprep.mubr.bf16.mxu0 0
        %1704 = vmatmul.mubr.bf16.gmra.mrb[0].mxu0 %v1556
        %v1705 = vpop.f32.mrb[0].mxu0
        %v1706 = vadd.f32 0.0, %v1705
        %v1707 = vpop.f32.mrb[0].mxu0
        %v1708 = vpop.f32.mrb[0].mxu0
        %v1709 = vadd.f32 0.0, %v1708
        %v1710 = vpop.f32.mrb[0].mxu0
        %1711 = vmatprep.mubr.bf16.mxu0 0
        %1712 = vmatmul.mubr.bf16.gmra.mrb[0].mxu0 %v1558
        %v1713 = vpop.f32.mrb[0].mxu0
        %v1714 = vpop.f32.mrb[0].mxu0
        %v1715 = vpop.f32.mrb[0].mxu0
        %v1716 = vadd.f32 0.0, %v1715
        %v1717 = vpop.f32.mrb[0].mxu0
        %1718 = vmatprep.mubr.bf16.mxu0 0
        %1719 = vmatmul.mubr.bf16.gmra.mrb[0].mxu0 %v1560
        %v1720 = vpop.f32.mrb[0].mxu0
        %v1721 = vadd.f32 0.0, %v1720
        %v1722 = vpop.f32.mrb[0].mxu0
        %v1723 = vpop.f32.mrb[0].mxu0
        %v1724 = vpop.f32.mrb[0].mxu0
        %1725 = vmatprep.mubr.bf16.mxu0 0
        %1726 = vmatmul.mubr.bf16.gmra.mrb[0].mxu0 %v1562
        %v1727 = vpop.f32.mrb[0].mxu0
        %v1728 = vadd.f32 0.0, %v1727
        %v1729 = vpop.f32.mrb[0].mxu0
        %v1730 = vpop.f32.mrb[0].mxu0
        %v1731 = vadd.f32 0.0, %v1730
        %v1732 = vpop.f32.mrb[0].mxu0
        %1733 = vmatprep.mubr.bf16.mxu0 0
        %1734 = vmatmul.mubr.bf16.gmra.mrb[0].mxu0 %v1564
        %v1735 = vpop.f32.mrb[0].mxu0
        %v1736 = vpop.f32.mrb[0].mxu0
        %v1737 = vpop.f32.mrb[0].mxu0
        %v1738 = vadd.f32 0.0, %v1737
        %v1739 = vpop.f32.mrb[0].mxu0
        %1740 = vmatprep.mubr.bf16.mxu0 0
        %1741 = vmatmul.mubr.bf16.gmra.mrb[0].mxu0 %v1566
        %v1742 = vpop.f32.mrb[0].mxu0
        %v1743 = vadd.f32 0.0, %v1742
        %v1744 = vpop.f32.mrb[0].mxu0
        %v1745 = vpop.f32.mrb[0].mxu0
        %v1746 = vpop.f32.mrb[0].mxu0
        %1747 = vdwg.mxu0
        %vm1748 = vsmask.f32 1280
        %v1750 = vshrl.u32 %v1481, 16
        %v1752 = vrot.slane %v1750, 6
        %v1753 = vshll.u32 %v1481, 16
        %v1755 = vrot.slane %v1753, 7
        %v1756 = vor.u32 %v1752, %v1755
        %v1758 = vshrl.u32 %v1482, 16
        %v1760 = vrot.slane %v1758, 6
        %v1761 = vshll.u32 %v1482, 16
        %v1763 = vrot.slane %v1761, 7
        %v1764 = vor.u32 %v1760, %v1763
        %v1765 = vsel %vm1748, %v1756, %v1764
        %v1767 = vshrl.u32 %v1483, 16
        %v1769 = vrot.slane %v1767, 6
        %v1770 = vshll.u32 %v1483, 16
        %v1772 = vrot.slane %v1770, 7
        %v1773 = vor.u32 %v1769, %v1772
        %v1774 = vsel %vm1748, %v1764, %v1773
        %v1776 = vshrl.u32 %v1484, 16
        %v1778 = vrot.slane %v1776, 6
        %v1779 = vshll.u32 %v1484, 16
        %v1781 = vrot.slane %v1779, 7
        %v1782 = vor.u32 %v1778, %v1781
        %v1783 = vsel %vm1748, %v1773, %v1782
        %v1785 = vshrl.u32 %v1485, 16
        %v1787 = vrot.slane %v1785, 6
        %v1788 = vshll.u32 %v1485, 16
        %v1790 = vrot.slane %v1788, 7
        %v1791 = vor.u32 %v1787, %v1790
        %v1792 = vsel %vm1748, %v1782, %v1791
        %v1794 = vshrl.u32 %v1486, 16
        %v1796 = vrot.slane %v1794, 6
        %v1797 = vshll.u32 %v1486, 16
        %v1799 = vrot.slane %v1797, 7
        %v1800 = vor.u32 %v1796, %v1799
        %v1801 = vsel %vm1748, %v1791, %v1800
        %v1803 = vshrl.u32 %v1487, 16
        %v1805 = vrot.slane %v1803, 6
        %v1806 = vshll.u32 %v1487, 16
        %v1808 = vrot.slane %v1806, 7
        %v1809 = vor.u32 %v1805, %v1808
        %v1810 = vsel %vm1748, %v1800, %v1809
        %v1812 = vshrl.u32 %v1488, 16
        %v1814 = vrot.slane %v1812, 6
        %v1815 = vshll.u32 %v1488, 16
        %v1817 = vrot.slane %v1815, 7
        %v1818 = vor.u32 %v1814, %v1817
        %v1819 = vsel %vm1748, %v1809, %v1818
        %v1821 = vshrl.u32 %v1489, 16
        %v1823 = vrot.slane %v1821, 6
        %v1824 = vshll.u32 %v1489, 16
        %v1826 = vrot.slane %v1824, 7
        %v1827 = vor.u32 %v1823, %v1826
        %v1828 = vsel %vm1748, %v1818, %v1827
        %v1830 = vshrl.u32 %v1490, 16
        %v1832 = vrot.slane %v1830, 6
        %v1833 = vshll.u32 %v1490, 16
        %v1835 = vrot.slane %v1833, 7
        %v1836 = vor.u32 %v1832, %v1835
        %v1837 = vsel %vm1748, %v1827, %v1836
        %v1839 = vshrl.u32 %v1491, 16
        %v1841 = vrot.slane %v1839, 6
        %v1842 = vshll.u32 %v1491, 16
        %v1844 = vrot.slane %v1842, 7
        %v1845 = vor.u32 %v1841, %v1844
        %v1846 = vsel %vm1748, %v1836, %v1845
        %v1848 = vshrl.u32 %v1492, 16
        %v1850 = vrot.slane %v1848, 6
        %v1851 = vshll.u32 %v1492, 16
        %v1853 = vrot.slane %v1851, 7
        %v1854 = vor.u32 %v1850, %v1853
        %v1855 = vsel %vm1748, %v1845, %v1854
        %v1857 = vshrl.u32 %v1493, 16
        %v1859 = vrot.slane %v1857, 6
        %v1860 = vshll.u32 %v1493, 16
        %v1862 = vrot.slane %v1860, 7
        %v1863 = vor.u32 %v1859, %v1862
        %v1864 = vsel %vm1748, %v1854, %v1863
        %v1893 = vunpack.c.l.b16 %v1494
        %v1894 = vunpack.c.l.b16 %v1495
        %v1895 = vunpack.c.l.b16 %v1496
        %v1896 = vunpack.c.l.b16 %v1497
        %v1897 = vunpack.c.l.b16 %v1498
        %v1898 = vunpack.c.l.b16 %v1499
        %v1899 = vunpack.c.l.b16 %v1500
        %v1900 = vunpack.c.l.b16 %v1501
        %v1901 = vunpack.c.l.b16 %v1502
        %v1902 = vunpack.c.l.b16 %v1503
        %v1903 = vunpack.c.l.b16 %v1504
        %v1904 = vunpack.c.l.b16 %v1505
        %v1905 = vunpack.c.l.b16 %v1506
        %v1906 = vunpack.c.l.b16 %v1507
        %v1907 = vunpack.c.l.b16 %v1508
        %v1908 = vunpack.c.l.b16 %v1509
        %v1909 = vpack.c.b16 %v1894, %v1893
        %v1910 = vpack.c.b16 %v1896, %v1895
        %v1911 = vpack.c.b16 %v1898, %v1897
        %v1912 = vpack.c.b16 %v1900, %v1899
        %v1913 = vpack.c.b16 %v1902, %v1901
        %v1914 = vpack.c.b16 %v1904, %v1903
        %v1915 = vpack.c.b16 %v1906, %v1905
        %v1916 = vpack.c.b16 %v1908, %v1907
        %1925 = vmatprep.subr.bf16.mxu0 0
        %1926 = vmatpush1.bf16.msra.mxu0 %v1909
        %1927 = vmatprep.subr.bf16.mxu0 0
        %1928 = vmatpush1.bf16.msra.mxu0 %v1910
        %1929 = vmatprep.subr.bf16.mxu0 0
        %1930 = vmatpush1.bf16.msra.mxu0 %v1911
        %1931 = vmatprep.subr.bf16.mxu0 0
        %1932 = vmatpush1.bf16.msra.mxu0 %v1912
        %1933 = vmatprep.subr.bf16.mxu0 0
        %1934 = vmatpush1.bf16.msra.mxu0 %v1913
        %1935 = vmatprep.subr.bf16.mxu0 0
        %1936 = vmatpush1.bf16.msra.mxu0 %v1914
        %1937 = vmatprep.subr.bf16.mxu0 0
        %1938 = vmatpush1.bf16.msra.mxu0 %v1915
        %1939 = vmatprep.subr.bf16.mxu0 0
        %1940 = vmatpush1.bf16.msra.mxu0 %v1916
        %1941 = vmatprep.subr.bf16.mxu0 0
        %1942 = vmatpush1.bf16.msra.mxu0 0
        %1943 = vmatprep.subr.bf16.mxu0 0
        %1944 = vmatpush1.bf16.msra.mxu0 0
        %1945 = vmatprep.subr.bf16.mxu0 0
        %1946 = vmatpush1.bf16.msra.mxu0 0
        %1947 = vmatprep.subr.bf16.mxu0 0
        %1948 = vmatpush1.bf16.msra.mxu0 0
        %1949 = vmatprep.subr.bf16.mxu0 0
        %1950 = vmatpush1.bf16.msra.mxu0 0
        %1951 = vmatprep.subr.bf16.mxu0 0
        %1952 = vmatpush1.bf16.msra.mxu0 0
        %1953 = vmatprep.subr.bf16.mxu0 0
        %1954 = vmatpush1.bf16.msra.mxu0 0
        %1955 = vmatprep.subr.bf16.mxu0 0
        %1956 = vmatpush1.bf16.msra.mxu0 0
        %1957 = vmatprep.mubr.bf16.mxu0 0
        %1958 = vmatmul.mubr.bf16.gmra.mrb[0].mxu0 %v1765
        %v1959 = vpop.f32.mrb[0].mxu0
        %v1960 = vadd.f32 %v1662, %v1959
        %v1961 = vpop.f32.mrb[0].mxu0
        %v1962 = vpop.f32.mrb[0].mxu0
        %v1963 = vadd.f32 %v1665, %v1962
        %v1964 = vpop.f32.mrb[0].mxu0
        %1965 = vmatprep.mubr.bf16.mxu0 0
        %1966 = vmatmul.mubr.bf16.gmra.mrb[0].mxu0 %v1774
        %v1967 = vpop.f32.mrb[0].mxu0
        %v1968 = vpop.f32.mrb[0].mxu0
        %v1969 = vpop.f32.mrb[0].mxu0
        %v1970 = vadd.f32 %v1672, %v1969
        %v1971 = vpop.f32.mrb[0].mxu0
        %1972 = vmatprep.mubr.bf16.mxu0 0
        %1973 = vmatmul.mubr.bf16.gmra.mrb[0].mxu0 %v1783
        %v1974 = vpop.f32.mrb[0].mxu0
        %v1975 = vadd.f32 %v1677, %v1974
        %v1976 = vpop.f32.mrb[0].mxu0
        %v1977 = vpop.f32.mrb[0].mxu0
        %v1978 = vpop.f32.mrb[0].mxu0
        %1979 = vmatprep.mubr.bf16.mxu0 0
        %1980 = vmatmul.mubr.bf16.gmra.mrb[0].mxu0 %v1792
        %v1981 = vpop.f32.mrb[0].mxu0
        %v1982 = vadd.f32 %v1684, %v1981
        %v1983 = vpop.f32.mrb[0].mxu0
        %v1984 = vpop.f32.mrb[0].mxu0
        %v1985 = vadd.f32 %v1687, %v1984
        %v1986 = vpop.f32.mrb[0].mxu0
        %1987 = vmatprep.mubr.bf16.mxu0 0
        %1988 = vmatmul.mubr.bf16.gmra.mrb[0].mxu0 %v1801
        %v1989 = vpop.f32.mrb[0].mxu0
        %v1990 = vpop.f32.mrb[0].mxu0
        %v1991 = vpop.f32.mrb[0].mxu0
        %v1992 = vadd.f32 %v1694, %v1991
        %v1993 = vpop.f32.mrb[0].mxu0
        %1994 = vmatprep.mubr.bf16.mxu0 0
        %1995 = vmatmul.mubr.bf16.gmra.mrb[0].mxu0 %v1810
        %v1996 = vpop.f32.mrb[0].mxu0
        %v1997 = vadd.f32 %v1699, %v1996
        %v1998 = vpop.f32.mrb[0].mxu0
        %v1999 = vpop.f32.mrb[0].mxu0
        %v2000 = vpop.f32.mrb[0].mxu0
        %2001 = vmatprep.mubr.bf16.mxu0 0
        %2002 = vmatmul.mubr.bf16.gmra.mrb[0].mxu0 %v1819
        %v2003 = vpop.f32.mrb[0].mxu0
        %v2004 = vadd.f32 %v1706, %v2003
        %v2005 = vpop.f32.mrb[0].mxu0
        %v2006 = vpop.f32.mrb[0].mxu0
        %v2007 = vadd.f32 %v1709, %v2006
        %v2008 = vpop.f32.mrb[0].mxu0
        %2009 = vmatprep.mubr.bf16.mxu0 0
        %2010 = vmatmul.mubr.bf16.gmra.mrb[0].mxu0 %v1828
        %v2011 = vpop.f32.mrb[0].mxu0
        %v2012 = vpop.f32.mrb[0].mxu0
        %v2013 = vpop.f32.mrb[0].mxu0
        %v2014 = vadd.f32 %v1716, %v2013
        %v2015 = vpop.f32.mrb[0].mxu0
        %2016 = vmatprep.mubr.bf16.mxu0 0
        %2017 = vmatmul.mubr.bf16.gmra.mrb[0].mxu0 %v1837
        %v2018 = vpop.f32.mrb[0].mxu0
        %v2019 = vadd.f32 %v1721, %v2018
        %v2020 = vpop.f32.mrb[0].mxu0
        %v2021 = vpop.f32.mrb[0].mxu0
        %v2022 = vpop.f32.mrb[0].mxu0
        %2023 = vmatprep.mubr.bf16.mxu0 0
        %2024 = vmatmul.mubr.bf16.gmra.mrb[0].mxu0 %v1846
        %v2025 = vpop.f32.mrb[0].mxu0
        %v2026 = vadd.f32 %v1728, %v2025
        %v2027 = vpop.f32.mrb[0].mxu0
        %v2028 = vpop.f32.mrb[0].mxu0
        %v2029 = vadd.f32 %v1731, %v2028
        %v2030 = vpop.f32.mrb[0].mxu0
        %2031 = vmatprep.mubr.bf16.mxu0 0
        %2032 = vmatmul.mubr.bf16.gmra.mrb[0].mxu0 %v1855
        %v2033 = vpop.f32.mrb[0].mxu0
        %v2034 = vpop.f32.mrb[0].mxu0
        %v2035 = vpop.f32.mrb[0].mxu0
        %v2036 = vadd.f32 %v1738, %v2035
        %v2037 = vpop.f32.mrb[0].mxu0
        %2038 = vmatprep.mubr.bf16.mxu0 0
        %2039 = vmatmul.mubr.bf16.gmra.mrb[0].mxu0 %v1864
        %v2040 = vpop.f32.mrb[0].mxu0
        %v2041 = vadd.f32 %v1743, %v2040
        %v2042 = vpop.f32.mrb[0].mxu0
        %v2043 = vpop.f32.mrb[0].mxu0
        %v2044 = vpop.f32.mrb[0].mxu0
        %2045 = vdwg.mxu0
        %v2046 = vld [vmem:[#allocation2 + $0x60] sm:$0xff]
        %s2047 = scalar_lea.vmem [#allocation8], 128
        %v2048 = vld [vmem:[%s2047] sm:$0xf]
        %v2049 = vld [vmem:[%s2047 + $0x4] sm:$0xf]
        %v2050 = vld [vmem:[%s2047 + $0x8] sm:$0xf]
        %v2051 = vld [vmem:[%s2047 + $0xc] sm:$0xf]
        %v2052 = vld [vmem:[%s2047 + $0x10] sm:$0xf]
        %v2053 = vld [vmem:[%s2047 + $0x14] sm:$0xf]
        %v2054 = vld [vmem:[%s2047 + $0x18] sm:$0xf]
        %v2055 = vld [vmem:[%s2047 + $0x1c] sm:$0xf]
        %v2056 = vld [vmem:[%s2047 + $0x20] sm:$0xf]
        %v2057 = vld [vmem:[%s2047 + $0x24] sm:$0xf]
        %v2058 = vld [vmem:[%s2047 + $0x28] sm:$0xf]
        %v2059 = vld [vmem:[%s2047 + $0x2c] sm:$0xf]
        %v2060 = vld [vmem:[%s2047 + $0x30] sm:$0xf]
        %v2061 = vld [vmem:[%s2047 + $0x34] sm:$0xf]
        %v2062 = vld [vmem:[%s2047 + $0x38] sm:$0xf]
        %v2063 = vld [vmem:[%s2047 + $0x3c] sm:$0xf]
        %vm2064 = vsmask.f32 256
        %v2066 = vshrl.u32 %v1510, 16
        %v2068 = vrot.slane %v2066, 7
        %v2069 = vrot.slane %v1758, 7
        %v2070 = vor.u32 %v2069, %v1761
        %v2071 = vsel %vm2064, %v2068, %v2070
        %v2072 = vrot.slane %v1767, 7
        %v2073 = vor.u32 %v2072, %v1770
        %v2074 = vsel %vm2064, %v2069, %v2073
        %v2075 = vrot.slane %v1776, 7
        %v2076 = vor.u32 %v2075, %v1779
        %v2077 = vsel %vm2064, %v2072, %v2076
        %v2078 = vrot.slane %v1785, 7
        %v2079 = vor.u32 %v2078, %v1788
        %v2080 = vsel %vm2064, %v2075, %v2079
        %v2081 = vrot.slane %v1794, 7
        %v2082 = vor.u32 %v2081, %v1797
        %v2083 = vsel %vm2064, %v2078, %v2082
        %v2084 = vrot.slane %v1803, 7
        %v2085 = vor.u32 %v2084, %v1806
        %v2086 = vsel %vm2064, %v2081, %v2085
        %v2087 = vrot.slane %v1812, 7
        %v2088 = vor.u32 %v2087, %v1815
        %v2089 = vsel %vm2064, %v2084, %v2088
        %v2090 = vrot.slane %v1821, 7
        %v2091 = vor.u32 %v2090, %v1824
        %v2092 = vsel %vm2064, %v2087, %v2091
        %v2093 = vrot.slane %v1830, 7
        %v2094 = vor.u32 %v2093, %v1833
        %v2095 = vsel %vm2064, %v2090, %v2094
        %v2096 = vrot.slane %v1839, 7
        %v2097 = vor.u32 %v2096, %v1842
        %v2098 = vsel %vm2064, %v2093, %v2097
        %v2099 = vrot.slane %v1848, 7
        %v2100 = vor.u32 %v2099, %v1851
        %v2101 = vsel %vm2064, %v2096, %v2100
        %v2103 = vshrl.u32 %v2046, 16
        %v2105 = vrot.slane %v2103, 7
        %v2106 = vshll.u32 %v2046, 16
        %v2108 = vor.u32 %v2105, %v2106
        %v2109 = vsel %vm2064, %v2099, %v2108
        %v2138 = vunpack.c.l.b16 %v2048
        %v2139 = vunpack.c.l.b16 %v2049
        %v2140 = vunpack.c.l.b16 %v2050
        %v2141 = vunpack.c.l.b16 %v2051
        %v2142 = vunpack.c.l.b16 %v2052
        %v2143 = vunpack.c.l.b16 %v2053
        %v2144 = vunpack.c.l.b16 %v2054
        %v2145 = vunpack.c.l.b16 %v2055
        %v2146 = vunpack.c.l.b16 %v2056
        %v2147 = vunpack.c.l.b16 %v2057
        %v2148 = vunpack.c.l.b16 %v2058
        %v2149 = vunpack.c.l.b16 %v2059
        %v2150 = vunpack.c.l.b16 %v2060
        %v2151 = vunpack.c.l.b16 %v2061
        %v2152 = vunpack.c.l.b16 %v2062
        %v2153 = vunpack.c.l.b16 %v2063
        %v2154 = vpack.c.b16 %v2139, %v2138
        %v2155 = vpack.c.b16 %v2141, %v2140
        %v2156 = vpack.c.b16 %v2143, %v2142
        %v2157 = vpack.c.b16 %v2145, %v2144
        %v2158 = vpack.c.b16 %v2147, %v2146
        %v2159 = vpack.c.b16 %v2149, %v2148
        %v2160 = vpack.c.b16 %v2151, %v2150
        %v2161 = vpack.c.b16 %v2153, %v2152
        %2170 = vmatprep.subr.bf16.mxu0 0
        %2171 = vmatpush1.bf16.msra.mxu0 %v2154
        %2172 = vmatprep.subr.bf16.mxu0 0
        %2173 = vmatpush1.bf16.msra.mxu0 %v2155
        %2174 = vmatprep.subr.bf16.mxu0 0
        %2175 = vmatpush1.bf16.msra.mxu0 %v2156
        %2176 = vmatprep.subr.bf16.mxu0 0
        %2177 = vmatpush1.bf16.msra.mxu0 %v2157
        %2178 = vmatprep.subr.bf16.mxu0 0
        %2179 = vmatpush1.bf16.msra.mxu0 %v2158
        %2180 = vmatprep.subr.bf16.mxu0 0
        %2181 = vmatpush1.bf16.msra.mxu0 %v2159
        %2182 = vmatprep.subr.bf16.mxu0 0
        %2183 = vmatpush1.bf16.msra.mxu0 %v2160
        %2184 = vmatprep.subr.bf16.mxu0 0
        %2185 = vmatpush1.bf16.msra.mxu0 %v2161
        %2186 = vmatprep.subr.bf16.mxu0 0
        %2187 = vmatpush1.bf16.msra.mxu0 0
        %2188 = vmatprep.subr.bf16.mxu0 0
        %2189 = vmatpush1.bf16.msra.mxu0 0
        %2190 = vmatprep.subr.bf16.mxu0 0
        %2191 = vmatpush1.bf16.msra.mxu0 0
        %2192 = vmatprep.subr.bf16.mxu0 0
        %2193 = vmatpush1.bf16.msra.mxu0 0
        %2194 = vmatprep.subr.bf16.mxu0 0
        %2195 = vmatpush1.bf16.msra.mxu0 0
        %2196 = vmatprep.subr.bf16.mxu0 0
        %2197 = vmatpush1.bf16.msra.mxu0 0
        %2198 = vmatprep.subr.bf16.mxu0 0
        %2199 = vmatpush1.bf16.msra.mxu0 0
        %2200 = vmatprep.subr.bf16.mxu0 0
        %2201 = vmatpush1.bf16.msra.mxu0 0
        %2202 = vmatprep.mubr.bf16.mxu0 0
        %2203 = vmatmul.mubr.bf16.gmra.mrb[0].mxu0 %v2071
        %v2204 = vpop.f32.mrb[0].mxu0
        %v2205 = vadd.f32 0.0, %v2204
        %v2206 = vpop.f32.mrb[0].mxu0
        %v2207 = vpop.f32.mrb[0].mxu0
        %v2208 = vadd.f32 0.0, %v2207
        %v2209 = vpop.f32.mrb[0].mxu0
        %2210 = vmatprep.mubr.bf16.mxu0 0
        %2211 = vmatmul.mubr.bf16.gmra.mrb[0].mxu0 %v2074
        %v2212 = vpop.f32.mrb[0].mxu0
        %v2213 = vpop.f32.mrb[0].mxu0
        %v2214 = vpop.f32.mrb[0].mxu0
        %v2215 = vadd.f32 0.0, %v2214
        %v2216 = vpop.f32.mrb[0].mxu0
        %2217 = vmatprep.mubr.bf16.mxu0 0
        %2218 = vmatmul.mubr.bf16.gmra.mrb[0].mxu0 %v2077
        %v2219 = vpop.f32.mrb[0].mxu0
        %v2220 = vadd.f32 0.0, %v2219
        %v2221 = vpop.f32.mrb[0].mxu0
        %v2222 = vpop.f32.mrb[0].mxu0
        %v2223 = vpop.f32.mrb[0].mxu0
        %2224 = vmatprep.mubr.bf16.mxu0 0
        %2225 = vmatmul.mubr.bf16.gmra.mrb[0].mxu0 %v2080
        %v2226 = vpop.f32.mrb[0].mxu0
        %v2227 = vadd.f32 0.0, %v2226
        %v2228 = vpop.f32.mrb[0].mxu0
        %v2229 = vpop.f32.mrb[0].mxu0
        %v2230 = vadd.f32 0.0, %v2229
        %v2231 = vpop.f32.mrb[0].mxu0
        %2232 = vmatprep.mubr.bf16.mxu0 0
        %2233 = vmatmul.mubr.bf16.gmra.mrb[0].mxu0 %v2083
        %v2234 = vpop.f32.mrb[0].mxu0
        %v2235 = vpop.f32.mrb[0].mxu0
        %v2236 = vpop.f32.mrb[0].mxu0
        %v2237 = vadd.f32 0.0, %v2236
        %v2238 = vpop.f32.mrb[0].mxu0
        %2239 = vmatprep.mubr.bf16.mxu0 0
        %2240 = vmatmul.mubr.bf16.gmra.mrb[0].mxu0 %v2086
        %v2241 = vpop.f32.mrb[0].mxu0
        %v2242 = vadd.f32 0.0, %v2241
        %v2243 = vpop.f32.mrb[0].mxu0
        %v2244 = vpop.f32.mrb[0].mxu0
        %v2245 = vpop.f32.mrb[0].mxu0
        %2246 = vmatprep.mubr.bf16.mxu0 0
        %2247 = vmatmul.mubr.bf16.gmra.mrb[0].mxu0 %v2089
        %v2248 = vpop.f32.mrb[0].mxu0
        %v2249 = vadd.f32 0.0, %v2248
        %v2250 = vpop.f32.mrb[0].mxu0
        %v2251 = vpop.f32.mrb[0].mxu0
        %v2252 = vadd.f32 0.0, %v2251
        %v2253 = vpop.f32.mrb[0].mxu0
        %2254 = vmatprep.mubr.bf16.mxu0 0
        %2255 = vmatmul.mubr.bf16.gmra.mrb[0].mxu0 %v2092
        %v2256 = vpop.f32.mrb[0].mxu0
        %v2257 = vpop.f32.mrb[0].mxu0
        %v2258 = vpop.f32.mrb[0].mxu0
        %v2259 = vadd.f32 0.0, %v2258
        %v2260 = vpop.f32.mrb[0].mxu0
        %2261 = vmatprep.mubr.bf16.mxu0 0
        %2262 = vmatmul.mubr.bf16.gmra.mrb[0].mxu0 %v2095
        %v2263 = vpop.f32.mrb[0].mxu0
        %v2264 = vadd.f32 0.0, %v2263
        %v2265 = vpop.f32.mrb[0].mxu0
        %v2266 = vpop.f32.mrb[0].mxu0
        %v2267 = vpop.f32.mrb[0].mxu0
        %2268 = vmatprep.mubr.bf16.mxu0 0
        %2269 = vmatmul.mubr.bf16.gmra.mrb[0].mxu0 %v2098
        %v2270 = vpop.f32.mrb[0].mxu0
        %v2271 = vadd.f32 0.0, %v2270
        %v2272 = vpop.f32.mrb[0].mxu0
        %v2273 = vpop.f32.mrb[0].mxu0
        %v2274 = vadd.f32 0.0, %v2273
        %v2275 = vpop.f32.mrb[0].mxu0
        %2276 = vmatprep.mubr.bf16.mxu0 0
        %2277 = vmatmul.mubr.bf16.gmra.mrb[0].mxu0 %v2101
        %v2278 = vpop.f32.mrb[0].mxu0
        %v2279 = vpop.f32.mrb[0].mxu0
        %v2280 = vpop.f32.mrb[0].mxu0
        %v2281 = vadd.f32 0.0, %v2280
        %v2282 = vpop.f32.mrb[0].mxu0
        %2283 = vmatprep.mubr.bf16.mxu0 0
        %2284 = vmatmul.mubr.bf16.gmra.mrb[0].mxu0 %v2109
        %v2285 = vpop.f32.mrb[0].mxu0
        %v2286 = vadd.f32 0.0, %v2285
        %v2287 = vpop.f32.mrb[0].mxu0
        %v2288 = vpop.f32.mrb[0].mxu0
        %v2289 = vpop.f32.mrb[0].mxu0
        %2290 = vdwg.mxu0
        %v2291 = vadd.f32 %v1960, %v2205
        %v2292 = vadd.f32 %v1963, %v2208
        %v2293 = vadd.f32 %v1970, %v2215
        %v2294 = vadd.f32 %v1975, %v2220
        %v2295 = vadd.f32 %v1982, %v2227
        %v2296 = vadd.f32 %v1985, %v2230
        %v2297 = vadd.f32 %v1992, %v2237
        %v2298 = vadd.f32 %v1997, %v2242
        %v2299 = vadd.f32 %v2004, %v2249
        %v2300 = vadd.f32 %v2007, %v2252
        %v2301 = vadd.f32 %v2014, %v2259
        %v2302 = vadd.f32 %v2019, %v2264
        %v2303 = vadd.f32 %v2026, %v2271
        %v2304 = vadd.f32 %v2029, %v2274
        %v2305 = vadd.f32 %v2036, %v2281
        %v2306 = vadd.f32 %v2041, %v2286
        %s2307 = scalar_lea.vmem [#allocation8], 192
        %v2308 = vld [vmem:[%s2307] sm:$0xf]
        %v2309 = vld [vmem:[%s2307 + $0x4] sm:$0xf]
        %v2310 = vld [vmem:[%s2307 + $0x8] sm:$0xf]
        %v2311 = vld [vmem:[%s2307 + $0xc] sm:$0xf]
        %v2312 = vld [vmem:[%s2307 + $0x10] sm:$0xf]
        %v2313 = vld [vmem:[%s2307 + $0x14] sm:$0xf]
        %v2314 = vld [vmem:[%s2307 + $0x18] sm:$0xf]
        %v2315 = vld [vmem:[%s2307 + $0x1c] sm:$0xf]
        %v2316 = vld [vmem:[%s2307 + $0x20] sm:$0xf]
        %v2317 = vld [vmem:[%s2307 + $0x24] sm:$0xf]
        %v2318 = vld [vmem:[%s2307 + $0x28] sm:$0xf]
        %v2319 = vld [vmem:[%s2307 + $0x2c] sm:$0xf]
        %v2320 = vld [vmem:[%s2307 + $0x30] sm:$0xf]
        %v2321 = vld [vmem:[%s2307 + $0x34] sm:$0xf]
        %v2322 = vld [vmem:[%s2307 + $0x38] sm:$0xf]
        %v2323 = vld [vmem:[%s2307 + $0x3c] sm:$0xf]
        %v2340 = vunpack.c.l.b16 %v2308
        %v2341 = vunpack.c.l.b16 %v2309
        %v2342 = vunpack.c.l.b16 %v2310
        %v2343 = vunpack.c.l.b16 %v2311
        %v2344 = vunpack.c.l.b16 %v2312
        %v2345 = vunpack.c.l.b16 %v2313
        %v2346 = vunpack.c.l.b16 %v2314
        %v2347 = vunpack.c.l.b16 %v2315
        %v2348 = vunpack.c.l.b16 %v2316
        %v2349 = vunpack.c.l.b16 %v2317
        %v2350 = vunpack.c.l.b16 %v2318
        %v2351 = vunpack.c.l.b16 %v2319
        %v2352 = vunpack.c.l.b16 %v2320
        %v2353 = vunpack.c.l.b16 %v2321
        %v2354 = vunpack.c.l.b16 %v2322
        %v2355 = vunpack.c.l.b16 %v2323
        %v2356 = vpack.c.b16 %v2341, %v2340
        %v2357 = vpack.c.b16 %v2343, %v2342
        %v2358 = vpack.c.b16 %v2345, %v2344
        %v2359 = vpack.c.b16 %v2347, %v2346
        %v2360 = vpack.c.b16 %v2349, %v2348
        %v2361 = vpack.c.b16 %v2351, %v2350
        %v2362 = vpack.c.b16 %v2353, %v2352
        %v2363 = vpack.c.b16 %v2355, %v2354
        %2372 = vmatprep.subr.bf16.mxu0 0
        %2373 = vmatpush1.bf16.msra.mxu0 %v2356
        %2374 = vmatprep.subr.bf16.mxu0 0
        %2375 = vmatpush1.bf16.msra.mxu0 %v2357
        %2376 = vmatprep.subr.bf16.mxu0 0
        %2377 = vmatpush1.bf16.msra.mxu0 %v2358
        %2378 = vmatprep.subr.bf16.mxu0 0
        %2379 = vmatpush1.bf16.msra.mxu0 %v2359
        %2380 = vmatprep.subr.bf16.mxu0 0
        %2381 = vmatpush1.bf16.msra.mxu0 %v2360
        %2382 = vmatprep.subr.bf16.mxu0 0
        %2383 = vmatpush1.bf16.msra.mxu0 %v2361
        %2384 = vmatprep.subr.bf16.mxu0 0
        %2385 = vmatpush1.bf16.msra.mxu0 %v2362
        %2386 = vmatprep.subr.bf16.mxu0 0
        %2387 = vmatpush1.bf16.msra.mxu0 %v2363
        %2388 = vmatprep.subr.bf16.mxu0 0
        %2389 = vmatpush1.bf16.msra.mxu0 0
        %2390 = vmatprep.subr.bf16.mxu0 0
        %2391 = vmatpush1.bf16.msra.mxu0 0
        %2392 = vmatprep.subr.bf16.mxu0 0
        %2393 = vmatpush1.bf16.msra.mxu0 0
        %2394 = vmatprep.subr.bf16.mxu0 0
        %2395 = vmatpush1.bf16.msra.mxu0 0
        %2396 = vmatprep.subr.bf16.mxu0 0
        %2397 = vmatpush1.bf16.msra.mxu0 0
        %2398 = vmatprep.subr.bf16.mxu0 0
        %2399 = vmatpush1.bf16.msra.mxu0 0
        %2400 = vmatprep.subr.bf16.mxu0 0
        %2401 = vmatpush1.bf16.msra.mxu0 0
        %2402 = vmatprep.subr.bf16.mxu0 0
        %2403 = vmatpush1.bf16.msra.mxu0 0
        %2404 = vmatprep.mubr.bf16.mxu0 0
        %2405 = vmatmul.mubr.bf16.gmra.mrb[0].mxu0 %v1482
        %v2406 = vpop.f32.mrb[0].mxu0
        %v2407 = vadd.f32 0.0, %v2406
        %v2408 = vpop.f32.mrb[0].mxu0
        %v2409 = vpop.f32.mrb[0].mxu0
        %v2410 = vadd.f32 0.0, %v2409
        %v2411 = vpop.f32.mrb[0].mxu0
        %2412 = vmatprep.mubr.bf16.mxu0 0
        %2413 = vmatmul.mubr.bf16.gmra.mrb[0].mxu0 %v1483
        %v2414 = vpop.f32.mrb[0].mxu0
        %v2415 = vpop.f32.mrb[0].mxu0
        %v2416 = vpop.f32.mrb[0].mxu0
        %v2417 = vadd.f32 0.0, %v2416
        %v2418 = vpop.f32.mrb[0].mxu0
        %2419 = vmatprep.mubr.bf16.mxu0 0
        %2420 = vmatmul.mubr.bf16.gmra.mrb[0].mxu0 %v1484
        %v2421 = vpop.f32.mrb[0].mxu0
        %v2422 = vadd.f32 0.0, %v2421
        %v2423 = vpop.f32.mrb[0].mxu0
        %v2424 = vpop.f32.mrb[0].mxu0
        %v2425 = vpop.f32.mrb[0].mxu0
        %2426 = vmatprep.mubr.bf16.mxu0 0
        %2427 = vmatmul.mubr.bf16.gmra.mrb[0].mxu0 %v1485
        %v2428 = vpop.f32.mrb[0].mxu0
        %v2429 = vadd.f32 0.0, %v2428
        %v2430 = vpop.f32.mrb[0].mxu0
        %v2431 = vpop.f32.mrb[0].mxu0
        %v2432 = vadd.f32 0.0, %v2431
        %v2433 = vpop.f32.mrb[0].mxu0
        %2434 = vmatprep.mubr.bf16.mxu0 0
        %2435 = vmatmul.mubr.bf16.gmra.mrb[0].mxu0 %v1486
        %v2436 = vpop.f32.mrb[0].mxu0
        %v2437 = vpop.f32.mrb[0].mxu0
        %v2438 = vpop.f32.mrb[0].mxu0
        %v2439 = vadd.f32 0.0, %v2438
        %v2440 = vpop.f32.mrb[0].mxu0
        %2441 = vmatprep.mubr.bf16.mxu0 0
        %2442 = vmatmul.mubr.bf16.gmra.mrb[0].mxu0 %v1487
        %v2443 = vpop.f32.mrb[0].mxu0
        %v2444 = vadd.f32 0.0, %v2443
        %v2445 = vpop.f32.mrb[0].mxu0
        %v2446 = vpop.f32.mrb[0].mxu0
        %v2447 = vpop.f32.mrb[0].mxu0
        %2448 = vmatprep.mubr.bf16.mxu0 0
        %2449 = vmatmul.mubr.bf16.gmra.mrb[0].mxu0 %v1488
        %v2450 = vpop.f32.mrb[0].mxu0
        %v2451 = vadd.f32 0.0, %v2450
        %v2452 = vpop.f32.mrb[0].mxu0
        %v2453 = vpop.f32.mrb[0].mxu0
        %v2454 = vadd.f32 0.0, %v2453
        %v2455 = vpop.f32.mrb[0].mxu0
        %2456 = vmatprep.mubr.bf16.mxu0 0
        %2457 = vmatmul.mubr.bf16.gmra.mrb[0].mxu0 %v1489
        %v2458 = vpop.f32.mrb[0].mxu0
        %v2459 = vpop.f32.mrb[0].mxu0
        %v2460 = vpop.f32.mrb[0].mxu0
        %v2461 = vadd.f32 0.0, %v2460
        %v2462 = vpop.f32.mrb[0].mxu0
        %2463 = vmatprep.mubr.bf16.mxu0 0
        %2464 = vmatmul.mubr.bf16.gmra.mrb[0].mxu0 %v1490
        %v2465 = vpop.f32.mrb[0].mxu0
        %v2466 = vadd.f32 0.0, %v2465
        %v2467 = vpop.f32.mrb[0].mxu0
        %v2468 = vpop.f32.mrb[0].mxu0
        %v2469 = vpop.f32.mrb[0].mxu0
        %2470 = vmatprep.mubr.bf16.mxu0 0
        %2471 = vmatmul.mubr.bf16.gmra.mrb[0].mxu0 %v1491
        %v2472 = vpop.f32.mrb[0].mxu0
        %v2473 = vadd.f32 0.0, %v2472
        %v2474 = vpop.f32.mrb[0].mxu0
        %v2475 = vpop.f32.mrb[0].mxu0
        %v2476 = vadd.f32 0.0, %v2475
        %v2477 = vpop.f32.mrb[0].mxu0
        %2478 = vmatprep.mubr.bf16.mxu0 0
        %2479 = vmatmul.mubr.bf16.gmra.mrb[0].mxu0 %v1492
        %v2480 = vpop.f32.mrb[0].mxu0
        %v2481 = vpop.f32.mrb[0].mxu0
        %v2482 = vpop.f32.mrb[0].mxu0
        %v2483 = vadd.f32 0.0, %v2482
        %v2484 = vpop.f32.mrb[0].mxu0
        %2485 = vmatprep.mubr.bf16.mxu0 0
        %2486 = vmatmul.mubr.bf16.gmra.mrb[0].mxu0 %v2046
        %v2487 = vpop.f32.mrb[0].mxu0
        %v2488 = vadd.f32 0.0, %v2487
        %v2489 = vpop.f32.mrb[0].mxu0
        %v2490 = vpop.f32.mrb[0].mxu0
        %v2491 = vpop.f32.mrb[0].mxu0
        %2492 = vdwg.mxu0
        %v2493 = vadd.f32 %v2291, %v2407
        %v2494 = vadd.f32 %v2292, %v2410
        %v2495 = vadd.f32 %v2293, %v2417
        %v2496 = vadd.f32 %v2294, %v2422
        %v2497 = vadd.f32 %v2295, %v2429
        %v2498 = vadd.f32 %v2296, %v2432
        %v2499 = vadd.f32 %v2297, %v2439
        %v2500 = vadd.f32 %v2298, %v2444
        %v2501 = vadd.f32 %v2299, %v2451
        %v2502 = vadd.f32 %v2300, %v2454
        %v2503 = vadd.f32 %v2301, %v2461
        %v2504 = vadd.f32 %v2302, %v2466
        %v2505 = vadd.f32 %v2303, %v2473
        %v2506 = vadd.f32 %v2304, %v2476
        %v2507 = vadd.f32 %v2305, %v2483
        %v2508 = vadd.f32 %v2306, %v2488
        %v2509 = vld [vmem:[#allocation2 + $0x8] sm:$0xff]
        %v2510 = vld [vmem:[#allocation2 + $0x10] sm:$0xff]
        %v2511 = vld [vmem:[#allocation2 + $0x18] sm:$0xff]
        %v2512 = vld [vmem:[#allocation2 + $0x20] sm:$0xff]
        %v2513 = vld [vmem:[#allocation2 + $0x28] sm:$0xff]
        %v2514 = vld [vmem:[#allocation2 + $0x30] sm:$0xff]
        %v2515 = vld [vmem:[#allocation2 + $0x38] sm:$0xff]
        %v2516 = vld [vmem:[#allocation2 + $0x40] sm:$0xff]
        %v2517 = vld [vmem:[#allocation2 + $0x48] sm:$0xff]
        %v2518 = vld [vmem:[#allocation2 + $0x50] sm:$0xff]
        %v2519 = vld [vmem:[#allocation2 + $0x58] sm:$0xff]
        %v2520 = vld [vmem:[#allocation2 + $0x60] sm:$0xff]
        %v2521 = vld [vmem:[#allocation2 + $0x68] sm:$0x1]
        %s2522 = scalar_lea.vmem [#allocation8], 256
        %v2523 = vld [vmem:[%s2522] sm:$0xf]
        %v2524 = vld [vmem:[%s2522 + $0x4] sm:$0xf]
        %v2525 = vld [vmem:[%s2522 + $0x8] sm:$0xf]
        %v2526 = vld [vmem:[%s2522 + $0xc] sm:$0xf]
        %v2527 = vld [vmem:[%s2522 + $0x10] sm:$0xf]
        %v2528 = vld [vmem:[%s2522 + $0x14] sm:$0xf]
        %v2529 = vld [vmem:[%s2522 + $0x18] sm:$0xf]
        %v2530 = vld [vmem:[%s2522 + $0x1c] sm:$0xf]
        %v2531 = vld [vmem:[%s2522 + $0x20] sm:$0xf]
        %v2532 = vld [vmem:[%s2522 + $0x24] sm:$0xf]
        %v2533 = vld [vmem:[%s2522 + $0x28] sm:$0xf]
        %v2534 = vld [vmem:[%s2522 + $0x2c] sm:$0xf]
        %v2535 = vld [vmem:[%s2522 + $0x30] sm:$0xf]
        %v2536 = vld [vmem:[%s2522 + $0x34] sm:$0xf]
        %v2537 = vld [vmem:[%s2522 + $0x38] sm:$0xf]
        %v2538 = vld [vmem:[%s2522 + $0x3c] sm:$0xf]
        %vm2539 = vsmask.f32 7424
        %v2541 = vshrl.u32 %v2509, 16
        %v2543 = vshll.u32 %v2509, 16
        %v2545 = vrot.slane %v2543, 1
        %v2546 = vor.u32 %v2541, %v2545
        %v2548 = vshll.u32 %v2510, 16
        %v2550 = vrot.slane %v2548, 1
        %v2551 = vsel %vm2539, %v2546, %v2550
        %v2552 = vshrl.u32 %v2510, 16
        %v2554 = vor.u32 %v2552, %v2550
        %v2556 = vshll.u32 %v2511, 16
        %v2558 = vrot.slane %v2556, 1
        %v2559 = vsel %vm2539, %v2554, %v2558
        %v2560 = vshrl.u32 %v2511, 16
        %v2562 = vor.u32 %v2560, %v2558
        %v2564 = vshll.u32 %v2512, 16
        %v2566 = vrot.slane %v2564, 1
        %v2567 = vsel %vm2539, %v2562, %v2566
        %v2568 = vshrl.u32 %v2512, 16
        %v2570 = vor.u32 %v2568, %v2566
        %v2572 = vshll.u32 %v2513, 16
        %v2574 = vrot.slane %v2572, 1
        %v2575 = vsel %vm2539, %v2570, %v2574
        %v2576 = vshrl.u32 %v2513, 16
        %v2578 = vor.u32 %v2576, %v2574
        %v2580 = vshll.u32 %v2514, 16
        %v2582 = vrot.slane %v2580, 1
        %v2583 = vsel %vm2539, %v2578, %v2582
        %v2584 = vshrl.u32 %v2514, 16
        %v2586 = vor.u32 %v2584, %v2582
        %v2588 = vshll.u32 %v2515, 16
        %v2590 = vrot.slane %v2588, 1
        %v2591 = vsel %vm2539, %v2586, %v2590
        %v2592 = vshrl.u32 %v2515, 16
        %v2594 = vor.u32 %v2592, %v2590
        %v2596 = vshll.u32 %v2516, 16
        %v2598 = vrot.slane %v2596, 1
        %v2599 = vsel %vm2539, %v2594, %v2598
        %v2600 = vshrl.u32 %v2516, 16
        %v2602 = vor.u32 %v2600, %v2598
        %v2604 = vshll.u32 %v2517, 16
        %v2606 = vrot.slane %v2604, 1
        %v2607 = vsel %vm2539, %v2602, %v2606
        %v2608 = vshrl.u32 %v2517, 16
        %v2610 = vor.u32 %v2608, %v2606
        %v2612 = vshll.u32 %v2518, 16
        %v2614 = vrot.slane %v2612, 1
        %v2615 = vsel %vm2539, %v2610, %v2614
        %v2616 = vshrl.u32 %v2518, 16
        %v2618 = vor.u32 %v2616, %v2614
        %v2620 = vshll.u32 %v2519, 16
        %v2622 = vrot.slane %v2620, 1
        %v2623 = vsel %vm2539, %v2618, %v2622
        %v2624 = vshrl.u32 %v2519, 16
        %v2626 = vor.u32 %v2624, %v2622
        %v2628 = vshll.u32 %v2520, 16
        %v2630 = vrot.slane %v2628, 1
        %v2631 = vsel %vm2539, %v2626, %v2630
        %v2632 = vshrl.u32 %v2520, 16
        %v2634 = vor.u32 %v2632, %v2630
        %v2636 = vshll.u32 %v2521, 16
        %v2638 = vrot.slane %v2636, 1
        %v2639 = vsel %vm2539, %v2634, %v2638
        %v2668 = vunpack.c.l.b16 %v2523
        %v2669 = vunpack.c.l.b16 %v2524
        %v2670 = vunpack.c.l.b16 %v2525
        %v2671 = vunpack.c.l.b16 %v2526
        %v2672 = vunpack.c.l.b16 %v2527
        %v2673 = vunpack.c.l.b16 %v2528
        %v2674 = vunpack.c.l.b16 %v2529
        %v2675 = vunpack.c.l.b16 %v2530
        %v2676 = vunpack.c.l.b16 %v2531
        %v2677 = vunpack.c.l.b16 %v2532
        %v2678 = vunpack.c.l.b16 %v2533
        %v2679 = vunpack.c.l.b16 %v2534
        %v2680 = vunpack.c.l.b16 %v2535
        %v2681 = vunpack.c.l.b16 %v2536
        %v2682 = vunpack.c.l.b16 %v2537
        %v2683 = vunpack.c.l.b16 %v2538
        %v2684 = vpack.c.b16 %v2669, %v2668
        %v2685 = vpack.c.b16 %v2671, %v2670
        %v2686 = vpack.c.b16 %v2673, %v2672
        %v2687 = vpack.c.b16 %v2675, %v2674
        %v2688 = vpack.c.b16 %v2677, %v2676
        %v2689 = vpack.c.b16 %v2679, %v2678
        %v2690 = vpack.c.b16 %v2681, %v2680
        %v2691 = vpack.c.b16 %v2683, %v2682
        %2700 = vmatprep.subr.bf16.mxu0 0
        %2701 = vmatpush1.bf16.msra.mxu0 %v2684
        %2702 = vmatprep.subr.bf16.mxu0 0
        %2703 = vmatpush1.bf16.msra.mxu0 %v2685
        %2704 = vmatprep.subr.bf16.mxu0 0
        %2705 = vmatpush1.bf16.msra.mxu0 %v2686
        %2706 = vmatprep.subr.bf16.mxu0 0
        %2707 = vmatpush1.bf16.msra.mxu0 %v2687
        %2708 = vmatprep.subr.bf16.mxu0 0
        %2709 = vmatpush1.bf16.msra.mxu0 %v2688
        %2710 = vmatprep.subr.bf16.mxu0 0
        %2711 = vmatpush1.bf16.msra.mxu0 %v2689
        %2712 = vmatprep.subr.bf16.mxu0 0
        %2713 = vmatpush1.bf16.msra.mxu0 %v2690
        %2714 = vmatprep.subr.bf16.mxu0 0
        %2715 = vmatpush1.bf16.msra.mxu0 %v2691
        %2716 = vmatprep.subr.bf16.mxu0 0
        %2717 = vmatpush1.bf16.msra.mxu0 0
        %2718 = vmatprep.subr.bf16.mxu0 0
        %2719 = vmatpush1.bf16.msra.mxu0 0
        %2720 = vmatprep.subr.bf16.mxu0 0
        %2721 = vmatpush1.bf16.msra.mxu0 0
        %2722 = vmatprep.subr.bf16.mxu0 0
        %2723 = vmatpush1.bf16.msra.mxu0 0
        %2724 = vmatprep.subr.bf16.mxu0 0
        %2725 = vmatpush1.bf16.msra.mxu0 0
        %2726 = vmatprep.subr.bf16.mxu0 0
        %2727 = vmatpush1.bf16.msra.mxu0 0
        %2728 = vmatprep.subr.bf16.mxu0 0
        %2729 = vmatpush1.bf16.msra.mxu0 0
        %2730 = vmatprep.subr.bf16.mxu0 0
        %2731 = vmatpush1.bf16.msra.mxu0 0
        %2732 = vmatprep.mubr.bf16.mxu0 0
        %2733 = vmatmul.mubr.bf16.gmra.mrb[0].mxu0 %v2551
        %v2734 = vpop.f32.mrb[0].mxu0
        %v2735 = vadd.f32 0.0, %v2734
        %v2736 = vpop.f32.mrb[0].mxu0
        %v2737 = vpop.f32.mrb[0].mxu0
        %v2738 = vadd.f32 0.0, %v2737
        %v2739 = vpop.f32.mrb[0].mxu0
        %2740 = vmatprep.mubr.bf16.mxu0 0
        %2741 = vmatmul.mubr.bf16.gmra.mrb[0].mxu0 %v2559
        %v2742 = vpop.f32.mrb[0].mxu0
        %v2743 = vpop.f32.mrb[0].mxu0
        %v2744 = vpop.f32.mrb[0].mxu0
        %v2745 = vadd.f32 0.0, %v2744
        %v2746 = vpop.f32.mrb[0].mxu0
        %2747 = vmatprep.mubr.bf16.mxu0 0
        %2748 = vmatmul.mubr.bf16.gmra.mrb[0].mxu0 %v2567
        %v2749 = vpop.f32.mrb[0].mxu0
        %v2750 = vadd.f32 0.0, %v2749
        %v2751 = vpop.f32.mrb[0].mxu0
        %v2752 = vpop.f32.mrb[0].mxu0
        %v2753 = vpop.f32.mrb[0].mxu0
        %2754 = vmatprep.mubr.bf16.mxu0 0
        %2755 = vmatmul.mubr.bf16.gmra.mrb[0].mxu0 %v2575
        %v2756 = vpop.f32.mrb[0].mxu0
        %v2757 = vadd.f32 0.0, %v2756
        %v2758 = vpop.f32.mrb[0].mxu0
        %v2759 = vpop.f32.mrb[0].mxu0
        %v2760 = vadd.f32 0.0, %v2759
        %v2761 = vpop.f32.mrb[0].mxu0
        %2762 = vmatprep.mubr.bf16.mxu0 0
        %2763 = vmatmul.mubr.bf16.gmra.mrb[0].mxu0 %v2583
        %v2764 = vpop.f32.mrb[0].mxu0
        %v2765 = vpop.f32.mrb[0].mxu0
        %v2766 = vpop.f32.mrb[0].mxu0
        %v2767 = vadd.f32 0.0, %v2766
        %v2768 = vpop.f32.mrb[0].mxu0
        %2769 = vmatprep.mubr.bf16.mxu0 0
        %2770 = vmatmul.mubr.bf16.gmra.mrb[0].mxu0 %v2591
        %v2771 = vpop.f32.mrb[0].mxu0
        %v2772 = vadd.f32 0.0, %v2771
        %v2773 = vpop.f32.mrb[0].mxu0
        %v2774 = vpop.f32.mrb[0].mxu0
        %v2775 = vpop.f32.mrb[0].mxu0
        %2776 = vmatprep.mubr.bf16.mxu0 0
        %2777 = vmatmul.mubr.bf16.gmra.mrb[0].mxu0 %v2599
        %v2778 = vpop.f32.mrb[0].mxu0
        %v2779 = vadd.f32 0.0, %v2778
        %v2780 = vpop.f32.mrb[0].mxu0
        %v2781 = vpop.f32.mrb[0].mxu0
        %v2782 = vadd.f32 0.0, %v2781
        %v2783 = vpop.f32.mrb[0].mxu0
        %2784 = vmatprep.mubr.bf16.mxu0 0
        %2785 = vmatmul.mubr.bf16.gmra.mrb[0].mxu0 %v2607
        %v2786 = vpop.f32.mrb[0].mxu0
        %v2787 = vpop.f32.mrb[0].mxu0
        %v2788 = vpop.f32.mrb[0].mxu0
        %v2789 = vadd.f32 0.0, %v2788
        %v2790 = vpop.f32.mrb[0].mxu0
        %2791 = vmatprep.mubr.bf16.mxu0 0
        %2792 = vmatmul.mubr.bf16.gmra.mrb[0].mxu0 %v2615
        %v2793 = vpop.f32.mrb[0].mxu0
        %v2794 = vadd.f32 0.0, %v2793
        %v2795 = vpop.f32.mrb[0].mxu0
        %v2796 = vpop.f32.mrb[0].mxu0
        %v2797 = vpop.f32.mrb[0].mxu0
        %2798 = vmatprep.mubr.bf16.mxu0 0
        %2799 = vmatmul.mubr.bf16.gmra.mrb[0].mxu0 %v2623
        %v2800 = vpop.f32.mrb[0].mxu0
        %v2801 = vadd.f32 0.0, %v2800
        %v2802 = vpop.f32.mrb[0].mxu0
        %v2803 = vpop.f32.mrb[0].mxu0
        %v2804 = vadd.f32 0.0, %v2803
        %v2805 = vpop.f32.mrb[0].mxu0
        %2806 = vmatprep.mubr.bf16.mxu0 0
        %2807 = vmatmul.mubr.bf16.gmra.mrb[0].mxu0 %v2631
        %v2808 = vpop.f32.mrb[0].mxu0
        %v2809 = vpop.f32.mrb[0].mxu0
        %v2810 = vpop.f32.mrb[0].mxu0
        %v2811 = vadd.f32 0.0, %v2810
        %v2812 = vpop.f32.mrb[0].mxu0
        %2813 = vmatprep.mubr.bf16.mxu0 0
        %2814 = vmatmul.mubr.bf16.gmra.mrb[0].mxu0 %v2639
        %v2815 = vpop.f32.mrb[0].mxu0
        %v2816 = vadd.f32 0.0, %v2815
        %v2817 = vpop.f32.mrb[0].mxu0
        %v2818 = vpop.f32.mrb[0].mxu0
        %v2819 = vpop.f32.mrb[0].mxu0
        %2820 = vdwg.mxu0
        %v2821 = vadd.f32 %v2493, %v2735
        %v2822 = vadd.f32 %v2494, %v2738
        %v2823 = vadd.f32 %v2495, %v2745
        %v2824 = vadd.f32 %v2496, %v2750
        %v2825 = vadd.f32 %v2497, %v2757
        %v2826 = vadd.f32 %v2498, %v2760
        %v2827 = vadd.f32 %v2499, %v2767
        %v2828 = vadd.f32 %v2500, %v2772
        %v2829 = vadd.f32 %v2501, %v2779
        %v2830 = vadd.f32 %v2502, %v2782
        %v2831 = vadd.f32 %v2503, %v2789
        %v2832 = vadd.f32 %v2504, %v2794
        %v2833 = vadd.f32 %v2505, %v2801
        %v2834 = vadd.f32 %v2506, %v2804
        %v2835 = vadd.f32 %v2507, %v2811
        %v2836 = vadd.f32 %v2508, %v2816
        %v2837 = vld [vmem:[#allocation2 + $0x8] sm:$0xfe]
        %s2838 = scalar_lea.vmem [#allocation8], 320
        %v2839 = vld [vmem:[%s2838] sm:$0xf]
        %v2840 = vld [vmem:[%s2838 + $0x4] sm:$0xf]
        %v2841 = vld [vmem:[%s2838 + $0x8] sm:$0xf]
        %v2842 = vld [vmem:[%s2838 + $0xc] sm:$0xf]
        %v2843 = vld [vmem:[%s2838 + $0x10] sm:$0xf]
        %v2844 = vld [vmem:[%s2838 + $0x14] sm:$0xf]
        %v2845 = vld [vmem:[%s2838 + $0x18] sm:$0xf]
        %v2846 = vld [vmem:[%s2838 + $0x1c] sm:$0xf]
        %v2847 = vld [vmem:[%s2838 + $0x20] sm:$0xf]
        %v2848 = vld [vmem:[%s2838 + $0x24] sm:$0xf]
        %v2849 = vld [vmem:[%s2838 + $0x28] sm:$0xf]
        %v2850 = vld [vmem:[%s2838 + $0x2c] sm:$0xf]
        %v2851 = vld [vmem:[%s2838 + $0x30] sm:$0xf]
        %v2852 = vld [vmem:[%s2838 + $0x34] sm:$0xf]
        %v2853 = vld [vmem:[%s2838 + $0x38] sm:$0xf]
        %v2854 = vld [vmem:[%s2838 + $0x3c] sm:$0xf]
        %vm2868 = vcmask 1046528
        %v2869 = vrot.slane %v2837, 1
        %v2870 = vrot.slane %v2510, 1
        %v2871 = vsel %vm2868, %v2869, %v2870
        %v2872 = vrot.slane %v2511, 1
        %v2873 = vsel %vm2868, %v2870, %v2872
        %v2874 = vrot.slane %v2512, 1
        %v2875 = vsel %vm2868, %v2872, %v2874
        %v2876 = vrot.slane %v2513, 1
        %v2877 = vsel %vm2868, %v2874, %v2876
        %v2878 = vrot.slane %v2514, 1
        %v2879 = vsel %vm2868, %v2876, %v2878
        %v2880 = vrot.slane %v2515, 1
        %v2881 = vsel %vm2868, %v2878, %v2880
        %v2882 = vrot.slane %v2516, 1
        %v2883 = vsel %vm2868, %v2880, %v2882
        %v2884 = vrot.slane %v2517, 1
        %v2885 = vsel %vm2868, %v2882, %v2884
        %v2886 = vrot.slane %v2518, 1
        %v2887 = vsel %vm2868, %v2884, %v2886
        %v2888 = vrot.slane %v2519, 1
        %v2889 = vsel %vm2868, %v2886, %v2888
        %v2890 = vrot.slane %v2520, 1
        %v2891 = vsel %vm2868, %v2888, %v2890
        %v2892 = vrot.slane %v2521, 1
        %v2893 = vsel %vm2868, %v2890, %v2892
        %v2922 = vunpack.c.l.b16 %v2839
        %v2923 = vunpack.c.l.b16 %v2840
        %v2924 = vunpack.c.l.b16 %v2841
        %v2925 = vunpack.c.l.b16 %v2842
        %v2926 = vunpack.c.l.b16 %v2843
        %v2927 = vunpack.c.l.b16 %v2844
        %v2928 = vunpack.c.l.b16 %v2845
        %v2929 = vunpack.c.l.b16 %v2846
        %v2930 = vunpack.c.l.b16 %v2847
        %v2931 = vunpack.c.l.b16 %v2848
        %v2932 = vunpack.c.l.b16 %v2849
        %v2933 = vunpack.c.l.b16 %v2850
        %v2934 = vunpack.c.l.b16 %v2851
        %v2935 = vunpack.c.l.b16 %v2852
        %v2936 = vunpack.c.l.b16 %v2853
        %v2937 = vunpack.c.l.b16 %v2854
        %v2938 = vpack.c.b16 %v2923, %v2922
        %v2939 = vpack.c.b16 %v2925, %v2924
        %v2940 = vpack.c.b16 %v2927, %v2926
        %v2941 = vpack.c.b16 %v2929, %v2928
        %v2942 = vpack.c.b16 %v2931, %v2930
        %v2943 = vpack.c.b16 %v2933, %v2932
        %v2944 = vpack.c.b16 %v2935, %v2934
        %v2945 = vpack.c.b16 %v2937, %v2936
        %2954 = vmatprep.subr.bf16.mxu0 0
        %2955 = vmatpush1.bf16.msra.mxu0 %v2938
        %2956 = vmatprep.subr.bf16.mxu0 0
        %2957 = vmatpush1.bf16.msra.mxu0 %v2939
        %2958 = vmatprep.subr.bf16.mxu0 0
        %2959 = vmatpush1.bf16.msra.mxu0 %v2940
        %2960 = vmatprep.subr.bf16.mxu0 0
        %2961 = vmatpush1.bf16.msra.mxu0 %v2941
        %2962 = vmatprep.subr.bf16.mxu0 0
        %2963 = vmatpush1.bf16.msra.mxu0 %v2942
        %2964 = vmatprep.subr.bf16.mxu0 0
        %2965 = vmatpush1.bf16.msra.mxu0 %v2943
        %2966 = vmatprep.subr.bf16.mxu0 0
        %2967 = vmatpush1.bf16.msra.mxu0 %v2944
        %2968 = vmatprep.subr.bf16.mxu0 0
        %2969 = vmatpush1.bf16.msra.mxu0 %v2945
        %2970 = vmatprep.subr.bf16.mxu0 0
        %2971 = vmatpush1.bf16.msra.mxu0 0
        %2972 = vmatprep.subr.bf16.mxu0 0
        %2973 = vmatpush1.bf16.msra.mxu0 0
        %2974 = vmatprep.subr.bf16.mxu0 0
        %2975 = vmatpush1.bf16.msra.mxu0 0
        %2976 = vmatprep.subr.bf16.mxu0 0
        %2977 = vmatpush1.bf16.msra.mxu0 0
        %2978 = vmatprep.subr.bf16.mxu0 0
        %2979 = vmatpush1.bf16.msra.mxu0 0
        %2980 = vmatprep.subr.bf16.mxu0 0
        %2981 = vmatpush1.bf16.msra.mxu0 0
        %2982 = vmatprep.subr.bf16.mxu0 0
        %2983 = vmatpush1.bf16.msra.mxu0 0
        %2984 = vmatprep.subr.bf16.mxu0 0
        %2985 = vmatpush1.bf16.msra.mxu0 0
        %2986 = vmatprep.mubr.bf16.mxu0 0
        %2987 = vmatmul.mubr.bf16.gmra.mrb[0].mxu0 %v2871
        %v2988 = vpop.f32.mrb[0].mxu0
        %v2989 = vadd.f32 0.0, %v2988
        %v2990 = vpop.f32.mrb[0].mxu0
        %v2991 = vpop.f32.mrb[0].mxu0
        %v2992 = vadd.f32 0.0, %v2991
        %v2993 = vpop.f32.mrb[0].mxu0
        %2994 = vmatprep.mubr.bf16.mxu0 0
        %2995 = vmatmul.mubr.bf16.gmra.mrb[0].mxu0 %v2873
        %v2996 = vpop.f32.mrb[0].mxu0
        %v2997 = vpop.f32.mrb[0].mxu0
        %v2998 = vpop.f32.mrb[0].mxu0
        %v2999 = vadd.f32 0.0, %v2998
        %v3000 = vpop.f32.mrb[0].mxu0
        %3001 = vmatprep.mubr.bf16.mxu0 0
        %3002 = vmatmul.mubr.bf16.gmra.mrb[0].mxu0 %v2875
        %v3003 = vpop.f32.mrb[0].mxu0
        %v3004 = vadd.f32 0.0, %v3003
        %v3005 = vpop.f32.mrb[0].mxu0
        %v3006 = vpop.f32.mrb[0].mxu0
        %v3007 = vpop.f32.mrb[0].mxu0
        %3008 = vmatprep.mubr.bf16.mxu0 0
        %3009 = vmatmul.mubr.bf16.gmra.mrb[0].mxu0 %v2877
        %v3010 = vpop.f32.mrb[0].mxu0
        %v3011 = vadd.f32 0.0, %v3010
        %v3012 = vpop.f32.mrb[0].mxu0
        %v3013 = vpop.f32.mrb[0].mxu0
        %v3014 = vadd.f32 0.0, %v3013
        %v3015 = vpop.f32.mrb[0].mxu0
        %3016 = vmatprep.mubr.bf16.mxu0 0
        %3017 = vmatmul.mubr.bf16.gmra.mrb[0].mxu0 %v2879
        %v3018 = vpop.f32.mrb[0].mxu0
        %v3019 = vpop.f32.mrb[0].mxu0
        %v3020 = vpop.f32.mrb[0].mxu0
        %v3021 = vadd.f32 0.0, %v3020
        %v3022 = vpop.f32.mrb[0].mxu0
        %3023 = vmatprep.mubr.bf16.mxu0 0
        %3024 = vmatmul.mubr.bf16.gmra.mrb[0].mxu0 %v2881
        %v3025 = vpop.f32.mrb[0].mxu0
        %v3026 = vadd.f32 0.0, %v3025
        %v3027 = vpop.f32.mrb[0].mxu0
        %v3028 = vpop.f32.mrb[0].mxu0
        %v3029 = vpop.f32.mrb[0].mxu0
        %3030 = vmatprep.mubr.bf16.mxu0 0
        %3031 = vmatmul.mubr.bf16.gmra.mrb[0].mxu0 %v2883
        %v3032 = vpop.f32.mrb[0].mxu0
        %v3033 = vadd.f32 0.0, %v3032
        %v3034 = vpop.f32.mrb[0].mxu0
        %v3035 = vpop.f32.mrb[0].mxu0
        %v3036 = vadd.f32 0.0, %v3035
        %v3037 = vpop.f32.mrb[0].mxu0
        %3038 = vmatprep.mubr.bf16.mxu0 0
        %3039 = vmatmul.mubr.bf16.gmra.mrb[0].mxu0 %v2885
        %v3040 = vpop.f32.mrb[0].mxu0
        %v3041 = vpop.f32.mrb[0].mxu0
        %v3042 = vpop.f32.mrb[0].mxu0
        %v3043 = vadd.f32 0.0, %v3042
        %v3044 = vpop.f32.mrb[0].mxu0
        %3045 = vmatprep.mubr.bf16.mxu0 0
        %3046 = vmatmul.mubr.bf16.gmra.mrb[0].mxu0 %v2887
        %v3047 = vpop.f32.mrb[0].mxu0
        %v3048 = vadd.f32 0.0, %v3047
        %v3049 = vpop.f32.mrb[0].mxu0
        %v3050 = vpop.f32.mrb[0].mxu0
        %v3051 = vpop.f32.mrb[0].mxu0
        %3052 = vmatprep.mubr.bf16.mxu0 0
        %3053 = vmatmul.mubr.bf16.gmra.mrb[0].mxu0 %v2889
        %v3054 = vpop.f32.mrb[0].mxu0
        %v3055 = vadd.f32 0.0, %v3054
        %v3056 = vpop.f32.mrb[0].mxu0
        %v3057 = vpop.f32.mrb[0].mxu0
        %v3058 = vadd.f32 0.0, %v3057
        %v3059 = vpop.f32.mrb[0].mxu0
        %3060 = vmatprep.mubr.bf16.mxu0 0
        %3061 = vmatmul.mubr.bf16.gmra.mrb[0].mxu0 %v2891
        %v3062 = vpop.f32.mrb[0].mxu0
        %v3063 = vpop.f32.mrb[0].mxu0
        %v3064 = vpop.f32.mrb[0].mxu0
        %v3065 = vadd.f32 0.0, %v3064
        %v3066 = vpop.f32.mrb[0].mxu0
        %3067 = vmatprep.mubr.bf16.mxu0 0
        %3068 = vmatmul.mubr.bf16.gmra.mrb[0].mxu0 %v2893
        %v3069 = vpop.f32.mrb[0].mxu0
        %v3070 = vadd.f32 0.0, %v3069
        %v3071 = vpop.f32.mrb[0].mxu0
        %v3072 = vpop.f32.mrb[0].mxu0
        %v3073 = vpop.f32.mrb[0].mxu0
        %3074 = vdwg.mxu0
        %v3075 = vadd.f32 %v2821, %v2989
        %v3076 = vadd.f32 %v2822, %v2992
        %v3077 = vadd.f32 %v2823, %v2999
        %v3078 = vadd.f32 %v2824, %v3004
        %v3079 = vadd.f32 %v2825, %v3011
        %v3080 = vadd.f32 %v2826, %v3014
        %v3081 = vadd.f32 %v2827, %v3021
        %v3082 = vadd.f32 %v2828, %v3026
        %v3083 = vadd.f32 %v2829, %v3033
        %v3084 = vadd.f32 %v2830, %v3036
        %v3085 = vadd.f32 %v2831, %v3043
        %v3086 = vadd.f32 %v2832, %v3048
        %v3087 = vadd.f32 %v2833, %v3055
        %v3088 = vadd.f32 %v2834, %v3058
        %v3089 = vadd.f32 %v2835, %v3065
        %v3090 = vadd.f32 %v2836, %v3070
        %v3091 = vld [vmem:[#allocation2 + $0x68] sm:$0x3]
        %s3092 = scalar_lea.vmem [#allocation8], 384
        %v3093 = vld [vmem:[%s3092] sm:$0xf]
        %v3094 = vld [vmem:[%s3092 + $0x4] sm:$0xf]
        %v3095 = vld [vmem:[%s3092 + $0x8] sm:$0xf]
        %v3096 = vld [vmem:[%s3092 + $0xc] sm:$0xf]
        %v3097 = vld [vmem:[%s3092 + $0x10] sm:$0xf]
        %v3098 = vld [vmem:[%s3092 + $0x14] sm:$0xf]
        %v3099 = vld [vmem:[%s3092 + $0x18] sm:$0xf]
        %v3100 = vld [vmem:[%s3092 + $0x1c] sm:$0xf]
        %v3101 = vld [vmem:[%s3092 + $0x20] sm:$0xf]
        %v3102 = vld [vmem:[%s3092 + $0x24] sm:$0xf]
        %v3103 = vld [vmem:[%s3092 + $0x28] sm:$0xf]
        %v3104 = vld [vmem:[%s3092 + $0x2c] sm:$0xf]
        %v3105 = vld [vmem:[%s3092 + $0x30] sm:$0xf]
        %v3106 = vld [vmem:[%s3092 + $0x34] sm:$0xf]
        %v3107 = vld [vmem:[%s3092 + $0x38] sm:$0xf]
        %v3108 = vld [vmem:[%s3092 + $0x3c] sm:$0xf]
        %vm3109 = vsmask.f32 6400
        %v3111 = vshrl.u32 %v2837, 16
        %v3113 = vrot.slane %v3111, 1
        %v3114 = vshll.u32 %v2837, 16
        %v3116 = vrot.slane %v3114, 2
        %v3117 = vor.u32 %v3113, %v3116
        %v3118 = vrot.slane %v2552, 1
        %v3119 = vrot.slane %v2548, 2
        %v3120 = vor.u32 %v3118, %v3119
        %v3121 = vsel %vm3109, %v3117, %v3120
        %v3122 = vrot.slane %v2560, 1
        %v3123 = vrot.slane %v2556, 2
        %v3124 = vor.u32 %v3122, %v3123
        %v3125 = vsel %vm3109, %v3120, %v3124
        %v3126 = vrot.slane %v2568, 1
        %v3127 = vrot.slane %v2564, 2
        %v3128 = vor.u32 %v3126, %v3127
        %v3129 = vsel %vm3109, %v3124, %v3128
        %v3130 = vrot.slane %v2576, 1
        %v3131 = vrot.slane %v2572, 2
        %v3132 = vor.u32 %v3130, %v3131
        %v3133 = vsel %vm3109, %v3128, %v3132
        %v3134 = vrot.slane %v2584, 1
        %v3135 = vrot.slane %v2580, 2
        %v3136 = vor.u32 %v3134, %v3135
        %v3137 = vsel %vm3109, %v3132, %v3136
        %v3138 = vrot.slane %v2592, 1
        %v3139 = vrot.slane %v2588, 2
        %v3140 = vor.u32 %v3138, %v3139
        %v3141 = vsel %vm3109, %v3136, %v3140
        %v3142 = vrot.slane %v2600, 1
        %v3143 = vrot.slane %v2596, 2
        %v3144 = vor.u32 %v3142, %v3143
        %v3145 = vsel %vm3109, %v3140, %v3144
        %v3146 = vrot.slane %v2608, 1
        %v3147 = vrot.slane %v2604, 2
        %v3148 = vor.u32 %v3146, %v3147
        %v3149 = vsel %vm3109, %v3144, %v3148
        %v3150 = vrot.slane %v2616, 1
        %v3151 = vrot.slane %v2612, 2
        %v3152 = vor.u32 %v3150, %v3151
        %v3153 = vsel %vm3109, %v3148, %v3152
        %v3154 = vrot.slane %v2624, 1
        %v3155 = vrot.slane %v2620, 2
        %v3156 = vor.u32 %v3154, %v3155
        %v3157 = vsel %vm3109, %v3152, %v3156
        %v3158 = vrot.slane %v2632, 1
        %v3159 = vrot.slane %v2628, 2
        %v3160 = vor.u32 %v3158, %v3159
        %v3161 = vsel %vm3109, %v3156, %v3160
        %v3163 = vshrl.u32 %v3091, 16
        %v3165 = vrot.slane %v3163, 1
        %v3166 = vshll.u32 %v3091, 16
        %v3168 = vrot.slane %v3166, 2
        %v3169 = vor.u32 %v3165, %v3168
        %v3170 = vsel %vm3109, %v3160, %v3169
        %v3199 = vunpack.c.l.b16 %v3093
        %v3200 = vunpack.c.l.b16 %v3094
        %v3201 = vunpack.c.l.b16 %v3095
        %v3202 = vunpack.c.l.b16 %v3096
        %v3203 = vunpack.c.l.b16 %v3097
        %v3204 = vunpack.c.l.b16 %v3098
        %v3205 = vunpack.c.l.b16 %v3099
        %v3206 = vunpack.c.l.b16 %v3100
        %v3207 = vunpack.c.l.b16 %v3101
        %v3208 = vunpack.c.l.b16 %v3102
        %v3209 = vunpack.c.l.b16 %v3103
        %v3210 = vunpack.c.l.b16 %v3104
        %v3211 = vunpack.c.l.b16 %v3105
        %v3212 = vunpack.c.l.b16 %v3106
        %v3213 = vunpack.c.l.b16 %v3107
        %v3214 = vunpack.c.l.b16 %v3108
        %v3215 = vpack.c.b16 %v3200, %v3199
        %v3216 = vpack.c.b16 %v3202, %v3201
        %v3217 = vpack.c.b16 %v3204, %v3203
        %v3218 = vpack.c.b16 %v3206, %v3205
        %v3219 = vpack.c.b16 %v3208, %v3207
        %v3220 = vpack.c.b16 %v3210, %v3209
        %v3221 = vpack.c.b16 %v3212, %v3211
        %v3222 = vpack.c.b16 %v3214, %v3213
        %3231 = vmatprep.subr.bf16.mxu0 0
        %3232 = vmatpush1.bf16.msra.mxu0 %v3215
        %3233 = vmatprep.subr.bf16.mxu0 0
        %3234 = vmatpush1.bf16.msra.mxu0 %v3216
        %3235 = vmatprep.subr.bf16.mxu0 0
        %3236 = vmatpush1.bf16.msra.mxu0 %v3217
        %3237 = vmatprep.subr.bf16.mxu0 0
        %3238 = vmatpush1.bf16.msra.mxu0 %v3218
        %3239 = vmatprep.subr.bf16.mxu0 0
        %3240 = vmatpush1.bf16.msra.mxu0 %v3219
        %3241 = vmatprep.subr.bf16.mxu0 0
        %3242 = vmatpush1.bf16.msra.mxu0 %v3220
        %3243 = vmatprep.subr.bf16.mxu0 0
        %3244 = vmatpush1.bf16.msra.mxu0 %v3221
        %3245 = vmatprep.subr.bf16.mxu0 0
        %3246 = vmatpush1.bf16.msra.mxu0 %v3222
        %3247 = vmatprep.subr.bf16.mxu0 0
        %3248 = vmatpush1.bf16.msra.mxu0 0
        %3249 = vmatprep.subr.bf16.mxu0 0
        %3250 = vmatpush1.bf16.msra.mxu0 0
        %3251 = vmatprep.subr.bf16.mxu0 0
        %3252 = vmatpush1.bf16.msra.mxu0 0
        %3253 = vmatprep.subr.bf16.mxu0 0
        %3254 = vmatpush1.bf16.msra.mxu0 0
        %3255 = vmatprep.subr.bf16.mxu0 0
        %3256 = vmatpush1.bf16.msra.mxu0 0
        %3257 = vmatprep.subr.bf16.mxu0 0
        %3258 = vmatpush1.bf16.msra.mxu0 0
        %3259 = vmatprep.subr.bf16.mxu0 0
        %3260 = vmatpush1.bf16.msra.mxu0 0
        %3261 = vmatprep.subr.bf16.mxu0 0
        %3262 = vmatpush1.bf16.msra.mxu0 0
        %3263 = vmatprep.mubr.bf16.mxu0 0
        %3264 = vmatmul.mubr.bf16.gmra.mrb[0].mxu0 %v3121
        %v3265 = vpop.f32.mrb[0].mxu0
        %v3266 = vadd.f32 0.0, %v3265
        %v3267 = vpop.f32.mrb[0].mxu0
        %v3268 = vpop.f32.mrb[0].mxu0
        %v3269 = vadd.f32 0.0, %v3268
        %v3270 = vpop.f32.mrb[0].mxu0
        %3271 = vmatprep.mubr.bf16.mxu0 0
        %3272 = vmatmul.mubr.bf16.gmra.mrb[0].mxu0 %v3125
        %v3273 = vpop.f32.mrb[0].mxu0
        %v3274 = vpop.f32.mrb[0].mxu0
        %v3275 = vpop.f32.mrb[0].mxu0
        %v3276 = vadd.f32 0.0, %v3275
        %v3277 = vpop.f32.mrb[0].mxu0
        %3278 = vmatprep.mubr.bf16.mxu0 0
        %3279 = vmatmul.mubr.bf16.gmra.mrb[0].mxu0 %v3129
        %v3280 = vpop.f32.mrb[0].mxu0
        %v3281 = vadd.f32 0.0, %v3280
        %v3282 = vpop.f32.mrb[0].mxu0
        %v3283 = vpop.f32.mrb[0].mxu0
        %v3284 = vpop.f32.mrb[0].mxu0
        %3285 = vmatprep.mubr.bf16.mxu0 0
        %3286 = vmatmul.mubr.bf16.gmra.mrb[0].mxu0 %v3133
        %v3287 = vpop.f32.mrb[0].mxu0
        %v3288 = vadd.f32 0.0, %v3287
        %v3289 = vpop.f32.mrb[0].mxu0
        %v3290 = vpop.f32.mrb[0].mxu0
        %v3291 = vadd.f32 0.0, %v3290
        %v3292 = vpop.f32.mrb[0].mxu0
        %3293 = vmatprep.mubr.bf16.mxu0 0
        %3294 = vmatmul.mubr.bf16.gmra.mrb[0].mxu0 %v3137
        %v3295 = vpop.f32.mrb[0].mxu0
        %v3296 = vpop.f32.mrb[0].mxu0
        %v3297 = vpop.f32.mrb[0].mxu0
        %v3298 = vadd.f32 0.0, %v3297
        %v3299 = vpop.f32.mrb[0].mxu0
        %3300 = vmatprep.mubr.bf16.mxu0 0
        %3301 = vmatmul.mubr.bf16.gmra.mrb[0].mxu0 %v3141
        %v3302 = vpop.f32.mrb[0].mxu0
        %v3303 = vadd.f32 0.0, %v3302
        %v3304 = vpop.f32.mrb[0].mxu0
        %v3305 = vpop.f32.mrb[0].mxu0
        %v3306 = vpop.f32.mrb[0].mxu0
        %3307 = vmatprep.mubr.bf16.mxu0 0
        %3308 = vmatmul.mubr.bf16.gmra.mrb[0].mxu0 %v3145
        %v3309 = vpop.f32.mrb[0].mxu0
        %v3310 = vadd.f32 0.0, %v3309
        %v3311 = vpop.f32.mrb[0].mxu0
        %v3312 = vpop.f32.mrb[0].mxu0
        %v3313 = vadd.f32 0.0, %v3312
        %v3314 = vpop.f32.mrb[0].mxu0
        %3315 = vmatprep.mubr.bf16.mxu0 0
        %3316 = vmatmul.mubr.bf16.gmra.mrb[0].mxu0 %v3149
        %v3317 = vpop.f32.mrb[0].mxu0
        %v3318 = vpop.f32.mrb[0].mxu0
        %v3319 = vpop.f32.mrb[0].mxu0
        %v3320 = vadd.f32 0.0, %v3319
        %v3321 = vpop.f32.mrb[0].mxu0
        %3322 = vmatprep.mubr.bf16.mxu0 0
        %3323 = vmatmul.mubr.bf16.gmra.mrb[0].mxu0 %v3153
        %v3324 = vpop.f32.mrb[0].mxu0
        %v3325 = vadd.f32 0.0, %v3324
        %v3326 = vpop.f32.mrb[0].mxu0
        %v3327 = vpop.f32.mrb[0].mxu0
        %v3328 = vpop.f32.mrb[0].mxu0
        %3329 = vmatprep.mubr.bf16.mxu0 0
        %3330 = vmatmul.mubr.bf16.gmra.mrb[0].mxu0 %v3157
        %v3331 = vpop.f32.mrb[0].mxu0
        %v3332 = vadd.f32 0.0, %v3331
        %v3333 = vpop.f32.mrb[0].mxu0
        %v3334 = vpop.f32.mrb[0].mxu0
        %v3335 = vadd.f32 0.0, %v3334
        %v3336 = vpop.f32.mrb[0].mxu0
        %3337 = vmatprep.mubr.bf16.mxu0 0
        %3338 = vmatmul.mubr.bf16.gmra.mrb[0].mxu0 %v3161
        %v3339 = vpop.f32.mrb[0].mxu0
        %v3340 = vpop.f32.mrb[0].mxu0
        %v3341 = vpop.f32.mrb[0].mxu0
        %v3342 = vadd.f32 0.0, %v3341
        %v3343 = vpop.f32.mrb[0].mxu0
        %3344 = vmatprep.mubr.bf16.mxu0 0
        %3345 = vmatmul.mubr.bf16.gmra.mrb[0].mxu0 %v3170
        %v3346 = vpop.f32.mrb[0].mxu0
        %v3347 = vadd.f32 0.0, %v3346
        %v3348 = vpop.f32.mrb[0].mxu0
        %v3349 = vpop.f32.mrb[0].mxu0
        %v3350 = vpop.f32.mrb[0].mxu0
        %3351 = vdwg.mxu0
        %v3352 = vadd.f32 %v3075, %v3266
        %v3353 = vadd.f32 %v3076, %v3269
        %v3354 = vadd.f32 %v3077, %v3276
        %v3355 = vadd.f32 %v3078, %v3281
        %v3356 = vadd.f32 %v3079, %v3288
        %v3357 = vadd.f32 %v3080, %v3291
        %v3358 = vadd.f32 %v3081, %v3298
        %v3359 = vadd.f32 %v3082, %v3303
        %v3360 = vadd.f32 %v3083, %v3310
        %v3361 = vadd.f32 %v3084, %v3313
        %v3362 = vadd.f32 %v3085, %v3320
        %v3363 = vadd.f32 %v3086, %v3325
        %v3364 = vadd.f32 %v3087, %v3332
        %v3365 = vadd.f32 %v3088, %v3335
        %v3366 = vadd.f32 %v3089, %v3342
        %v3367 = vadd.f32 %v3090, %v3347
        %v3368 = vld [vmem:[%s6] sm:$0x1]
        %v3370 = vlaneseq
        %v3371 = vshrl.u32 %v3370, 7
        %v3372 = vsub.s32 0, %v3371
        %v3373 = vrot.slane %v3368, %v3372
        %v3375 = vadd.f32 %v3352, %v3373
        %v3376 = vadd.f32 %v3353, %v3373
        %v3377 = vadd.f32 %v3354, %v3373
        %v3378 = vadd.f32 %v3355, %v3373
        %v3379 = vadd.f32 %v3356, %v3373
        %v3380 = vadd.f32 %v3357, %v3373
        %v3381 = vadd.f32 %v3358, %v3373
        %v3382 = vadd.f32 %v3359, %v3373
        %v3383 = vadd.f32 %v3360, %v3373
        %v3384 = vadd.f32 %v3361, %v3373
        %v3385 = vadd.f32 %v3362, %v3373
        %v3386 = vadd.f32 %v3363, %v3373
        %v3387 = vadd.f32 %v3364, %v3373
        %v3388 = vadd.f32 %v3365, %v3373
        %v3389 = vadd.f32 %v3366, %v3373
        %v3390 = vadd.f32 %v3367, %v3373
        %v3391 = vmax.f32 %v3375, 0.0
        %v3392 = vmax.f32 %v3376, 0.0
        %v3393 = vmax.f32 %v3377, 0.0
        %v3394 = vmax.f32 %v3378, 0.0
        %v3395 = vmax.f32 %v3379, 0.0
        %v3396 = vmax.f32 %v3380, 0.0
        %v3397 = vmax.f32 %v3381, 0.0
        %v3398 = vmax.f32 %v3382, 0.0
        %v3399 = vmax.f32 %v3383, 0.0
        %v3400 = vmax.f32 %v3384, 0.0
        %v3401 = vmax.f32 %v3385, 0.0
        %v3402 = vmax.f32 %v3386, 0.0
        %v3403 = vmax.f32 %v3387, 0.0
        %v3404 = vmax.f32 %v3388, 0.0
        %v3405 = vmax.f32 %v3389, 0.0
        %v3406 = vmax.f32 %v3390, 0.0
        %v3407 = vld [vmem:[%s7] sm:$0x1]
        %v3409 = vlaneseq
        %v3410 = vshrl.u32 %v3409, 7
        %v3411 = vsub.s32 0, %v3410
        %v3412 = vrot.slane %v3407, %v3411
        %v3414 = vmul.f32 %v3391, %v3412
        %v3415 = vmul.f32 %v3392, %v3412
        %v3416 = vmul.f32 %v3393, %v3412
        %v3417 = vmul.f32 %v3394, %v3412
        %v3418 = vmul.f32 %v3395, %v3412
        %v3419 = vmul.f32 %v3396, %v3412
        %v3420 = vmul.f32 %v3397, %v3412
        %v3421 = vmul.f32 %v3398, %v3412
        %v3422 = vmul.f32 %v3399, %v3412
        %v3423 = vmul.f32 %v3400, %v3412
        %v3424 = vmul.f32 %v3401, %v3412
        %v3425 = vmul.f32 %v3402, %v3412
        %v3426 = vmul.f32 %v3403, %v3412
        %v3427 = vmul.f32 %v3404, %v3412
        %v3428 = vmul.f32 %v3405, %v3412
        %v3429 = vmul.f32 %v3406, %v3412
        %v3430 = vld [vmem:[%s8] sm:$0x1]
        %v3432 = vlaneseq
        %v3433 = vshrl.u32 %v3432, 7
        %v3434 = vsub.s32 0, %v3433
        %v3435 = vrot.slane %v3430, %v3434
        %v3437 = vadd.f32 %v3414, %v3435
        %v3438 = vadd.f32 %v3415, %v3435
        %v3439 = vadd.f32 %v3416, %v3435
        %v3440 = vadd.f32 %v3417, %v3435
        %v3441 = vadd.f32 %v3418, %v3435
        %v3442 = vadd.f32 %v3419, %v3435
        %v3443 = vadd.f32 %v3420, %v3435
        %v3444 = vadd.f32 %v3421, %v3435
        %v3445 = vadd.f32 %v3422, %v3435
        %v3446 = vadd.f32 %v3423, %v3435
        %v3447 = vadd.f32 %v3424, %v3435
        %v3448 = vadd.f32 %v3425, %v3435
        %v3449 = vadd.f32 %v3426, %v3435
        %v3450 = vadd.f32 %v3427, %v3435
        %v3451 = vadd.f32 %v3428, %v3435
        %v3452 = vadd.f32 %v3429, %v3435
        %v3453 = vpack.c.bf16 %v3438, %v3437
        %v3454 = vpack.c.bf16 %v3439, 0.0
        %v3455 = vpack.c.bf16 0.0, %v3440
        %v3456 = vpack.c.bf16 %v3442, %v3441
        %v3457 = vpack.c.bf16 %v3443, 0.0
        %v3458 = vpack.c.bf16 0.0, %v3444
        %v3459 = vpack.c.bf16 %v3446, %v3445
        %v3460 = vpack.c.bf16 %v3447, 0.0
        %v3461 = vpack.c.bf16 0.0, %v3448
        %v3462 = vpack.c.bf16 %v3450, %v3449
        %v3463 = vpack.c.bf16 %v3451, 0.0
        %v3464 = vpack.c.bf16 0.0, %v3452
        %3465 = vst [vmem:[#allocation2 + $0x8] sm:$0xff] %v3453
        %3466 = vst [vmem:[#allocation2 + $0x10] sm:$0xff] %v3454
        %3467 = vst [vmem:[#allocation2 + $0x18] sm:$0xff] %v3455
        %3468 = vst [vmem:[#allocation2 + $0x20] sm:$0xff] %v3456
        %3469 = vst [vmem:[#allocation2 + $0x28] sm:$0xff] %v3457
        %3470 = vst [vmem:[#allocation2 + $0x30] sm:$0xff] %v3458
        %3471 = vst [vmem:[#allocation2 + $0x38] sm:$0xff] %v3459
        %3472 = vst [vmem:[#allocation2 + $0x40] sm:$0xff] %v3460
        %3473 = vst [vmem:[#allocation2 + $0x48] sm:$0xff] %v3461
        %3474 = vst [vmem:[#allocation2 + $0x50] sm:$0xff] %v3462
        %3475 = vst [vmem:[#allocation2 + $0x58] sm:$0xff] %v3463
        %3476 = vst [vmem:[#allocation2 + $0x60] sm:$0xff] %v3464
        %v3477 = vld [vmem:[#allocation2] sm:$0xc0]
        %v3478 = vld [vmem:[#allocation2 + $0x8] sm:$0xff]
        %v3479 = vld [vmem:[#allocation2 + $0x10] sm:$0xff]
        %v3480 = vld [vmem:[#allocation2 + $0x18] sm:$0xff]
        %v3481 = vld [vmem:[#allocation2 + $0x20] sm:$0xff]
        %v3482 = vld [vmem:[#allocation2 + $0x28] sm:$0xff]
        %v3483 = vld [vmem:[#allocation2 + $0x30] sm:$0xff]
        %v3484 = vld [vmem:[#allocation2 + $0x38] sm:$0xff]
        %v3485 = vld [vmem:[#allocation2 + $0x40] sm:$0xff]
        %v3486 = vld [vmem:[#allocation2 + $0x48] sm:$0xff]
        %v3487 = vld [vmem:[#allocation2 + $0x50] sm:$0xff]
        %v3488 = vld [vmem:[#allocation2 + $0x58] sm:$0xff]
        %v3489 = vld [vmem:[#allocation2 + $0x60] sm:$0x7f]
        %v3490 = vld [vmem:[#allocation9] sm:$0xf]
        %v3491 = vld [vmem:[#allocation9 + $0x4] sm:$0xf]
        %v3492 = vld [vmem:[#allocation9 + $0x8] sm:$0xf]
        %v3493 = vld [vmem:[#allocation9 + $0xc] sm:$0xf]
        %v3494 = vld [vmem:[#allocation9 + $0x10] sm:$0xf]
        %v3495 = vld [vmem:[#allocation9 + $0x14] sm:$0xf]
        %v3496 = vld [vmem:[#allocation9 + $0x18] sm:$0xf]
        %v3497 = vld [vmem:[#allocation9 + $0x1c] sm:$0xf]
        %v3498 = vld [vmem:[#allocation9 + $0x20] sm:$0xf]
        %v3499 = vld [vmem:[#allocation9 + $0x24] sm:$0xf]
        %v3500 = vld [vmem:[#allocation9 + $0x28] sm:$0xf]
        %v3501 = vld [vmem:[#allocation9 + $0x2c] sm:$0xf]
        %v3502 = vld [vmem:[#allocation9 + $0x30] sm:$0xf]
        %v3503 = vld [vmem:[#allocation9 + $0x34] sm:$0xf]
        %v3504 = vld [vmem:[#allocation9 + $0x38] sm:$0xf]
        %v3505 = vld [vmem:[#allocation9 + $0x3c] sm:$0xf]
        %v3506 = vld [vmem:[#allocation2] sm:$0x80]
        %s3507 = scalar_lea.vmem [#allocation9], 64
        %v3508 = vld [vmem:[%s3507] sm:$0xf]
        %v3509 = vld [vmem:[%s3507 + $0x4] sm:$0xf]
        %v3510 = vld [vmem:[%s3507 + $0x8] sm:$0xf]
        %v3511 = vld [vmem:[%s3507 + $0xc] sm:$0xf]
        %v3512 = vld [vmem:[%s3507 + $0x10] sm:$0xf]
        %v3513 = vld [vmem:[%s3507 + $0x14] sm:$0xf]
        %v3514 = vld [vmem:[%s3507 + $0x18] sm:$0xf]
        %v3515 = vld [vmem:[%s3507 + $0x1c] sm:$0xf]
        %v3516 = vld [vmem:[%s3507 + $0x20] sm:$0xf]
        %v3517 = vld [vmem:[%s3507 + $0x24] sm:$0xf]
        %v3518 = vld [vmem:[%s3507 + $0x28] sm:$0xf]
        %v3519 = vld [vmem:[%s3507 + $0x2c] sm:$0xf]
        %v3520 = vld [vmem:[%s3507 + $0x30] sm:$0xf]
        %v3521 = vld [vmem:[%s3507 + $0x34] sm:$0xf]
        %v3522 = vld [vmem:[%s3507 + $0x38] sm:$0xf]
        %v3523 = vld [vmem:[%s3507 + $0x3c] sm:$0xf]
        %v3537 = vrot.slane %v3506, 7
        %v3538 = vrot.slane %v3478, 7
        %v3539 = vsel %vm1541, %v3537, %v3538
        %v3540 = vrot.slane %v3479, 7
        %v3541 = vsel %vm1541, %v3538, %v3540
        %v3542 = vrot.slane %v3480, 7
        %v3543 = vsel %vm1541, %v3540, %v3542
        %v3544 = vrot.slane %v3481, 7
        %v3545 = vsel %vm1541, %v3542, %v3544
        %v3546 = vrot.slane %v3482, 7
        %v3547 = vsel %vm1541, %v3544, %v3546
        %v3548 = vrot.slane %v3483, 7
        %v3549 = vsel %vm1541, %v3546, %v3548
        %v3550 = vrot.slane %v3484, 7
        %v3551 = vsel %vm1541, %v3548, %v3550
        %v3552 = vrot.slane %v3485, 7
        %v3553 = vsel %vm1541, %v3550, %v3552
        %v3554 = vrot.slane %v3486, 7
        %v3555 = vsel %vm1541, %v3552, %v3554
        %v3556 = vrot.slane %v3487, 7
        %v3557 = vsel %vm1541, %v3554, %v3556
        %v3558 = vrot.slane %v3488, 7
        %v3559 = vsel %vm1541, %v3556, %v3558
        %v3560 = vrot.slane %v3489, 7
        %v3561 = vsel %vm1541, %v3558, %v3560
        %v3590 = vunpack.c.l.b16 %v3508
        %v3591 = vunpack.c.l.b16 %v3509
        %v3592 = vunpack.c.l.b16 %v3510
        %v3593 = vunpack.c.l.b16 %v3511
        %v3594 = vunpack.c.l.b16 %v3512
        %v3595 = vunpack.c.l.b16 %v3513
        %v3596 = vunpack.c.l.b16 %v3514
        %v3597 = vunpack.c.l.b16 %v3515
        %v3598 = vunpack.c.l.b16 %v3516
        %v3599 = vunpack.c.l.b16 %v3517
        %v3600 = vunpack.c.l.b16 %v3518
        %v3601 = vunpack.c.l.b16 %v3519
        %v3602 = vunpack.c.l.b16 %v3520
        %v3603 = vunpack.c.l.b16 %v3521
        %v3604 = vunpack.c.l.b16 %v3522
        %v3605 = vunpack.c.l.b16 %v3523
        %v3606 = vpack.c.b16 %v3591, %v3590
        %v3607 = vpack.c.b16 %v3593, %v3592
        %v3608 = vpack.c.b16 %v3595, %v3594
        %v3609 = vpack.c.b16 %v3597, %v3596
        %v3610 = vpack.c.b16 %v3599, %v3598
        %v3611 = vpack.c.b16 %v3601, %v3600
        %v3612 = vpack.c.b16 %v3603, %v3602
        %v3613 = vpack.c.b16 %v3605, %v3604
        %3622 = vmatprep.subr.bf16.mxu0 0
        %3623 = vmatpush1.bf16.msra.mxu0 %v3606
        %3624 = vmatprep.subr.bf16.mxu0 0
        %3625 = vmatpush1.bf16.msra.mxu0 %v3607
        %3626 = vmatprep.subr.bf16.mxu0 0
        %3627 = vmatpush1.bf16.msra.mxu0 %v3608
        %3628 = vmatprep.subr.bf16.mxu0 0
        %3629 = vmatpush1.bf16.msra.mxu0 %v3609
        %3630 = vmatprep.subr.bf16.mxu0 0
        %3631 = vmatpush1.bf16.msra.mxu0 %v3610
        %3632 = vmatprep.subr.bf16.mxu0 0
        %3633 = vmatpush1.bf16.msra.mxu0 %v3611
        %3634 = vmatprep.subr.bf16.mxu0 0
        %3635 = vmatpush1.bf16.msra.mxu0 %v3612
        %3636 = vmatprep.subr.bf16.mxu0 0
        %3637 = vmatpush1.bf16.msra.mxu0 %v3613
        %3638 = vmatprep.subr.bf16.mxu0 0
        %3639 = vmatpush1.bf16.msra.mxu0 0
        %3640 = vmatprep.subr.bf16.mxu0 0
        %3641 = vmatpush1.bf16.msra.mxu0 0
        %3642 = vmatprep.subr.bf16.mxu0 0
        %3643 = vmatpush1.bf16.msra.mxu0 0
        %3644 = vmatprep.subr.bf16.mxu0 0
        %3645 = vmatpush1.bf16.msra.mxu0 0
        %3646 = vmatprep.subr.bf16.mxu0 0
        %3647 = vmatpush1.bf16.msra.mxu0 0
        %3648 = vmatprep.subr.bf16.mxu0 0
        %3649 = vmatpush1.bf16.msra.mxu0 0
        %3650 = vmatprep.subr.bf16.mxu0 0
        %3651 = vmatpush1.bf16.msra.mxu0 0
        %3652 = vmatprep.subr.bf16.mxu0 0
        %3653 = vmatpush1.bf16.msra.mxu0 0
        %3654 = vmatprep.mubr.bf16.mxu0 0
        %3655 = vmatmul.mubr.bf16.gmra.mrb[0].mxu0 %v3539
        %v3656 = vpop.f32.mrb[0].mxu0
        %v3657 = vadd.f32 0.0, %v3656
        %v3658 = vpop.f32.mrb[0].mxu0
        %v3659 = vpop.f32.mrb[0].mxu0
        %v3660 = vadd.f32 0.0, %v3659
        %v3661 = vpop.f32.mrb[0].mxu0
        %3662 = vmatprep.mubr.bf16.mxu0 0
        %3663 = vmatmul.mubr.bf16.gmra.mrb[0].mxu0 %v3541
        %v3664 = vpop.f32.mrb[0].mxu0
        %v3665 = vpop.f32.mrb[0].mxu0
        %v3666 = vpop.f32.mrb[0].mxu0
        %v3667 = vadd.f32 0.0, %v3666
        %v3668 = vpop.f32.mrb[0].mxu0
        %3669 = vmatprep.mubr.bf16.mxu0 0
        %3670 = vmatmul.mubr.bf16.gmra.mrb[0].mxu0 %v3543
        %v3671 = vpop.f32.mrb[0].mxu0
        %v3672 = vadd.f32 0.0, %v3671
        %v3673 = vpop.f32.mrb[0].mxu0
        %v3674 = vpop.f32.mrb[0].mxu0
        %v3675 = vpop.f32.mrb[0].mxu0
        %3676 = vmatprep.mubr.bf16.mxu0 0
        %3677 = vmatmul.mubr.bf16.gmra.mrb[0].mxu0 %v3545
        %v3678 = vpop.f32.mrb[0].mxu0
        %v3679 = vadd.f32 0.0, %v3678
        %v3680 = vpop.f32.mrb[0].mxu0
        %v3681 = vpop.f32.mrb[0].mxu0
        %v3682 = vadd.f32 0.0, %v3681
        %v3683 = vpop.f32.mrb[0].mxu0
        %3684 = vmatprep.mubr.bf16.mxu0 0
        %3685 = vmatmul.mubr.bf16.gmra.mrb[0].mxu0 %v3547
        %v3686 = vpop.f32.mrb[0].mxu0
        %v3687 = vpop.f32.mrb[0].mxu0
        %v3688 = vpop.f32.mrb[0].mxu0
        %v3689 = vadd.f32 0.0, %v3688
        %v3690 = vpop.f32.mrb[0].mxu0
        %3691 = vmatprep.mubr.bf16.mxu0 0
        %3692 = vmatmul.mubr.bf16.gmra.mrb[0].mxu0 %v3549
        %v3693 = vpop.f32.mrb[0].mxu0
        %v3694 = vadd.f32 0.0, %v3693
        %v3695 = vpop.f32.mrb[0].mxu0
        %v3696 = vpop.f32.mrb[0].mxu0
        %v3697 = vpop.f32.mrb[0].mxu0
        %3698 = vmatprep.mubr.bf16.mxu0 0
        %3699 = vmatmul.mubr.bf16.gmra.mrb[0].mxu0 %v3551
        %v3700 = vpop.f32.mrb[0].mxu0
        %v3701 = vadd.f32 0.0, %v3700
        %v3702 = vpop.f32.mrb[0].mxu0
        %v3703 = vpop.f32.mrb[0].mxu0
        %v3704 = vadd.f32 0.0, %v3703
        %v3705 = vpop.f32.mrb[0].mxu0
        %3706 = vmatprep.mubr.bf16.mxu0 0
        %3707 = vmatmul.mubr.bf16.gmra.mrb[0].mxu0 %v3553
        %v3708 = vpop.f32.mrb[0].mxu0
        %v3709 = vpop.f32.mrb[0].mxu0
        %v3710 = vpop.f32.mrb[0].mxu0
        %v3711 = vadd.f32 0.0, %v3710
        %v3712 = vpop.f32.mrb[0].mxu0
        %3713 = vmatprep.mubr.bf16.mxu0 0
        %3714 = vmatmul.mubr.bf16.gmra.mrb[0].mxu0 %v3555
        %v3715 = vpop.f32.mrb[0].mxu0
        %v3716 = vadd.f32 0.0, %v3715
        %v3717 = vpop.f32.mrb[0].mxu0
        %v3718 = vpop.f32.mrb[0].mxu0
        %v3719 = vpop.f32.mrb[0].mxu0
        %3720 = vmatprep.mubr.bf16.mxu0 0
        %3721 = vmatmul.mubr.bf16.gmra.mrb[0].mxu0 %v3557
        %v3722 = vpop.f32.mrb[0].mxu0
        %v3723 = vadd.f32 0.0, %v3722
        %v3724 = vpop.f32.mrb[0].mxu0
        %v3725 = vpop.f32.mrb[0].mxu0
        %v3726 = vadd.f32 0.0, %v3725
        %v3727 = vpop.f32.mrb[0].mxu0
        %3728 = vmatprep.mubr.bf16.mxu0 0
        %3729 = vmatmul.mubr.bf16.gmra.mrb[0].mxu0 %v3559
        %v3730 = vpop.f32.mrb[0].mxu0
        %v3731 = vpop.f32.mrb[0].mxu0
        %v3732 = vpop.f32.mrb[0].mxu0
        %v3733 = vadd.f32 0.0, %v3732
        %v3734 = vpop.f32.mrb[0].mxu0
        %3735 = vmatprep.mubr.bf16.mxu0 0
        %3736 = vmatmul.mubr.bf16.gmra.mrb[0].mxu0 %v3561
        %v3737 = vpop.f32.mrb[0].mxu0
        %v3738 = vadd.f32 0.0, %v3737
        %v3739 = vpop.f32.mrb[0].mxu0
        %v3740 = vpop.f32.mrb[0].mxu0
        %v3741 = vpop.f32.mrb[0].mxu0
        %3742 = vdwg.mxu0
        %v3744 = vshrl.u32 %v3477, 16
        %v3746 = vrot.slane %v3744, 6
        %v3747 = vshll.u32 %v3477, 16
        %v3749 = vrot.slane %v3747, 7
        %v3750 = vor.u32 %v3746, %v3749
        %v3752 = vshrl.u32 %v3478, 16
        %v3754 = vrot.slane %v3752, 6
        %v3755 = vshll.u32 %v3478, 16
        %v3757 = vrot.slane %v3755, 7
        %v3758 = vor.u32 %v3754, %v3757
        %v3759 = vsel %vm1748, %v3750, %v3758
        %v3761 = vshrl.u32 %v3479, 16
        %v3763 = vrot.slane %v3761, 6
        %v3764 = vshll.u32 %v3479, 16
        %v3766 = vrot.slane %v3764, 7
        %v3767 = vor.u32 %v3763, %v3766
        %v3768 = vsel %vm1748, %v3758, %v3767
        %v3770 = vshrl.u32 %v3480, 16
        %v3772 = vrot.slane %v3770, 6
        %v3773 = vshll.u32 %v3480, 16
        %v3775 = vrot.slane %v3773, 7
        %v3776 = vor.u32 %v3772, %v3775
        %v3777 = vsel %vm1748, %v3767, %v3776
        %v3779 = vshrl.u32 %v3481, 16
        %v3781 = vrot.slane %v3779, 6
        %v3782 = vshll.u32 %v3481, 16
        %v3784 = vrot.slane %v3782, 7
        %v3785 = vor.u32 %v3781, %v3784
        %v3786 = vsel %vm1748, %v3776, %v3785
        %v3788 = vshrl.u32 %v3482, 16
        %v3790 = vrot.slane %v3788, 6
        %v3791 = vshll.u32 %v3482, 16
        %v3793 = vrot.slane %v3791, 7
        %v3794 = vor.u32 %v3790, %v3793
        %v3795 = vsel %vm1748, %v3785, %v3794
        %v3797 = vshrl.u32 %v3483, 16
        %v3799 = vrot.slane %v3797, 6
        %v3800 = vshll.u32 %v3483, 16
        %v3802 = vrot.slane %v3800, 7
        %v3803 = vor.u32 %v3799, %v3802
        %v3804 = vsel %vm1748, %v3794, %v3803
        %v3806 = vshrl.u32 %v3484, 16
        %v3808 = vrot.slane %v3806, 6
        %v3809 = vshll.u32 %v3484, 16
        %v3811 = vrot.slane %v3809, 7
        %v3812 = vor.u32 %v3808, %v3811
        %v3813 = vsel %vm1748, %v3803, %v3812
        %v3815 = vshrl.u32 %v3485, 16
        %v3817 = vrot.slane %v3815, 6
        %v3818 = vshll.u32 %v3485, 16
        %v3820 = vrot.slane %v3818, 7
        %v3821 = vor.u32 %v3817, %v3820
        %v3822 = vsel %vm1748, %v3812, %v3821
        %v3824 = vshrl.u32 %v3486, 16
        %v3826 = vrot.slane %v3824, 6
        %v3827 = vshll.u32 %v3486, 16
        %v3829 = vrot.slane %v3827, 7
        %v3830 = vor.u32 %v3826, %v3829
        %v3831 = vsel %vm1748, %v3821, %v3830
        %v3833 = vshrl.u32 %v3487, 16
        %v3835 = vrot.slane %v3833, 6
        %v3836 = vshll.u32 %v3487, 16
        %v3838 = vrot.slane %v3836, 7
        %v3839 = vor.u32 %v3835, %v3838
        %v3840 = vsel %vm1748, %v3830, %v3839
        %v3842 = vshrl.u32 %v3488, 16
        %v3844 = vrot.slane %v3842, 6
        %v3845 = vshll.u32 %v3488, 16
        %v3847 = vrot.slane %v3845, 7
        %v3848 = vor.u32 %v3844, %v3847
        %v3849 = vsel %vm1748, %v3839, %v3848
        %v3851 = vshrl.u32 %v3489, 16
        %v3853 = vrot.slane %v3851, 6
        %v3854 = vshll.u32 %v3489, 16
        %v3856 = vrot.slane %v3854, 7
        %v3857 = vor.u32 %v3853, %v3856
        %v3858 = vsel %vm1748, %v3848, %v3857
        %v3887 = vunpack.c.l.b16 %v3490
        %v3888 = vunpack.c.l.b16 %v3491
        %v3889 = vunpack.c.l.b16 %v3492
        %v3890 = vunpack.c.l.b16 %v3493
        %v3891 = vunpack.c.l.b16 %v3494
        %v3892 = vunpack.c.l.b16 %v3495
        %v3893 = vunpack.c.l.b16 %v3496
        %v3894 = vunpack.c.l.b16 %v3497
        %v3895 = vunpack.c.l.b16 %v3498
        %v3896 = vunpack.c.l.b16 %v3499
        %v3897 = vunpack.c.l.b16 %v3500
        %v3898 = vunpack.c.l.b16 %v3501
        %v3899 = vunpack.c.l.b16 %v3502
        %v3900 = vunpack.c.l.b16 %v3503
        %v3901 = vunpack.c.l.b16 %v3504
        %v3902 = vunpack.c.l.b16 %v3505
        %v3903 = vpack.c.b16 %v3888, %v3887
        %v3904 = vpack.c.b16 %v3890, %v3889
        %v3905 = vpack.c.b16 %v3892, %v3891
        %v3906 = vpack.c.b16 %v3894, %v3893
        %v3907 = vpack.c.b16 %v3896, %v3895
        %v3908 = vpack.c.b16 %v3898, %v3897
        %v3909 = vpack.c.b16 %v3900, %v3899
        %v3910 = vpack.c.b16 %v3902, %v3901
        %3919 = vmatprep.subr.bf16.mxu0 0
        %3920 = vmatpush1.bf16.msra.mxu0 %v3903
        %3921 = vmatprep.subr.bf16.mxu0 0
        %3922 = vmatpush1.bf16.msra.mxu0 %v3904
        %3923 = vmatprep.subr.bf16.mxu0 0
        %3924 = vmatpush1.bf16.msra.mxu0 %v3905
        %3925 = vmatprep.subr.bf16.mxu0 0
        %3926 = vmatpush1.bf16.msra.mxu0 %v3906
        %3927 = vmatprep.subr.bf16.mxu0 0
        %3928 = vmatpush1.bf16.msra.mxu0 %v3907
        %3929 = vmatprep.subr.bf16.mxu0 0
        %3930 = vmatpush1.bf16.msra.mxu0 %v3908
        %3931 = vmatprep.subr.bf16.mxu0 0
        %3932 = vmatpush1.bf16.msra.mxu0 %v3909
        %3933 = vmatprep.subr.bf16.mxu0 0
        %3934 = vmatpush1.bf16.msra.mxu0 %v3910
        %3935 = vmatprep.subr.bf16.mxu0 0
        %3936 = vmatpush1.bf16.msra.mxu0 0
        %3937 = vmatprep.subr.bf16.mxu0 0
        %3938 = vmatpush1.bf16.msra.mxu0 0
        %3939 = vmatprep.subr.bf16.mxu0 0
        %3940 = vmatpush1.bf16.msra.mxu0 0
        %3941 = vmatprep.subr.bf16.mxu0 0
        %3942 = vmatpush1.bf16.msra.mxu0 0
        %3943 = vmatprep.subr.bf16.mxu0 0
        %3944 = vmatpush1.bf16.msra.mxu0 0
        %3945 = vmatprep.subr.bf16.mxu0 0
        %3946 = vmatpush1.bf16.msra.mxu0 0
        %3947 = vmatprep.subr.bf16.mxu0 0
        %3948 = vmatpush1.bf16.msra.mxu0 0
        %3949 = vmatprep.subr.bf16.mxu0 0
        %3950 = vmatpush1.bf16.msra.mxu0 0
        %3951 = vmatprep.mubr.bf16.mxu0 0
        %3952 = vmatmul.mubr.bf16.gmra.mrb[0].mxu0 %v3759
        %v3953 = vpop.f32.mrb[0].mxu0
        %v3954 = vadd.f32 %v3657, %v3953
        %v3955 = vpop.f32.mrb[0].mxu0
        %v3956 = vpop.f32.mrb[0].mxu0
        %v3957 = vadd.f32 %v3660, %v3956
        %v3958 = vpop.f32.mrb[0].mxu0
        %3959 = vmatprep.mubr.bf16.mxu0 0
        %3960 = vmatmul.mubr.bf16.gmra.mrb[0].mxu0 %v3768
        %v3961 = vpop.f32.mrb[0].mxu0
        %v3962 = vpop.f32.mrb[0].mxu0
        %v3963 = vpop.f32.mrb[0].mxu0
        %v3964 = vadd.f32 %v3667, %v3963
        %v3965 = vpop.f32.mrb[0].mxu0
        %3966 = vmatprep.mubr.bf16.mxu0 0
        %3967 = vmatmul.mubr.bf16.gmra.mrb[0].mxu0 %v3777
        %v3968 = vpop.f32.mrb[0].mxu0
        %v3969 = vadd.f32 %v3672, %v3968
        %v3970 = vpop.f32.mrb[0].mxu0
        %v3971 = vpop.f32.mrb[0].mxu0
        %v3972 = vpop.f32.mrb[0].mxu0
        %3973 = vmatprep.mubr.bf16.mxu0 0
        %3974 = vmatmul.mubr.bf16.gmra.mrb[0].mxu0 %v3786
        %v3975 = vpop.f32.mrb[0].mxu0
        %v3976 = vadd.f32 %v3679, %v3975
        %v3977 = vpop.f32.mrb[0].mxu0
        %v3978 = vpop.f32.mrb[0].mxu0
        %v3979 = vadd.f32 %v3682, %v3978
        %v3980 = vpop.f32.mrb[0].mxu0
        %3981 = vmatprep.mubr.bf16.mxu0 0
        %3982 = vmatmul.mubr.bf16.gmra.mrb[0].mxu0 %v3795
        %v3983 = vpop.f32.mrb[0].mxu0
        %v3984 = vpop.f32.mrb[0].mxu0
        %v3985 = vpop.f32.mrb[0].mxu0
        %v3986 = vadd.f32 %v3689, %v3985
        %v3987 = vpop.f32.mrb[0].mxu0
        %3988 = vmatprep.mubr.bf16.mxu0 0
        %3989 = vmatmul.mubr.bf16.gmra.mrb[0].mxu0 %v3804
        %v3990 = vpop.f32.mrb[0].mxu0
        %v3991 = vadd.f32 %v3694, %v3990
        %v3992 = vpop.f32.mrb[0].mxu0
        %v3993 = vpop.f32.mrb[0].mxu0
        %v3994 = vpop.f32.mrb[0].mxu0
        %3995 = vmatprep.mubr.bf16.mxu0 0
        %3996 = vmatmul.mubr.bf16.gmra.mrb[0].mxu0 %v3813
        %v3997 = vpop.f32.mrb[0].mxu0
        %v3998 = vadd.f32 %v3701, %v3997
        %v3999 = vpop.f32.mrb[0].mxu0
        %v4000 = vpop.f32.mrb[0].mxu0
        %v4001 = vadd.f32 %v3704, %v4000
        %v4002 = vpop.f32.mrb[0].mxu0
        %4003 = vmatprep.mubr.bf16.mxu0 0
        %4004 = vmatmul.mubr.bf16.gmra.mrb[0].mxu0 %v3822
        %v4005 = vpop.f32.mrb[0].mxu0
        %v4006 = vpop.f32.mrb[0].mxu0
        %v4007 = vpop.f32.mrb[0].mxu0
        %v4008 = vadd.f32 %v3711, %v4007
        %v4009 = vpop.f32.mrb[0].mxu0
        %4010 = vmatprep.mubr.bf16.mxu0 0
        %4011 = vmatmul.mubr.bf16.gmra.mrb[0].mxu0 %v3831
        %v4012 = vpop.f32.mrb[0].mxu0
        %v4013 = vadd.f32 %v3716, %v4012
        %v4014 = vpop.f32.mrb[0].mxu0
        %v4015 = vpop.f32.mrb[0].mxu0
        %v4016 = vpop.f32.mrb[0].mxu0
        %4017 = vmatprep.mubr.bf16.mxu0 0
        %4018 = vmatmul.mubr.bf16.gmra.mrb[0].mxu0 %v3840
        %v4019 = vpop.f32.mrb[0].mxu0
        %v4020 = vadd.f32 %v3723, %v4019
        %v4021 = vpop.f32.mrb[0].mxu0
        %v4022 = vpop.f32.mrb[0].mxu0
        %v4023 = vadd.f32 %v3726, %v4022
        %v4024 = vpop.f32.mrb[0].mxu0
        %4025 = vmatprep.mubr.bf16.mxu0 0
        %4026 = vmatmul.mubr.bf16.gmra.mrb[0].mxu0 %v3849
        %v4027 = vpop.f32.mrb[0].mxu0
        %v4028 = vpop.f32.mrb[0].mxu0
        %v4029 = vpop.f32.mrb[0].mxu0
        %v4030 = vadd.f32 %v3733, %v4029
        %v4031 = vpop.f32.mrb[0].mxu0
        %4032 = vmatprep.mubr.bf16.mxu0 0
        %4033 = vmatmul.mubr.bf16.gmra.mrb[0].mxu0 %v3858
        %v4034 = vpop.f32.mrb[0].mxu0
        %v4035 = vadd.f32 %v3738, %v4034
        %v4036 = vpop.f32.mrb[0].mxu0
        %v4037 = vpop.f32.mrb[0].mxu0
        %v4038 = vpop.f32.mrb[0].mxu0
        %4039 = vdwg.mxu0
        %v4040 = vld [vmem:[#allocation2 + $0x60] sm:$0xff]
        %s4041 = scalar_lea.vmem [#allocation9], 128
        %v4042 = vld [vmem:[%s4041] sm:$0xf]
        %v4043 = vld [vmem:[%s4041 + $0x4] sm:$0xf]
        %v4044 = vld [vmem:[%s4041 + $0x8] sm:$0xf]
        %v4045 = vld [vmem:[%s4041 + $0xc] sm:$0xf]
        %v4046 = vld [vmem:[%s4041 + $0x10] sm:$0xf]
        %v4047 = vld [vmem:[%s4041 + $0x14] sm:$0xf]
        %v4048 = vld [vmem:[%s4041 + $0x18] sm:$0xf]
        %v4049 = vld [vmem:[%s4041 + $0x1c] sm:$0xf]
        %v4050 = vld [vmem:[%s4041 + $0x20] sm:$0xf]
        %v4051 = vld [vmem:[%s4041 + $0x24] sm:$0xf]
        %v4052 = vld [vmem:[%s4041 + $0x28] sm:$0xf]
        %v4053 = vld [vmem:[%s4041 + $0x2c] sm:$0xf]
        %v4054 = vld [vmem:[%s4041 + $0x30] sm:$0xf]
        %v4055 = vld [vmem:[%s4041 + $0x34] sm:$0xf]
        %v4056 = vld [vmem:[%s4041 + $0x38] sm:$0xf]
        %v4057 = vld [vmem:[%s4041 + $0x3c] sm:$0xf]
        %v4059 = vshrl.u32 %v3506, 16
        %v4061 = vrot.slane %v4059, 7
        %v4062 = vrot.slane %v3752, 7
        %v4063 = vor.u32 %v4062, %v3755
        %v4064 = vsel %vm2064, %v4061, %v4063
        %v4065 = vrot.slane %v3761, 7
        %v4066 = vor.u32 %v4065, %v3764
        %v4067 = vsel %vm2064, %v4062, %v4066
        %v4068 = vrot.slane %v3770, 7
        %v4069 = vor.u32 %v4068, %v3773
        %v4070 = vsel %vm2064, %v4065, %v4069
        %v4071 = vrot.slane %v3779, 7
        %v4072 = vor.u32 %v4071, %v3782
        %v4073 = vsel %vm2064, %v4068, %v4072
        %v4074 = vrot.slane %v3788, 7
        %v4075 = vor.u32 %v4074, %v3791
        %v4076 = vsel %vm2064, %v4071, %v4075
        %v4077 = vrot.slane %v3797, 7
        %v4078 = vor.u32 %v4077, %v3800
        %v4079 = vsel %vm2064, %v4074, %v4078
        %v4080 = vrot.slane %v3806, 7
        %v4081 = vor.u32 %v4080, %v3809
        %v4082 = vsel %vm2064, %v4077, %v4081
        %v4083 = vrot.slane %v3815, 7
        %v4084 = vor.u32 %v4083, %v3818
        %v4085 = vsel %vm2064, %v4080, %v4084
        %v4086 = vrot.slane %v3824, 7
        %v4087 = vor.u32 %v4086, %v3827
        %v4088 = vsel %vm2064, %v4083, %v4087
        %v4089 = vrot.slane %v3833, 7
        %v4090 = vor.u32 %v4089, %v3836
        %v4091 = vsel %vm2064, %v4086, %v4090
        %v4092 = vrot.slane %v3842, 7
        %v4093 = vor.u32 %v4092, %v3845
        %v4094 = vsel %vm2064, %v4089, %v4093
        %v4096 = vshrl.u32 %v4040, 16
        %v4098 = vrot.slane %v4096, 7
        %v4099 = vshll.u32 %v4040, 16
        %v4101 = vor.u32 %v4098, %v4099
        %v4102 = vsel %vm2064, %v4092, %v4101
        %v4131 = vunpack.c.l.b16 %v4042
        %v4132 = vunpack.c.l.b16 %v4043
        %v4133 = vunpack.c.l.b16 %v4044
        %v4134 = vunpack.c.l.b16 %v4045
        %v4135 = vunpack.c.l.b16 %v4046
        %v4136 = vunpack.c.l.b16 %v4047
        %v4137 = vunpack.c.l.b16 %v4048
        %v4138 = vunpack.c.l.b16 %v4049
        %v4139 = vunpack.c.l.b16 %v4050
        %v4140 = vunpack.c.l.b16 %v4051
        %v4141 = vunpack.c.l.b16 %v4052
        %v4142 = vunpack.c.l.b16 %v4053
        %v4143 = vunpack.c.l.b16 %v4054
        %v4144 = vunpack.c.l.b16 %v4055
        %v4145 = vunpack.c.l.b16 %v4056
        %v4146 = vunpack.c.l.b16 %v4057
        %v4147 = vpack.c.b16 %v4132, %v4131
        %v4148 = vpack.c.b16 %v4134, %v4133
        %v4149 = vpack.c.b16 %v4136, %v4135
        %v4150 = vpack.c.b16 %v4138, %v4137
        %v4151 = vpack.c.b16 %v4140, %v4139
        %v4152 = vpack.c.b16 %v4142, %v4141
        %v4153 = vpack.c.b16 %v4144, %v4143
        %v4154 = vpack.c.b16 %v4146, %v4145
        %4163 = vmatprep.subr.bf16.mxu0 0
        %4164 = vmatpush1.bf16.msra.mxu0 %v4147
        %4165 = vmatprep.subr.bf16.mxu0 0
        %4166 = vmatpush1.bf16.msra.mxu0 %v4148
        %4167 = vmatprep.subr.bf16.mxu0 0
        %4168 = vmatpush1.bf16.msra.mxu0 %v4149
        %4169 = vmatprep.subr.bf16.mxu0 0
        %4170 = vmatpush1.bf16.msra.mxu0 %v4150
        %4171 = vmatprep.subr.bf16.mxu0 0
        %4172 = vmatpush1.bf16.msra.mxu0 %v4151
        %4173 = vmatprep.subr.bf16.mxu0 0
        %4174 = vmatpush1.bf16.msra.mxu0 %v4152
        %4175 = vmatprep.subr.bf16.mxu0 0
        %4176 = vmatpush1.bf16.msra.mxu0 %v4153
        %4177 = vmatprep.subr.bf16.mxu0 0
        %4178 = vmatpush1.bf16.msra.mxu0 %v4154
        %4179 = vmatprep.subr.bf16.mxu0 0
        %4180 = vmatpush1.bf16.msra.mxu0 0
        %4181 = vmatprep.subr.bf16.mxu0 0
        %4182 = vmatpush1.bf16.msra.mxu0 0
        %4183 = vmatprep.subr.bf16.mxu0 0
        %4184 = vmatpush1.bf16.msra.mxu0 0
        %4185 = vmatprep.subr.bf16.mxu0 0
        %4186 = vmatpush1.bf16.msra.mxu0 0
        %4187 = vmatprep.subr.bf16.mxu0 0
        %4188 = vmatpush1.bf16.msra.mxu0 0
        %4189 = vmatprep.subr.bf16.mxu0 0
        %4190 = vmatpush1.bf16.msra.mxu0 0
        %4191 = vmatprep.subr.bf16.mxu0 0
        %4192 = vmatpush1.bf16.msra.mxu0 0
        %4193 = vmatprep.subr.bf16.mxu0 0
        %4194 = vmatpush1.bf16.msra.mxu0 0
        %4195 = vmatprep.mubr.bf16.mxu0 0
        %4196 = vmatmul.mubr.bf16.gmra.mrb[0].mxu0 %v4064
        %v4197 = vpop.f32.mrb[0].mxu0
        %v4198 = vadd.f32 0.0, %v4197
        %v4199 = vpop.f32.mrb[0].mxu0
        %v4200 = vpop.f32.mrb[0].mxu0
        %v4201 = vadd.f32 0.0, %v4200
        %v4202 = vpop.f32.mrb[0].mxu0
        %4203 = vmatprep.mubr.bf16.mxu0 0
        %4204 = vmatmul.mubr.bf16.gmra.mrb[0].mxu0 %v4067
        %v4205 = vpop.f32.mrb[0].mxu0
        %v4206 = vpop.f32.mrb[0].mxu0
        %v4207 = vpop.f32.mrb[0].mxu0
        %v4208 = vadd.f32 0.0, %v4207
        %v4209 = vpop.f32.mrb[0].mxu0
        %4210 = vmatprep.mubr.bf16.mxu0 0
        %4211 = vmatmul.mubr.bf16.gmra.mrb[0].mxu0 %v4070
        %v4212 = vpop.f32.mrb[0].mxu0
        %v4213 = vadd.f32 0.0, %v4212
        %v4214 = vpop.f32.mrb[0].mxu0
        %v4215 = vpop.f32.mrb[0].mxu0
        %v4216 = vpop.f32.mrb[0].mxu0
        %4217 = vmatprep.mubr.bf16.mxu0 0
        %4218 = vmatmul.mubr.bf16.gmra.mrb[0].mxu0 %v4073
        %v4219 = vpop.f32.mrb[0].mxu0
        %v4220 = vadd.f32 0.0, %v4219
        %v4221 = vpop.f32.mrb[0].mxu0
        %v4222 = vpop.f32.mrb[0].mxu0
        %v4223 = vadd.f32 0.0, %v4222
        %v4224 = vpop.f32.mrb[0].mxu0
        %4225 = vmatprep.mubr.bf16.mxu0 0
        %4226 = vmatmul.mubr.bf16.gmra.mrb[0].mxu0 %v4076
        %v4227 = vpop.f32.mrb[0].mxu0
        %v4228 = vpop.f32.mrb[0].mxu0
        %v4229 = vpop.f32.mrb[0].mxu0
        %v4230 = vadd.f32 0.0, %v4229
        %v4231 = vpop.f32.mrb[0].mxu0
        %4232 = vmatprep.mubr.bf16.mxu0 0
        %4233 = vmatmul.mubr.bf16.gmra.mrb[0].mxu0 %v4079
        %v4234 = vpop.f32.mrb[0].mxu0
        %v4235 = vadd.f32 0.0, %v4234
        %v4236 = vpop.f32.mrb[0].mxu0
        %v4237 = vpop.f32.mrb[0].mxu0
        %v4238 = vpop.f32.mrb[0].mxu0
        %4239 = vmatprep.mubr.bf16.mxu0 0
        %4240 = vmatmul.mubr.bf16.gmra.mrb[0].mxu0 %v4082
        %v4241 = vpop.f32.mrb[0].mxu0
        %v4242 = vadd.f32 0.0, %v4241
        %v4243 = vpop.f32.mrb[0].mxu0
        %v4244 = vpop.f32.mrb[0].mxu0
        %v4245 = vadd.f32 0.0, %v4244
        %v4246 = vpop.f32.mrb[0].mxu0
        %4247 = vmatprep.mubr.bf16.mxu0 0
        %4248 = vmatmul.mubr.bf16.gmra.mrb[0].mxu0 %v4085
        %v4249 = vpop.f32.mrb[0].mxu0
        %v4250 = vpop.f32.mrb[0].mxu0
        %v4251 = vpop.f32.mrb[0].mxu0
        %v4252 = vadd.f32 0.0, %v4251
        %v4253 = vpop.f32.mrb[0].mxu0
        %4254 = vmatprep.mubr.bf16.mxu0 0
        %4255 = vmatmul.mubr.bf16.gmra.mrb[0].mxu0 %v4088
        %v4256 = vpop.f32.mrb[0].mxu0
        %v4257 = vadd.f32 0.0, %v4256
        %v4258 = vpop.f32.mrb[0].mxu0
        %v4259 = vpop.f32.mrb[0].mxu0
        %v4260 = vpop.f32.mrb[0].mxu0
        %4261 = vmatprep.mubr.bf16.mxu0 0
        %4262 = vmatmul.mubr.bf16.gmra.mrb[0].mxu0 %v4091
        %v4263 = vpop.f32.mrb[0].mxu0
        %v4264 = vadd.f32 0.0, %v4263
        %v4265 = vpop.f32.mrb[0].mxu0
        %v4266 = vpop.f32.mrb[0].mxu0
        %v4267 = vadd.f32 0.0, %v4266
        %v4268 = vpop.f32.mrb[0].mxu0
        %4269 = vmatprep.mubr.bf16.mxu0 0
        %4270 = vmatmul.mubr.bf16.gmra.mrb[0].mxu0 %v4094
        %v4271 = vpop.f32.mrb[0].mxu0
        %v4272 = vpop.f32.mrb[0].mxu0
        %v4273 = vpop.f32.mrb[0].mxu0
        %v4274 = vadd.f32 0.0, %v4273
        %v4275 = vpop.f32.mrb[0].mxu0
        %4276 = vmatprep.mubr.bf16.mxu0 0
        %4277 = vmatmul.mubr.bf16.gmra.mrb[0].mxu0 %v4102
        %v4278 = vpop.f32.mrb[0].mxu0
        %v4279 = vadd.f32 0.0, %v4278
        %v4280 = vpop.f32.mrb[0].mxu0
        %v4281 = vpop.f32.mrb[0].mxu0
        %v4282 = vpop.f32.mrb[0].mxu0
        %4283 = vdwg.mxu0
        %v4284 = vadd.f32 %v3954, %v4198
        %v4285 = vadd.f32 %v3957, %v4201
        %v4286 = vadd.f32 %v3964, %v4208
        %v4287 = vadd.f32 %v3969, %v4213
        %v4288 = vadd.f32 %v3976, %v4220
        %v4289 = vadd.f32 %v3979, %v4223
        %v4290 = vadd.f32 %v3986, %v4230
        %v4291 = vadd.f32 %v3991, %v4235
        %v4292 = vadd.f32 %v3998, %v4242
        %v4293 = vadd.f32 %v4001, %v4245
        %v4294 = vadd.f32 %v4008, %v4252
        %v4295 = vadd.f32 %v4013, %v4257
        %v4296 = vadd.f32 %v4020, %v4264
        %v4297 = vadd.f32 %v4023, %v4267
        %v4298 = vadd.f32 %v4030, %v4274
        %v4299 = vadd.f32 %v4035, %v4279
        %s4300 = scalar_lea.vmem [#allocation9], 192
        %v4301 = vld [vmem:[%s4300] sm:$0xf]
        %v4302 = vld [vmem:[%s4300 + $0x4] sm:$0xf]
        %v4303 = vld [vmem:[%s4300 + $0x8] sm:$0xf]
        %v4304 = vld [vmem:[%s4300 + $0xc] sm:$0xf]
        %v4305 = vld [vmem:[%s4300 + $0x10] sm:$0xf]
        %v4306 = vld [vmem:[%s4300 + $0x14] sm:$0xf]
        %v4307 = vld [vmem:[%s4300 + $0x18] sm:$0xf]
        %v4308 = vld [vmem:[%s4300 + $0x1c] sm:$0xf]
        %v4309 = vld [vmem:[%s4300 + $0x20] sm:$0xf]
        %v4310 = vld [vmem:[%s4300 + $0x24] sm:$0xf]
        %v4311 = vld [vmem:[%s4300 + $0x28] sm:$0xf]
        %v4312 = vld [vmem:[%s4300 + $0x2c] sm:$0xf]
        %v4313 = vld [vmem:[%s4300 + $0x30] sm:$0xf]
        %v4314 = vld [vmem:[%s4300 + $0x34] sm:$0xf]
        %v4315 = vld [vmem:[%s4300 + $0x38] sm:$0xf]
        %v4316 = vld [vmem:[%s4300 + $0x3c] sm:$0xf]
        %v4333 = vunpack.c.l.b16 %v4301
        %v4334 = vunpack.c.l.b16 %v4302
        %v4335 = vunpack.c.l.b16 %v4303
        %v4336 = vunpack.c.l.b16 %v4304
        %v4337 = vunpack.c.l.b16 %v4305
        %v4338 = vunpack.c.l.b16 %v4306
        %v4339 = vunpack.c.l.b16 %v4307
        %v4340 = vunpack.c.l.b16 %v4308
        %v4341 = vunpack.c.l.b16 %v4309
        %v4342 = vunpack.c.l.b16 %v4310
        %v4343 = vunpack.c.l.b16 %v4311
        %v4344 = vunpack.c.l.b16 %v4312
        %v4345 = vunpack.c.l.b16 %v4313
        %v4346 = vunpack.c.l.b16 %v4314
        %v4347 = vunpack.c.l.b16 %v4315
        %v4348 = vunpack.c.l.b16 %v4316
        %v4349 = vpack.c.b16 %v4334, %v4333
        %v4350 = vpack.c.b16 %v4336, %v4335
        %v4351 = vpack.c.b16 %v4338, %v4337
        %v4352 = vpack.c.b16 %v4340, %v4339
        %v4353 = vpack.c.b16 %v4342, %v4341
        %v4354 = vpack.c.b16 %v4344, %v4343
        %v4355 = vpack.c.b16 %v4346, %v4345
        %v4356 = vpack.c.b16 %v4348, %v4347
        %4365 = vmatprep.subr.bf16.mxu0 0
        %4366 = vmatpush1.bf16.msra.mxu0 %v4349
        %4367 = vmatprep.subr.bf16.mxu0 0
        %4368 = vmatpush1.bf16.msra.mxu0 %v4350
        %4369 = vmatprep.subr.bf16.mxu0 0
        %4370 = vmatpush1.bf16.msra.mxu0 %v4351
        %4371 = vmatprep.subr.bf16.mxu0 0
        %4372 = vmatpush1.bf16.msra.mxu0 %v4352
        %4373 = vmatprep.subr.bf16.mxu0 0
        %4374 = vmatpush1.bf16.msra.mxu0 %v4353
        %4375 = vmatprep.subr.bf16.mxu0 0
        %4376 = vmatpush1.bf16.msra.mxu0 %v4354
        %4377 = vmatprep.subr.bf16.mxu0 0
        %4378 = vmatpush1.bf16.msra.mxu0 %v4355
        %4379 = vmatprep.subr.bf16.mxu0 0
        %4380 = vmatpush1.bf16.msra.mxu0 %v4356
        %4381 = vmatprep.subr.bf16.mxu0 0
        %4382 = vmatpush1.bf16.msra.mxu0 0
        %4383 = vmatprep.subr.bf16.mxu0 0
        %4384 = vmatpush1.bf16.msra.mxu0 0
        %4385 = vmatprep.subr.bf16.mxu0 0
        %4386 = vmatpush1.bf16.msra.mxu0 0
        %4387 = vmatprep.subr.bf16.mxu0 0
        %4388 = vmatpush1.bf16.msra.mxu0 0
        %4389 = vmatprep.subr.bf16.mxu0 0
        %4390 = vmatpush1.bf16.msra.mxu0 0
        %4391 = vmatprep.subr.bf16.mxu0 0
        %4392 = vmatpush1.bf16.msra.mxu0 0
        %4393 = vmatprep.subr.bf16.mxu0 0
        %4394 = vmatpush1.bf16.msra.mxu0 0
        %4395 = vmatprep.subr.bf16.mxu0 0
        %4396 = vmatpush1.bf16.msra.mxu0 0
        %4397 = vmatprep.mubr.bf16.mxu0 0
        %4398 = vmatmul.mubr.bf16.gmra.mrb[0].mxu0 %v3478
        %v4399 = vpop.f32.mrb[0].mxu0
        %v4400 = vadd.f32 0.0, %v4399
        %v4401 = vpop.f32.mrb[0].mxu0
        %v4402 = vpop.f32.mrb[0].mxu0
        %v4403 = vadd.f32 0.0, %v4402
        %v4404 = vpop.f32.mrb[0].mxu0
        %4405 = vmatprep.mubr.bf16.mxu0 0
        %4406 = vmatmul.mubr.bf16.gmra.mrb[0].mxu0 %v3479
        %v4407 = vpop.f32.mrb[0].mxu0
        %v4408 = vpop.f32.mrb[0].mxu0
        %v4409 = vpop.f32.mrb[0].mxu0
        %v4410 = vadd.f32 0.0, %v4409
        %v4411 = vpop.f32.mrb[0].mxu0
        %4412 = vmatprep.mubr.bf16.mxu0 0
        %4413 = vmatmul.mubr.bf16.gmra.mrb[0].mxu0 %v3480
        %v4414 = vpop.f32.mrb[0].mxu0
        %v4415 = vadd.f32 0.0, %v4414
        %v4416 = vpop.f32.mrb[0].mxu0
        %v4417 = vpop.f32.mrb[0].mxu0
        %v4418 = vpop.f32.mrb[0].mxu0
        %4419 = vmatprep.mubr.bf16.mxu0 0
        %4420 = vmatmul.mubr.bf16.gmra.mrb[0].mxu0 %v3481
        %v4421 = vpop.f32.mrb[0].mxu0
        %v4422 = vadd.f32 0.0, %v4421
        %v4423 = vpop.f32.mrb[0].mxu0
        %v4424 = vpop.f32.mrb[0].mxu0
        %v4425 = vadd.f32 0.0, %v4424
        %v4426 = vpop.f32.mrb[0].mxu0
        %4427 = vmatprep.mubr.bf16.mxu0 0
        %4428 = vmatmul.mubr.bf16.gmra.mrb[0].mxu0 %v3482
        %v4429 = vpop.f32.mrb[0].mxu0
        %v4430 = vpop.f32.mrb[0].mxu0
        %v4431 = vpop.f32.mrb[0].mxu0
        %v4432 = vadd.f32 0.0, %v4431
        %v4433 = vpop.f32.mrb[0].mxu0
        %4434 = vmatprep.mubr.bf16.mxu0 0
        %4435 = vmatmul.mubr.bf16.gmra.mrb[0].mxu0 %v3483
        %v4436 = vpop.f32.mrb[0].mxu0
        %v4437 = vadd.f32 0.0, %v4436
        %v4438 = vpop.f32.mrb[0].mxu0
        %v4439 = vpop.f32.mrb[0].mxu0
        %v4440 = vpop.f32.mrb[0].mxu0
        %4441 = vmatprep.mubr.bf16.mxu0 0
        %4442 = vmatmul.mubr.bf16.gmra.mrb[0].mxu0 %v3484
        %v4443 = vpop.f32.mrb[0].mxu0
        %v4444 = vadd.f32 0.0, %v4443
        %v4445 = vpop.f32.mrb[0].mxu0
        %v4446 = vpop.f32.mrb[0].mxu0
        %v4447 = vadd.f32 0.0, %v4446
        %v4448 = vpop.f32.mrb[0].mxu0
        %4449 = vmatprep.mubr.bf16.mxu0 0
        %4450 = vmatmul.mubr.bf16.gmra.mrb[0].mxu0 %v3485
        %v4451 = vpop.f32.mrb[0].mxu0
        %v4452 = vpop.f32.mrb[0].mxu0
        %v4453 = vpop.f32.mrb[0].mxu0
        %v4454 = vadd.f32 0.0, %v4453
        %v4455 = vpop.f32.mrb[0].mxu0
        %4456 = vmatprep.mubr.bf16.mxu0 0
        %4457 = vmatmul.mubr.bf16.gmra.mrb[0].mxu0 %v3486
        %v4458 = vpop.f32.mrb[0].mxu0
        %v4459 = vadd.f32 0.0, %v4458
        %v4460 = vpop.f32.mrb[0].mxu0
        %v4461 = vpop.f32.mrb[0].mxu0
        %v4462 = vpop.f32.mrb[0].mxu0
        %4463 = vmatprep.mubr.bf16.mxu0 0
        %4464 = vmatmul.mubr.bf16.gmra.mrb[0].mxu0 %v3487
        %v4465 = vpop.f32.mrb[0].mxu0
        %v4466 = vadd.f32 0.0, %v4465
        %v4467 = vpop.f32.mrb[0].mxu0
        %v4468 = vpop.f32.mrb[0].mxu0
        %v4469 = vadd.f32 0.0, %v4468
        %v4470 = vpop.f32.mrb[0].mxu0
        %4471 = vmatprep.mubr.bf16.mxu0 0
        %4472 = vmatmul.mubr.bf16.gmra.mrb[0].mxu0 %v3488
        %v4473 = vpop.f32.mrb[0].mxu0
        %v4474 = vpop.f32.mrb[0].mxu0
        %v4475 = vpop.f32.mrb[0].mxu0
        %v4476 = vadd.f32 0.0, %v4475
        %v4477 = vpop.f32.mrb[0].mxu0
        %4478 = vmatprep.mubr.bf16.mxu0 0
        %4479 = vmatmul.mubr.bf16.gmra.mrb[0].mxu0 %v4040
        %v4480 = vpop.f32.mrb[0].mxu0
        %v4481 = vadd.f32 0.0, %v4480
        %v4482 = vpop.f32.mrb[0].mxu0
        %v4483 = vpop.f32.mrb[0].mxu0
        %v4484 = vpop.f32.mrb[0].mxu0
        %4485 = vdwg.mxu0
        %v4486 = vadd.f32 %v4284, %v4400
        %v4487 = vadd.f32 %v4285, %v4403
        %v4488 = vadd.f32 %v4286, %v4410
        %v4489 = vadd.f32 %v4287, %v4415
        %v4490 = vadd.f32 %v4288, %v4422
        %v4491 = vadd.f32 %v4289, %v4425
        %v4492 = vadd.f32 %v4290, %v4432
        %v4493 = vadd.f32 %v4291, %v4437
        %v4494 = vadd.f32 %v4292, %v4444
        %v4495 = vadd.f32 %v4293, %v4447
        %v4496 = vadd.f32 %v4294, %v4454
        %v4497 = vadd.f32 %v4295, %v4459
        %v4498 = vadd.f32 %v4296, %v4466
        %v4499 = vadd.f32 %v4297, %v4469
        %v4500 = vadd.f32 %v4298, %v4476
        %v4501 = vadd.f32 %v4299, %v4481
        %v4502 = vld [vmem:[#allocation2 + $0x8] sm:$0xff]
        %v4503 = vld [vmem:[#allocation2 + $0x10] sm:$0xff]
        %v4504 = vld [vmem:[#allocation2 + $0x18] sm:$0xff]
        %v4505 = vld [vmem:[#allocation2 + $0x20] sm:$0xff]
        %v4506 = vld [vmem:[#allocation2 + $0x28] sm:$0xff]
        %v4507 = vld [vmem:[#allocation2 + $0x30] sm:$0xff]
        %v4508 = vld [vmem:[#allocation2 + $0x38] sm:$0xff]
        %v4509 = vld [vmem:[#allocation2 + $0x40] sm:$0xff]
        %v4510 = vld [vmem:[#allocation2 + $0x48] sm:$0xff]
        %v4511 = vld [vmem:[#allocation2 + $0x50] sm:$0xff]
        %v4512 = vld [vmem:[#allocation2 + $0x58] sm:$0xff]
        %v4513 = vld [vmem:[#allocation2 + $0x60] sm:$0xff]
        %v4514 = vld [vmem:[#allocation2 + $0x68] sm:$0x1]
        %s4515 = scalar_lea.vmem [#allocation9], 256
        %v4516 = vld [vmem:[%s4515] sm:$0xf]
        %v4517 = vld [vmem:[%s4515 + $0x4] sm:$0xf]
        %v4518 = vld [vmem:[%s4515 + $0x8] sm:$0xf]
        %v4519 = vld [vmem:[%s4515 + $0xc] sm:$0xf]
        %v4520 = vld [vmem:[%s4515 + $0x10] sm:$0xf]
        %v4521 = vld [vmem:[%s4515 + $0x14] sm:$0xf]
        %v4522 = vld [vmem:[%s4515 + $0x18] sm:$0xf]
        %v4523 = vld [vmem:[%s4515 + $0x1c] sm:$0xf]
        %v4524 = vld [vmem:[%s4515 + $0x20] sm:$0xf]
        %v4525 = vld [vmem:[%s4515 + $0x24] sm:$0xf]
        %v4526 = vld [vmem:[%s4515 + $0x28] sm:$0xf]
        %v4527 = vld [vmem:[%s4515 + $0x2c] sm:$0xf]
        %v4528 = vld [vmem:[%s4515 + $0x30] sm:$0xf]
        %v4529 = vld [vmem:[%s4515 + $0x34] sm:$0xf]
        %v4530 = vld [vmem:[%s4515 + $0x38] sm:$0xf]
        %v4531 = vld [vmem:[%s4515 + $0x3c] sm:$0xf]
        %v4533 = vshrl.u32 %v4502, 16
        %v4535 = vshll.u32 %v4502, 16
        %v4537 = vrot.slane %v4535, 1
        %v4538 = vor.u32 %v4533, %v4537
        %v4540 = vshll.u32 %v4503, 16
        %v4542 = vrot.slane %v4540, 1
        %v4543 = vsel %vm2539, %v4538, %v4542
        %v4544 = vshrl.u32 %v4503, 16
        %v4546 = vor.u32 %v4544, %v4542
        %v4548 = vshll.u32 %v4504, 16
        %v4550 = vrot.slane %v4548, 1
        %v4551 = vsel %vm2539, %v4546, %v4550
        %v4552 = vshrl.u32 %v4504, 16
        %v4554 = vor.u32 %v4552, %v4550
        %v4556 = vshll.u32 %v4505, 16
        %v4558 = vrot.slane %v4556, 1
        %v4559 = vsel %vm2539, %v4554, %v4558
        %v4560 = vshrl.u32 %v4505, 16
        %v4562 = vor.u32 %v4560, %v4558
        %v4564 = vshll.u32 %v4506, 16
        %v4566 = vrot.slane %v4564, 1
        %v4567 = vsel %vm2539, %v4562, %v4566
        %v4568 = vshrl.u32 %v4506, 16
        %v4570 = vor.u32 %v4568, %v4566
        %v4572 = vshll.u32 %v4507, 16
        %v4574 = vrot.slane %v4572, 1
        %v4575 = vsel %vm2539, %v4570, %v4574
        %v4576 = vshrl.u32 %v4507, 16
        %v4578 = vor.u32 %v4576, %v4574
        %v4580 = vshll.u32 %v4508, 16
        %v4582 = vrot.slane %v4580, 1
        %v4583 = vsel %vm2539, %v4578, %v4582
        %v4584 = vshrl.u32 %v4508, 16
        %v4586 = vor.u32 %v4584, %v4582
        %v4588 = vshll.u32 %v4509, 16
        %v4590 = vrot.slane %v4588, 1
        %v4591 = vsel %vm2539, %v4586, %v4590
        %v4592 = vshrl.u32 %v4509, 16
        %v4594 = vor.u32 %v4592, %v4590
        %v4596 = vshll.u32 %v4510, 16
        %v4598 = vrot.slane %v4596, 1
        %v4599 = vsel %vm2539, %v4594, %v4598
        %v4600 = vshrl.u32 %v4510, 16
        %v4602 = vor.u32 %v4600, %v4598
        %v4604 = vshll.u32 %v4511, 16
        %v4606 = vrot.slane %v4604, 1
        %v4607 = vsel %vm2539, %v4602, %v4606
        %v4608 = vshrl.u32 %v4511, 16
        %v4610 = vor.u32 %v4608, %v4606
        %v4612 = vshll.u32 %v4512, 16
        %v4614 = vrot.slane %v4612, 1
        %v4615 = vsel %vm2539, %v4610, %v4614
        %v4616 = vshrl.u32 %v4512, 16
        %v4618 = vor.u32 %v4616, %v4614
        %v4620 = vshll.u32 %v4513, 16
        %v4622 = vrot.slane %v4620, 1
        %v4623 = vsel %vm2539, %v4618, %v4622
        %v4624 = vshrl.u32 %v4513, 16
        %v4626 = vor.u32 %v4624, %v4622
        %v4628 = vshll.u32 %v4514, 16
        %v4630 = vrot.slane %v4628, 1
        %v4631 = vsel %vm2539, %v4626, %v4630
        %v4660 = vunpack.c.l.b16 %v4516
        %v4661 = vunpack.c.l.b16 %v4517
        %v4662 = vunpack.c.l.b16 %v4518
        %v4663 = vunpack.c.l.b16 %v4519
        %v4664 = vunpack.c.l.b16 %v4520
        %v4665 = vunpack.c.l.b16 %v4521
        %v4666 = vunpack.c.l.b16 %v4522
        %v4667 = vunpack.c.l.b16 %v4523
        %v4668 = vunpack.c.l.b16 %v4524
        %v4669 = vunpack.c.l.b16 %v4525
        %v4670 = vunpack.c.l.b16 %v4526
        %v4671 = vunpack.c.l.b16 %v4527
        %v4672 = vunpack.c.l.b16 %v4528
        %v4673 = vunpack.c.l.b16 %v4529
        %v4674 = vunpack.c.l.b16 %v4530
        %v4675 = vunpack.c.l.b16 %v4531
        %v4676 = vpack.c.b16 %v4661, %v4660
        %v4677 = vpack.c.b16 %v4663, %v4662
        %v4678 = vpack.c.b16 %v4665, %v4664
        %v4679 = vpack.c.b16 %v4667, %v4666
        %v4680 = vpack.c.b16 %v4669, %v4668
        %v4681 = vpack.c.b16 %v4671, %v4670
        %v4682 = vpack.c.b16 %v4673, %v4672
        %v4683 = vpack.c.b16 %v4675, %v4674
        %4692 = vmatprep.subr.bf16.mxu0 0
        %4693 = vmatpush1.bf16.msra.mxu0 %v4676
        %4694 = vmatprep.subr.bf16.mxu0 0
        %4695 = vmatpush1.bf16.msra.mxu0 %v4677
        %4696 = vmatprep.subr.bf16.mxu0 0
        %4697 = vmatpush1.bf16.msra.mxu0 %v4678
        %4698 = vmatprep.subr.bf16.mxu0 0
        %4699 = vmatpush1.bf16.msra.mxu0 %v4679
        %4700 = vmatprep.subr.bf16.mxu0 0
        %4701 = vmatpush1.bf16.msra.mxu0 %v4680
        %4702 = vmatprep.subr.bf16.mxu0 0
        %4703 = vmatpush1.bf16.msra.mxu0 %v4681
        %4704 = vmatprep.subr.bf16.mxu0 0
        %4705 = vmatpush1.bf16.msra.mxu0 %v4682
        %4706 = vmatprep.subr.bf16.mxu0 0
        %4707 = vmatpush1.bf16.msra.mxu0 %v4683
        %4708 = vmatprep.subr.bf16.mxu0 0
        %4709 = vmatpush1.bf16.msra.mxu0 0
        %4710 = vmatprep.subr.bf16.mxu0 0
        %4711 = vmatpush1.bf16.msra.mxu0 0
        %4712 = vmatprep.subr.bf16.mxu0 0
        %4713 = vmatpush1.bf16.msra.mxu0 0
        %4714 = vmatprep.subr.bf16.mxu0 0
        %4715 = vmatpush1.bf16.msra.mxu0 0
        %4716 = vmatprep.subr.bf16.mxu0 0
        %4717 = vmatpush1.bf16.msra.mxu0 0
        %4718 = vmatprep.subr.bf16.mxu0 0
        %4719 = vmatpush1.bf16.msra.mxu0 0
        %4720 = vmatprep.subr.bf16.mxu0 0
        %4721 = vmatpush1.bf16.msra.mxu0 0
        %4722 = vmatprep.subr.bf16.mxu0 0
        %4723 = vmatpush1.bf16.msra.mxu0 0
        %4724 = vmatprep.mubr.bf16.mxu0 0
        %4725 = vmatmul.mubr.bf16.gmra.mrb[0].mxu0 %v4543
        %v4726 = vpop.f32.mrb[0].mxu0
        %v4727 = vadd.f32 0.0, %v4726
        %v4728 = vpop.f32.mrb[0].mxu0
        %v4729 = vpop.f32.mrb[0].mxu0
        %v4730 = vadd.f32 0.0, %v4729
        %v4731 = vpop.f32.mrb[0].mxu0
        %4732 = vmatprep.mubr.bf16.mxu0 0
        %4733 = vmatmul.mubr.bf16.gmra.mrb[0].mxu0 %v4551
        %v4734 = vpop.f32.mrb[0].mxu0
        %v4735 = vpop.f32.mrb[0].mxu0
        %v4736 = vpop.f32.mrb[0].mxu0
        %v4737 = vadd.f32 0.0, %v4736
        %v4738 = vpop.f32.mrb[0].mxu0
        %4739 = vmatprep.mubr.bf16.mxu0 0
        %4740 = vmatmul.mubr.bf16.gmra.mrb[0].mxu0 %v4559
        %v4741 = vpop.f32.mrb[0].mxu0
        %v4742 = vadd.f32 0.0, %v4741
        %v4743 = vpop.f32.mrb[0].mxu0
        %v4744 = vpop.f32.mrb[0].mxu0
        %v4745 = vpop.f32.mrb[0].mxu0
        %4746 = vmatprep.mubr.bf16.mxu0 0
        %4747 = vmatmul.mubr.bf16.gmra.mrb[0].mxu0 %v4567
        %v4748 = vpop.f32.mrb[0].mxu0
        %v4749 = vadd.f32 0.0, %v4748
        %v4750 = vpop.f32.mrb[0].mxu0
        %v4751 = vpop.f32.mrb[0].mxu0
        %v4752 = vadd.f32 0.0, %v4751
        %v4753 = vpop.f32.mrb[0].mxu0
        %4754 = vmatprep.mubr.bf16.mxu0 0
        %4755 = vmatmul.mubr.bf16.gmra.mrb[0].mxu0 %v4575
        %v4756 = vpop.f32.mrb[0].mxu0
        %v4757 = vpop.f32.mrb[0].mxu0
        %v4758 = vpop.f32.mrb[0].mxu0
        %v4759 = vadd.f32 0.0, %v4758
        %v4760 = vpop.f32.mrb[0].mxu0
        %4761 = vmatprep.mubr.bf16.mxu0 0
        %4762 = vmatmul.mubr.bf16.gmra.mrb[0].mxu0 %v4583
        %v4763 = vpop.f32.mrb[0].mxu0
        %v4764 = vadd.f32 0.0, %v4763
        %v4765 = vpop.f32.mrb[0].mxu0
        %v4766 = vpop.f32.mrb[0].mxu0
        %v4767 = vpop.f32.mrb[0].mxu0
        %4768 = vmatprep.mubr.bf16.mxu0 0
        %4769 = vmatmul.mubr.bf16.gmra.mrb[0].mxu0 %v4591
        %v4770 = vpop.f32.mrb[0].mxu0
        %v4771 = vadd.f32 0.0, %v4770
        %v4772 = vpop.f32.mrb[0].mxu0
        %v4773 = vpop.f32.mrb[0].mxu0
        %v4774 = vadd.f32 0.0, %v4773
        %v4775 = vpop.f32.mrb[0].mxu0
        %4776 = vmatprep.mubr.bf16.mxu0 0
        %4777 = vmatmul.mubr.bf16.gmra.mrb[0].mxu0 %v4599
        %v4778 = vpop.f32.mrb[0].mxu0
        %v4779 = vpop.f32.mrb[0].mxu0
        %v4780 = vpop.f32.mrb[0].mxu0
        %v4781 = vadd.f32 0.0, %v4780
        %v4782 = vpop.f32.mrb[0].mxu0
        %4783 = vmatprep.mubr.bf16.mxu0 0
        %4784 = vmatmul.mubr.bf16.gmra.mrb[0].mxu0 %v4607
        %v4785 = vpop.f32.mrb[0].mxu0
        %v4786 = vadd.f32 0.0, %v4785
        %v4787 = vpop.f32.mrb[0].mxu0
        %v4788 = vpop.f32.mrb[0].mxu0
        %v4789 = vpop.f32.mrb[0].mxu0
        %4790 = vmatprep.mubr.bf16.mxu0 0
        %4791 = vmatmul.mubr.bf16.gmra.mrb[0].mxu0 %v4615
        %v4792 = vpop.f32.mrb[0].mxu0
        %v4793 = vadd.f32 0.0, %v4792
        %v4794 = vpop.f32.mrb[0].mxu0
        %v4795 = vpop.f32.mrb[0].mxu0
        %v4796 = vadd.f32 0.0, %v4795
        %v4797 = vpop.f32.mrb[0].mxu0
        %4798 = vmatprep.mubr.bf16.mxu0 0
        %4799 = vmatmul.mubr.bf16.gmra.mrb[0].mxu0 %v4623
        %v4800 = vpop.f32.mrb[0].mxu0
        %v4801 = vpop.f32.mrb[0].mxu0
        %v4802 = vpop.f32.mrb[0].mxu0
        %v4803 = vadd.f32 0.0, %v4802
        %v4804 = vpop.f32.mrb[0].mxu0
        %4805 = vmatprep.mubr.bf16.mxu0 0
        %4806 = vmatmul.mubr.bf16.gmra.mrb[0].mxu0 %v4631
        %v4807 = vpop.f32.mrb[0].mxu0
        %v4808 = vadd.f32 0.0, %v4807
        %v4809 = vpop.f32.mrb[0].mxu0
        %v4810 = vpop.f32.mrb[0].mxu0
        %v4811 = vpop.f32.mrb[0].mxu0
        %4812 = vdwg.mxu0
        %v4813 = vadd.f32 %v4486, %v4727
        %v4814 = vadd.f32 %v4487, %v4730
        %v4815 = vadd.f32 %v4488, %v4737
        %v4816 = vadd.f32 %v4489, %v4742
        %v4817 = vadd.f32 %v4490, %v4749
        %v4818 = vadd.f32 %v4491, %v4752
        %v4819 = vadd.f32 %v4492, %v4759
        %v4820 = vadd.f32 %v4493, %v4764
        %v4821 = vadd.f32 %v4494, %v4771
        %v4822 = vadd.f32 %v4495, %v4774
        %v4823 = vadd.f32 %v4496, %v4781
        %v4824 = vadd.f32 %v4497, %v4786
        %v4825 = vadd.f32 %v4498, %v4793
        %v4826 = vadd.f32 %v4499, %v4796
        %v4827 = vadd.f32 %v4500, %v4803
        %v4828 = vadd.f32 %v4501, %v4808
        %v4829 = vld [vmem:[#allocation2 + $0x8] sm:$0xfe]
        %s4830 = scalar_lea.vmem [#allocation9], 320
        %v4831 = vld [vmem:[%s4830] sm:$0xf]
        %v4832 = vld [vmem:[%s4830 + $0x4] sm:$0xf]
        %v4833 = vld [vmem:[%s4830 + $0x8] sm:$0xf]
        %v4834 = vld [vmem:[%s4830 + $0xc] sm:$0xf]
        %v4835 = vld [vmem:[%s4830 + $0x10] sm:$0xf]
        %v4836 = vld [vmem:[%s4830 + $0x14] sm:$0xf]
        %v4837 = vld [vmem:[%s4830 + $0x18] sm:$0xf]
        %v4838 = vld [vmem:[%s4830 + $0x1c] sm:$0xf]
        %v4839 = vld [vmem:[%s4830 + $0x20] sm:$0xf]
        %v4840 = vld [vmem:[%s4830 + $0x24] sm:$0xf]
        %v4841 = vld [vmem:[%s4830 + $0x28] sm:$0xf]
        %v4842 = vld [vmem:[%s4830 + $0x2c] sm:$0xf]
        %v4843 = vld [vmem:[%s4830 + $0x30] sm:$0xf]
        %v4844 = vld [vmem:[%s4830 + $0x34] sm:$0xf]
        %v4845 = vld [vmem:[%s4830 + $0x38] sm:$0xf]
        %v4846 = vld [vmem:[%s4830 + $0x3c] sm:$0xf]
        %v4860 = vrot.slane %v4829, 1
        %v4861 = vrot.slane %v4503, 1
        %v4862 = vsel %vm2868, %v4860, %v4861
        %v4863 = vrot.slane %v4504, 1
        %v4864 = vsel %vm2868, %v4861, %v4863
        %v4865 = vrot.slane %v4505, 1
        %v4866 = vsel %vm2868, %v4863, %v4865
        %v4867 = vrot.slane %v4506, 1
        %v4868 = vsel %vm2868, %v4865, %v4867
        %v4869 = vrot.slane %v4507, 1
        %v4870 = vsel %vm2868, %v4867, %v4869
        %v4871 = vrot.slane %v4508, 1
        %v4872 = vsel %vm2868, %v4869, %v4871
        %v4873 = vrot.slane %v4509, 1
        %v4874 = vsel %vm2868, %v4871, %v4873
        %v4875 = vrot.slane %v4510, 1
        %v4876 = vsel %vm2868, %v4873, %v4875
        %v4877 = vrot.slane %v4511, 1
        %v4878 = vsel %vm2868, %v4875, %v4877
        %v4879 = vrot.slane %v4512, 1
        %v4880 = vsel %vm2868, %v4877, %v4879
        %v4881 = vrot.slane %v4513, 1
        %v4882 = vsel %vm2868, %v4879, %v4881
        %v4883 = vrot.slane %v4514, 1
        %v4884 = vsel %vm2868, %v4881, %v4883
        %v4913 = vunpack.c.l.b16 %v4831
        %v4914 = vunpack.c.l.b16 %v4832
        %v4915 = vunpack.c.l.b16 %v4833
        %v4916 = vunpack.c.l.b16 %v4834
        %v4917 = vunpack.c.l.b16 %v4835
        %v4918 = vunpack.c.l.b16 %v4836
        %v4919 = vunpack.c.l.b16 %v4837
        %v4920 = vunpack.c.l.b16 %v4838
        %v4921 = vunpack.c.l.b16 %v4839
        %v4922 = vunpack.c.l.b16 %v4840
        %v4923 = vunpack.c.l.b16 %v4841
        %v4924 = vunpack.c.l.b16 %v4842
        %v4925 = vunpack.c.l.b16 %v4843
        %v4926 = vunpack.c.l.b16 %v4844
        %v4927 = vunpack.c.l.b16 %v4845
        %v4928 = vunpack.c.l.b16 %v4846
        %v4929 = vpack.c.b16 %v4914, %v4913
        %v4930 = vpack.c.b16 %v4916, %v4915
        %v4931 = vpack.c.b16 %v4918, %v4917
        %v4932 = vpack.c.b16 %v4920, %v4919
        %v4933 = vpack.c.b16 %v4922, %v4921
        %v4934 = vpack.c.b16 %v4924, %v4923
        %v4935 = vpack.c.b16 %v4926, %v4925
        %v4936 = vpack.c.b16 %v4928, %v4927
        %4945 = vmatprep.subr.bf16.mxu0 0
        %4946 = vmatpush1.bf16.msra.mxu0 %v4929
        %4947 = vmatprep.subr.bf16.mxu0 0
        %4948 = vmatpush1.bf16.msra.mxu0 %v4930
        %4949 = vmatprep.subr.bf16.mxu0 0
        %4950 = vmatpush1.bf16.msra.mxu0 %v4931
        %4951 = vmatprep.subr.bf16.mxu0 0
        %4952 = vmatpush1.bf16.msra.mxu0 %v4932
        %4953 = vmatprep.subr.bf16.mxu0 0
        %4954 = vmatpush1.bf16.msra.mxu0 %v4933
        %4955 = vmatprep.subr.bf16.mxu0 0
        %4956 = vmatpush1.bf16.msra.mxu0 %v4934
        %4957 = vmatprep.subr.bf16.mxu0 0
        %4958 = vmatpush1.bf16.msra.mxu0 %v4935
        %4959 = vmatprep.subr.bf16.mxu0 0
        %4960 = vmatpush1.bf16.msra.mxu0 %v4936
        %4961 = vmatprep.subr.bf16.mxu0 0
        %4962 = vmatpush1.bf16.msra.mxu0 0
        %4963 = vmatprep.subr.bf16.mxu0 0
        %4964 = vmatpush1.bf16.msra.mxu0 0
        %4965 = vmatprep.subr.bf16.mxu0 0
        %4966 = vmatpush1.bf16.msra.mxu0 0
        %4967 = vmatprep.subr.bf16.mxu0 0
        %4968 = vmatpush1.bf16.msra.mxu0 0
        %4969 = vmatprep.subr.bf16.mxu0 0
        %4970 = vmatpush1.bf16.msra.mxu0 0
        %4971 = vmatprep.subr.bf16.mxu0 0
        %4972 = vmatpush1.bf16.msra.mxu0 0
        %4973 = vmatprep.subr.bf16.mxu0 0
        %4974 = vmatpush1.bf16.msra.mxu0 0
        %4975 = vmatprep.subr.bf16.mxu0 0
        %4976 = vmatpush1.bf16.msra.mxu0 0
        %4977 = vmatprep.mubr.bf16.mxu0 0
        %4978 = vmatmul.mubr.bf16.gmra.mrb[0].mxu0 %v4862
        %v4979 = vpop.f32.mrb[0].mxu0
        %v4980 = vadd.f32 0.0, %v4979
        %v4981 = vpop.f32.mrb[0].mxu0
        %v4982 = vpop.f32.mrb[0].mxu0
        %v4983 = vadd.f32 0.0, %v4982
        %v4984 = vpop.f32.mrb[0].mxu0
        %4985 = vmatprep.mubr.bf16.mxu0 0
        %4986 = vmatmul.mubr.bf16.gmra.mrb[0].mxu0 %v4864
        %v4987 = vpop.f32.mrb[0].mxu0
        %v4988 = vpop.f32.mrb[0].mxu0
        %v4989 = vpop.f32.mrb[0].mxu0
        %v4990 = vadd.f32 0.0, %v4989
        %v4991 = vpop.f32.mrb[0].mxu0
        %4992 = vmatprep.mubr.bf16.mxu0 0
        %4993 = vmatmul.mubr.bf16.gmra.mrb[0].mxu0 %v4866
        %v4994 = vpop.f32.mrb[0].mxu0
        %v4995 = vadd.f32 0.0, %v4994
        %v4996 = vpop.f32.mrb[0].mxu0
        %v4997 = vpop.f32.mrb[0].mxu0
        %v4998 = vpop.f32.mrb[0].mxu0
        %4999 = vmatprep.mubr.bf16.mxu0 0
        %5000 = vmatmul.mubr.bf16.gmra.mrb[0].mxu0 %v4868
        %v5001 = vpop.f32.mrb[0].mxu0
        %v5002 = vadd.f32 0.0, %v5001
        %v5003 = vpop.f32.mrb[0].mxu0
        %v5004 = vpop.f32.mrb[0].mxu0
        %v5005 = vadd.f32 0.0, %v5004
        %v5006 = vpop.f32.mrb[0].mxu0
        %5007 = vmatprep.mubr.bf16.mxu0 0
        %5008 = vmatmul.mubr.bf16.gmra.mrb[0].mxu0 %v4870
        %v5009 = vpop.f32.mrb[0].mxu0
        %v5010 = vpop.f32.mrb[0].mxu0
        %v5011 = vpop.f32.mrb[0].mxu0
        %v5012 = vadd.f32 0.0, %v5011
        %v5013 = vpop.f32.mrb[0].mxu0
        %5014 = vmatprep.mubr.bf16.mxu0 0
        %5015 = vmatmul.mubr.bf16.gmra.mrb[0].mxu0 %v4872
        %v5016 = vpop.f32.mrb[0].mxu0
        %v5017 = vadd.f32 0.0, %v5016
        %v5018 = vpop.f32.mrb[0].mxu0
        %v5019 = vpop.f32.mrb[0].mxu0
        %v5020 = vpop.f32.mrb[0].mxu0
        %5021 = vmatprep.mubr.bf16.mxu0 0
        %5022 = vmatmul.mubr.bf16.gmra.mrb[0].mxu0 %v4874
        %v5023 = vpop.f32.mrb[0].mxu0
        %v5024 = vadd.f32 0.0, %v5023
        %v5025 = vpop.f32.mrb[0].mxu0
        %v5026 = vpop.f32.mrb[0].mxu0
        %v5027 = vadd.f32 0.0, %v5026
        %v5028 = vpop.f32.mrb[0].mxu0
        %5029 = vmatprep.mubr.bf16.mxu0 0
        %5030 = vmatmul.mubr.bf16.gmra.mrb[0].mxu0 %v4876
        %v5031 = vpop.f32.mrb[0].mxu0
        %v5032 = vpop.f32.mrb[0].mxu0
        %v5033 = vpop.f32.mrb[0].mxu0
        %v5034 = vadd.f32 0.0, %v5033
        %v5035 = vpop.f32.mrb[0].mxu0
        %5036 = vmatprep.mubr.bf16.mxu0 0
        %5037 = vmatmul.mubr.bf16.gmra.mrb[0].mxu0 %v4878
        %v5038 = vpop.f32.mrb[0].mxu0
        %v5039 = vadd.f32 0.0, %v5038
        %v5040 = vpop.f32.mrb[0].mxu0
        %v5041 = vpop.f32.mrb[0].mxu0
        %v5042 = vpop.f32.mrb[0].mxu0
        %5043 = vmatprep.mubr.bf16.mxu0 0
        %5044 = vmatmul.mubr.bf16.gmra.mrb[0].mxu0 %v4880
        %v5045 = vpop.f32.mrb[0].mxu0
        %v5046 = vadd.f32 0.0, %v5045
        %v5047 = vpop.f32.mrb[0].mxu0
        %v5048 = vpop.f32.mrb[0].mxu0
        %v5049 = vadd.f32 0.0, %v5048
        %v5050 = vpop.f32.mrb[0].mxu0
        %5051 = vmatprep.mubr.bf16.mxu0 0
        %5052 = vmatmul.mubr.bf16.gmra.mrb[0].mxu0 %v4882
        %v5053 = vpop.f32.mrb[0].mxu0
        %v5054 = vpop.f32.mrb[0].mxu0
        %v5055 = vpop.f32.mrb[0].mxu0
        %v5056 = vadd.f32 0.0, %v5055
        %v5057 = vpop.f32.mrb[0].mxu0
        %5058 = vmatprep.mubr.bf16.mxu0 0
        %5059 = vmatmul.mubr.bf16.gmra.mrb[0].mxu0 %v4884
        %v5060 = vpop.f32.mrb[0].mxu0
        %v5061 = vadd.f32 0.0, %v5060
        %v5062 = vpop.f32.mrb[0].mxu0
        %v5063 = vpop.f32.mrb[0].mxu0
        %v5064 = vpop.f32.mrb[0].mxu0
        %5065 = vdwg.mxu0
        %v5066 = vadd.f32 %v4813, %v4980
        %v5067 = vadd.f32 %v4814, %v4983
        %v5068 = vadd.f32 %v4815, %v4990
        %v5069 = vadd.f32 %v4816, %v4995
        %v5070 = vadd.f32 %v4817, %v5002
        %v5071 = vadd.f32 %v4818, %v5005
        %v5072 = vadd.f32 %v4819, %v5012
        %v5073 = vadd.f32 %v4820, %v5017
        %v5074 = vadd.f32 %v4821, %v5024
        %v5075 = vadd.f32 %v4822, %v5027
        %v5076 = vadd.f32 %v4823, %v5034
        %v5077 = vadd.f32 %v4824, %v5039
        %v5078 = vadd.f32 %v4825, %v5046
        %v5079 = vadd.f32 %v4826, %v5049
        %v5080 = vadd.f32 %v4827, %v5056
        %v5081 = vadd.f32 %v4828, %v5061
        %v5082 = vld [vmem:[#allocation2 + $0x68] sm:$0x3]
        %s5083 = scalar_lea.vmem [#allocation9], 384
        %v5084 = vld [vmem:[%s5083] sm:$0xf]
        %v5085 = vld [vmem:[%s5083 + $0x4] sm:$0xf]
        %v5086 = vld [vmem:[%s5083 + $0x8] sm:$0xf]
        %v5087 = vld [vmem:[%s5083 + $0xc] sm:$0xf]
        %v5088 = vld [vmem:[%s5083 + $0x10] sm:$0xf]
        %v5089 = vld [vmem:[%s5083 + $0x14] sm:$0xf]
        %v5090 = vld [vmem:[%s5083 + $0x18] sm:$0xf]
        %v5091 = vld [vmem:[%s5083 + $0x1c] sm:$0xf]
        %v5092 = vld [vmem:[%s5083 + $0x20] sm:$0xf]
        %v5093 = vld [vmem:[%s5083 + $0x24] sm:$0xf]
        %v5094 = vld [vmem:[%s5083 + $0x28] sm:$0xf]
        %v5095 = vld [vmem:[%s5083 + $0x2c] sm:$0xf]
        %v5096 = vld [vmem:[%s5083 + $0x30] sm:$0xf]
        %v5097 = vld [vmem:[%s5083 + $0x34] sm:$0xf]
        %v5098 = vld [vmem:[%s5083 + $0x38] sm:$0xf]
        %v5099 = vld [vmem:[%s5083 + $0x3c] sm:$0xf]
        %v5101 = vshrl.u32 %v4829, 16
        %v5103 = vrot.slane %v5101, 1
        %v5104 = vshll.u32 %v4829, 16
        %v5106 = vrot.slane %v5104, 2
        %v5107 = vor.u32 %v5103, %v5106
        %v5108 = vrot.slane %v4544, 1
        %v5109 = vrot.slane %v4540, 2
        %v5110 = vor.u32 %v5108, %v5109
        %v5111 = vsel %vm3109, %v5107, %v5110
        %v5112 = vrot.slane %v4552, 1
        %v5113 = vrot.slane %v4548, 2
        %v5114 = vor.u32 %v5112, %v5113
        %v5115 = vsel %vm3109, %v5110, %v5114
        %v5116 = vrot.slane %v4560, 1
        %v5117 = vrot.slane %v4556, 2
        %v5118 = vor.u32 %v5116, %v5117
        %v5119 = vsel %vm3109, %v5114, %v5118
        %v5120 = vrot.slane %v4568, 1
        %v5121 = vrot.slane %v4564, 2
        %v5122 = vor.u32 %v5120, %v5121
        %v5123 = vsel %vm3109, %v5118, %v5122
        %v5124 = vrot.slane %v4576, 1
        %v5125 = vrot.slane %v4572, 2
        %v5126 = vor.u32 %v5124, %v5125
        %v5127 = vsel %vm3109, %v5122, %v5126
        %v5128 = vrot.slane %v4584, 1
        %v5129 = vrot.slane %v4580, 2
        %v5130 = vor.u32 %v5128, %v5129
        %v5131 = vsel %vm3109, %v5126, %v5130
        %v5132 = vrot.slane %v4592, 1
        %v5133 = vrot.slane %v4588, 2
        %v5134 = vor.u32 %v5132, %v5133
        %v5135 = vsel %vm3109, %v5130, %v5134
        %v5136 = vrot.slane %v4600, 1
        %v5137 = vrot.slane %v4596, 2
        %v5138 = vor.u32 %v5136, %v5137
        %v5139 = vsel %vm3109, %v5134, %v5138
        %v5140 = vrot.slane %v4608, 1
        %v5141 = vrot.slane %v4604, 2
        %v5142 = vor.u32 %v5140, %v5141
        %v5143 = vsel %vm3109, %v5138, %v5142
        %v5144 = vrot.slane %v4616, 1
        %v5145 = vrot.slane %v4612, 2
        %v5146 = vor.u32 %v5144, %v5145
        %v5147 = vsel %vm3109, %v5142, %v5146
        %v5148 = vrot.slane %v4624, 1
        %v5149 = vrot.slane %v4620, 2
        %v5150 = vor.u32 %v5148, %v5149
        %v5151 = vsel %vm3109, %v5146, %v5150
        %v5153 = vshrl.u32 %v5082, 16
        %v5155 = vrot.slane %v5153, 1
        %v5156 = vshll.u32 %v5082, 16
        %v5158 = vrot.slane %v5156, 2
        %v5159 = vor.u32 %v5155, %v5158
        %v5160 = vsel %vm3109, %v5150, %v5159
        %v5189 = vunpack.c.l.b16 %v5084
        %v5190 = vunpack.c.l.b16 %v5085
        %v5191 = vunpack.c.l.b16 %v5086
        %v5192 = vunpack.c.l.b16 %v5087
        %v5193 = vunpack.c.l.b16 %v5088
        %v5194 = vunpack.c.l.b16 %v5089
        %v5195 = vunpack.c.l.b16 %v5090
        %v5196 = vunpack.c.l.b16 %v5091
        %v5197 = vunpack.c.l.b16 %v5092
        %v5198 = vunpack.c.l.b16 %v5093
        %v5199 = vunpack.c.l.b16 %v5094
        %v5200 = vunpack.c.l.b16 %v5095
        %v5201 = vunpack.c.l.b16 %v5096
        %v5202 = vunpack.c.l.b16 %v5097
        %v5203 = vunpack.c.l.b16 %v5098
        %v5204 = vunpack.c.l.b16 %v5099
        %v5205 = vpack.c.b16 %v5190, %v5189
        %v5206 = vpack.c.b16 %v5192, %v5191
        %v5207 = vpack.c.b16 %v5194, %v5193
        %v5208 = vpack.c.b16 %v5196, %v5195
        %v5209 = vpack.c.b16 %v5198, %v5197
        %v5210 = vpack.c.b16 %v5200, %v5199
        %v5211 = vpack.c.b16 %v5202, %v5201
        %v5212 = vpack.c.b16 %v5204, %v5203
        %5221 = vmatprep.subr.bf16.mxu0 0
        %5222 = vmatpush1.bf16.msra.mxu0 %v5205
        %5223 = vmatprep.subr.bf16.mxu0 0
        %5224 = vmatpush1.bf16.msra.mxu0 %v5206
        %5225 = vmatprep.subr.bf16.mxu0 0
        %5226 = vmatpush1.bf16.msra.mxu0 %v5207
        %5227 = vmatprep.subr.bf16.mxu0 0
        %5228 = vmatpush1.bf16.msra.mxu0 %v5208
        %5229 = vmatprep.subr.bf16.mxu0 0
        %5230 = vmatpush1.bf16.msra.mxu0 %v5209
        %5231 = vmatprep.subr.bf16.mxu0 0
        %5232 = vmatpush1.bf16.msra.mxu0 %v5210
        %5233 = vmatprep.subr.bf16.mxu0 0
        %5234 = vmatpush1.bf16.msra.mxu0 %v5211
        %5235 = vmatprep.subr.bf16.mxu0 0
        %5236 = vmatpush1.bf16.msra.mxu0 %v5212
        %5237 = vmatprep.subr.bf16.mxu0 0
        %5238 = vmatpush1.bf16.msra.mxu0 0
        %5239 = vmatprep.subr.bf16.mxu0 0
        %5240 = vmatpush1.bf16.msra.mxu0 0
        %5241 = vmatprep.subr.bf16.mxu0 0
        %5242 = vmatpush1.bf16.msra.mxu0 0
        %5243 = vmatprep.subr.bf16.mxu0 0
        %5244 = vmatpush1.bf16.msra.mxu0 0
        %5245 = vmatprep.subr.bf16.mxu0 0
        %5246 = vmatpush1.bf16.msra.mxu0 0
        %5247 = vmatprep.subr.bf16.mxu0 0
        %5248 = vmatpush1.bf16.msra.mxu0 0
        %5249 = vmatprep.subr.bf16.mxu0 0
        %5250 = vmatpush1.bf16.msra.mxu0 0
        %5251 = vmatprep.subr.bf16.mxu0 0
        %5252 = vmatpush1.bf16.msra.mxu0 0
        %5253 = vmatprep.mubr.bf16.mxu0 0
        %5254 = vmatmul.mubr.bf16.gmra.mrb[0].mxu0 %v5111
        %v5255 = vpop.f32.mrb[0].mxu0
        %v5256 = vadd.f32 0.0, %v5255
        %v5257 = vpop.f32.mrb[0].mxu0
        %v5258 = vpop.f32.mrb[0].mxu0
        %v5259 = vadd.f32 0.0, %v5258
        %v5260 = vpop.f32.mrb[0].mxu0
        %5261 = vmatprep.mubr.bf16.mxu0 0
        %5262 = vmatmul.mubr.bf16.gmra.mrb[0].mxu0 %v5115
        %v5263 = vpop.f32.mrb[0].mxu0
        %v5264 = vpop.f32.mrb[0].mxu0
        %v5265 = vpop.f32.mrb[0].mxu0
        %v5266 = vadd.f32 0.0, %v5265
        %v5267 = vpop.f32.mrb[0].mxu0
        %5268 = vmatprep.mubr.bf16.mxu0 0
        %5269 = vmatmul.mubr.bf16.gmra.mrb[0].mxu0 %v5119
        %v5270 = vpop.f32.mrb[0].mxu0
        %v5271 = vadd.f32 0.0, %v5270
        %v5272 = vpop.f32.mrb[0].mxu0
        %v5273 = vpop.f32.mrb[0].mxu0
        %v5274 = vpop.f32.mrb[0].mxu0
        %5275 = vmatprep.mubr.bf16.mxu0 0
        %5276 = vmatmul.mubr.bf16.gmra.mrb[0].mxu0 %v5123
        %v5277 = vpop.f32.mrb[0].mxu0
        %v5278 = vadd.f32 0.0, %v5277
        %v5279 = vpop.f32.mrb[0].mxu0
        %v5280 = vpop.f32.mrb[0].mxu0
        %v5281 = vadd.f32 0.0, %v5280
        %v5282 = vpop.f32.mrb[0].mxu0
        %5283 = vmatprep.mubr.bf16.mxu0 0
        %5284 = vmatmul.mubr.bf16.gmra.mrb[0].mxu0 %v5127
        %v5285 = vpop.f32.mrb[0].mxu0
        %v5286 = vpop.f32.mrb[0].mxu0
        %v5287 = vpop.f32.mrb[0].mxu0
        %v5288 = vadd.f32 0.0, %v5287
        %v5289 = vpop.f32.mrb[0].mxu0
        %5290 = vmatprep.mubr.bf16.mxu0 0
        %5291 = vmatmul.mubr.bf16.gmra.mrb[0].mxu0 %v5131
        %v5292 = vpop.f32.mrb[0].mxu0
        %v5293 = vadd.f32 0.0, %v5292
        %v5294 = vpop.f32.mrb[0].mxu0
        %v5295 = vpop.f32.mrb[0].mxu0
        %v5296 = vpop.f32.mrb[0].mxu0
        %5297 = vmatprep.mubr.bf16.mxu0 0
        %5298 = vmatmul.mubr.bf16.gmra.mrb[0].mxu0 %v5135
        %v5299 = vpop.f32.mrb[0].mxu0
        %v5300 = vadd.f32 0.0, %v5299
        %v5301 = vpop.f32.mrb[0].mxu0
        %v5302 = vpop.f32.mrb[0].mxu0
        %v5303 = vadd.f32 0.0, %v5302
        %v5304 = vpop.f32.mrb[0].mxu0
        %5305 = vmatprep.mubr.bf16.mxu0 0
        %5306 = vmatmul.mubr.bf16.gmra.mrb[0].mxu0 %v5139
        %v5307 = vpop.f32.mrb[0].mxu0
        %v5308 = vpop.f32.mrb[0].mxu0
        %v5309 = vpop.f32.mrb[0].mxu0
        %v5310 = vadd.f32 0.0, %v5309
        %v5311 = vpop.f32.mrb[0].mxu0
        %5312 = vmatprep.mubr.bf16.mxu0 0
        %5313 = vmatmul.mubr.bf16.gmra.mrb[0].mxu0 %v5143
        %v5314 = vpop.f32.mrb[0].mxu0
        %v5315 = vadd.f32 0.0, %v5314
        %v5316 = vpop.f32.mrb[0].mxu0
        %v5317 = vpop.f32.mrb[0].mxu0
        %v5318 = vpop.f32.mrb[0].mxu0
        %5319 = vmatprep.mubr.bf16.mxu0 0
        %5320 = vmatmul.mubr.bf16.gmra.mrb[0].mxu0 %v5147
        %v5321 = vpop.f32.mrb[0].mxu0
        %v5322 = vadd.f32 0.0, %v5321
        %v5323 = vpop.f32.mrb[0].mxu0
        %v5324 = vpop.f32.mrb[0].mxu0
        %v5325 = vadd.f32 0.0, %v5324
        %v5326 = vpop.f32.mrb[0].mxu0
        %5327 = vmatprep.mubr.bf16.mxu0 0
        %5328 = vmatmul.mubr.bf16.gmra.mrb[0].mxu0 %v5151
        %v5329 = vpop.f32.mrb[0].mxu0
        %v5330 = vpop.f32.mrb[0].mxu0
        %v5331 = vpop.f32.mrb[0].mxu0
        %v5332 = vadd.f32 0.0, %v5331
        %v5333 = vpop.f32.mrb[0].mxu0
        %5334 = vmatprep.mubr.bf16.mxu0 0
        %5335 = vmatmul.mubr.bf16.gmra.mrb[0].mxu0 %v5160
        %v5336 = vpop.f32.mrb[0].mxu0
        %v5337 = vadd.f32 0.0, %v5336
        %v5338 = vpop.f32.mrb[0].mxu0
        %v5339 = vpop.f32.mrb[0].mxu0
        %v5340 = vpop.f32.mrb[0].mxu0
        %5341 = vdwg.mxu0
        %v5342 = vadd.f32 %v5066, %v5256
        %v5343 = vadd.f32 %v5067, %v5259
        %v5344 = vadd.f32 %v5068, %v5266
        %v5345 = vadd.f32 %v5069, %v5271
        %v5346 = vadd.f32 %v5070, %v5278
        %v5347 = vadd.f32 %v5071, %v5281
        %v5348 = vadd.f32 %v5072, %v5288
        %v5349 = vadd.f32 %v5073, %v5293
        %v5350 = vadd.f32 %v5074, %v5300
        %v5351 = vadd.f32 %v5075, %v5303
        %v5352 = vadd.f32 %v5076, %v5310
        %v5353 = vadd.f32 %v5077, %v5315
        %v5354 = vadd.f32 %v5078, %v5322
        %v5355 = vadd.f32 %v5079, %v5325
        %v5356 = vadd.f32 %v5080, %v5332
        %v5357 = vadd.f32 %v5081, %v5337
        %v5358 = vld [vmem:[%s10] sm:$0x1]
        %v5360 = vlaneseq
        %v5361 = vshrl.u32 %v5360, 7
        %v5362 = vsub.s32 0, %v5361
        %v5363 = vrot.slane %v5358, %v5362
        %v5365 = vadd.f32 %v5342, %v5363
        %v5366 = vadd.f32 %v5343, %v5363
        %v5367 = vadd.f32 %v5344, %v5363
        %v5368 = vadd.f32 %v5345, %v5363
        %v5369 = vadd.f32 %v5346, %v5363
        %v5370 = vadd.f32 %v5347, %v5363
        %v5371 = vadd.f32 %v5348, %v5363
        %v5372 = vadd.f32 %v5349, %v5363
        %v5373 = vadd.f32 %v5350, %v5363
        %v5374 = vadd.f32 %v5351, %v5363
        %v5375 = vadd.f32 %v5352, %v5363
        %v5376 = vadd.f32 %v5353, %v5363
        %v5377 = vadd.f32 %v5354, %v5363
        %v5378 = vadd.f32 %v5355, %v5363
        %v5379 = vadd.f32 %v5356, %v5363
        %v5380 = vadd.f32 %v5357, %v5363
        %v5381 = vmax.f32 %v5365, 0.0
        %v5382 = vmax.f32 %v5366, 0.0
        %v5383 = vmax.f32 %v5367, 0.0
        %v5384 = vmax.f32 %v5368, 0.0
        %v5385 = vmax.f32 %v5369, 0.0
        %v5386 = vmax.f32 %v5370, 0.0
        %v5387 = vmax.f32 %v5371, 0.0
        %v5388 = vmax.f32 %v5372, 0.0
        %v5389 = vmax.f32 %v5373, 0.0
        %v5390 = vmax.f32 %v5374, 0.0
        %v5391 = vmax.f32 %v5375, 0.0
        %v5392 = vmax.f32 %v5376, 0.0
        %v5393 = vmax.f32 %v5377, 0.0
        %v5394 = vmax.f32 %v5378, 0.0
        %v5395 = vmax.f32 %v5379, 0.0
        %v5396 = vmax.f32 %v5380, 0.0
        %v5397 = vld [vmem:[%s11] sm:$0x1]
        %v5399 = vlaneseq
        %v5400 = vshrl.u32 %v5399, 7
        %v5401 = vsub.s32 0, %v5400
        %v5402 = vrot.slane %v5397, %v5401
        %v5404 = vmul.f32 %v5381, %v5402
        %v5405 = vmul.f32 %v5382, %v5402
        %v5406 = vmul.f32 %v5383, %v5402
        %v5407 = vmul.f32 %v5384, %v5402
        %v5408 = vmul.f32 %v5385, %v5402
        %v5409 = vmul.f32 %v5386, %v5402
        %v5410 = vmul.f32 %v5387, %v5402
        %v5411 = vmul.f32 %v5388, %v5402
        %v5412 = vmul.f32 %v5389, %v5402
        %v5413 = vmul.f32 %v5390, %v5402
        %v5414 = vmul.f32 %v5391, %v5402
        %v5415 = vmul.f32 %v5392, %v5402
        %v5416 = vmul.f32 %v5393, %v5402
        %v5417 = vmul.f32 %v5394, %v5402
        %v5418 = vmul.f32 %v5395, %v5402
        %v5419 = vmul.f32 %v5396, %v5402
        %v5420 = vld [vmem:[%s12] sm:$0x1]
        %v5422 = vlaneseq
        %v5423 = vshrl.u32 %v5422, 7
        %v5424 = vsub.s32 0, %v5423
        %v5425 = vrot.slane %v5420, %v5424
        %v5427 = vadd.f32 %v5404, %v5425
        %v5428 = vadd.f32 %v5405, %v5425
        %v5429 = vadd.f32 %v5406, %v5425
        %v5430 = vadd.f32 %v5407, %v5425
        %v5431 = vadd.f32 %v5408, %v5425
        %v5432 = vadd.f32 %v5409, %v5425
        %v5433 = vadd.f32 %v5410, %v5425
        %v5434 = vadd.f32 %v5411, %v5425
        %v5435 = vadd.f32 %v5412, %v5425
        %v5436 = vadd.f32 %v5413, %v5425
        %v5437 = vadd.f32 %v5414, %v5425
        %v5438 = vadd.f32 %v5415, %v5425
        %v5439 = vadd.f32 %v5416, %v5425
        %v5440 = vadd.f32 %v5417, %v5425
        %v5441 = vadd.f32 %v5418, %v5425
        %v5442 = vadd.f32 %v5419, %v5425
        %v5443 = vadd.f32 %v5427, %v5428
        %v5444 = vrot.slane %v5443, 4
        %v5445 = vadd.f32 %v5443, %v5444
        %v5446 = vrot.slane %v5445, 2
        %v5447 = vadd.f32 %v5445, %v5446
        %v5448 = vrot.slane %v5447, 1
        %v5449 = vadd.f32 %v5447, %v5448
        %v5450 = vadd.f32 %v5429, %v5430
        %v5451 = vrot.slane %v5450, 4
        %v5452 = vadd.f32 %v5450, %v5451
        %v5453 = vrot.slane %v5452, 2
        %v5454 = vadd.f32 %v5452, %v5453
        %v5455 = vrot.slane %v5454, 1
        %v5456 = vadd.f32 %v5454, %v5455
        %v5457 = vadd.f32 %v5431, %v5432
        %v5458 = vrot.slane %v5457, 4
        %v5459 = vadd.f32 %v5457, %v5458
        %v5460 = vrot.slane %v5459, 2
        %v5461 = vadd.f32 %v5459, %v5460
        %v5462 = vrot.slane %v5461, 1
        %v5463 = vadd.f32 %v5461, %v5462
        %v5464 = vadd.f32 %v5433, %v5434
        %v5465 = vrot.slane %v5464, 4
        %v5466 = vadd.f32 %v5464, %v5465
        %v5467 = vrot.slane %v5466, 2
        %v5468 = vadd.f32 %v5466, %v5467
        %v5469 = vrot.slane %v5468, 1
        %v5470 = vadd.f32 %v5468, %v5469
        %v5471 = vadd.f32 %v5435, %v5436
        %v5472 = vrot.slane %v5471, 4
        %v5473 = vadd.f32 %v5471, %v5472
        %v5474 = vrot.slane %v5473, 2
        %v5475 = vadd.f32 %v5473, %v5474
        %v5476 = vrot.slane %v5475, 1
        %v5477 = vadd.f32 %v5475, %v5476
        %v5478 = vadd.f32 %v5437, %v5438
        %v5479 = vrot.slane %v5478, 4
        %v5480 = vadd.f32 %v5478, %v5479
        %v5481 = vrot.slane %v5480, 2
        %v5482 = vadd.f32 %v5480, %v5481
        %v5483 = vrot.slane %v5482, 1
        %v5484 = vadd.f32 %v5482, %v5483
        %v5485 = vadd.f32 %v5439, %v5440
        %v5486 = vrot.slane %v5485, 4
        %v5487 = vadd.f32 %v5485, %v5486
        %v5488 = vrot.slane %v5487, 2
        %v5489 = vadd.f32 %v5487, %v5488
        %v5490 = vrot.slane %v5489, 1
        %v5491 = vadd.f32 %v5489, %v5490
        %v5492 = vadd.f32 %v5441, %v5442
        %v5493 = vrot.slane %v5492, 4
        %v5494 = vadd.f32 %v5492, %v5493
        %v5495 = vrot.slane %v5494, 2
        %v5496 = vadd.f32 %v5494, %v5495
        %v5497 = vrot.slane %v5496, 1
        %v5498 = vadd.f32 %v5496, %v5497
        %v5499 = vmul.f32 %v5449, 0.0625
        %v5500 = vmul.f32 %v5456, 0.0625
        %v5501 = vmul.f32 %v5463, 0.0625
        %v5502 = vmul.f32 %v5470, 0.0625
        %v5503 = vmul.f32 %v5477, 0.0625
        %v5504 = vmul.f32 %v5484, 0.0625
        %v5505 = vmul.f32 %v5491, 0.0625
        %v5506 = vmul.f32 %v5498, 0.0625
        %v5507 = vpack.c.bf16 %v5499, %v5499
        %v5508 = vpack.c.bf16 %v5500, %v5500
        %v5509 = vpack.c.bf16 %v5501, %v5501
        %v5510 = vpack.c.bf16 %v5502, %v5502
        %v5511 = vpack.c.bf16 %v5503, %v5503
        %v5512 = vpack.c.bf16 %v5504, %v5504
        %v5513 = vpack.c.bf16 %v5505, %v5505
        %v5514 = vpack.c.bf16 %v5506, %v5506
        %v5515 = vld [vmem:[#allocation11] sm:$0xf]
        %v5516 = vld [vmem:[#allocation11 + $0x4] sm:$0xf]
        %v5517 = vld [vmem:[#allocation11 + $0x8] sm:$0xf]
        %v5518 = vld [vmem:[#allocation11 + $0xc] sm:$0xf]
        %v5519 = vld [vmem:[#allocation11 + $0x10] sm:$0xf]
        %v5520 = vld [vmem:[#allocation11 + $0x14] sm:$0xf]
        %v5521 = vld [vmem:[#allocation11 + $0x18] sm:$0xf]
        %v5522 = vld [vmem:[#allocation11 + $0x1c] sm:$0xf]
        %v5523 = vld [vmem:[#allocation11 + $0x20] sm:$0xf]
        %v5524 = vld [vmem:[#allocation11 + $0x24] sm:$0xf]
        %v5525 = vld [vmem:[#allocation11 + $0x28] sm:$0xf]
        %v5526 = vld [vmem:[#allocation11 + $0x2c] sm:$0xf]
        %v5527 = vld [vmem:[#allocation11 + $0x30] sm:$0xf]
        %v5528 = vld [vmem:[#allocation11 + $0x34] sm:$0xf]
        %v5529 = vld [vmem:[#allocation11 + $0x38] sm:$0xf]
        %v5530 = vld [vmem:[#allocation11 + $0x3c] sm:$0xf]
        %v5531 = vld [vmem:[%s14] sm:$0x1]
        %v5533 = vlaneseq
        %v5534 = vshrl.u32 %v5533, 7
        %v5535 = vsub.s32 0, %v5534
        %v5536 = vrot.slane %v5531, %v5535
        %v5546 = vunpack.c.l.b16 %v5507
        %v5547 = vunpack.c.l.b16 %v5508
        %v5548 = vunpack.c.l.b16 %v5509
        %v5549 = vunpack.c.l.b16 %v5510
        %v5550 = vunpack.c.l.b16 %v5511
        %v5551 = vunpack.c.l.b16 %v5512
        %v5552 = vunpack.c.l.b16 %v5513
        %v5553 = vunpack.c.l.b16 %v5514
        %vm5554 = vcmask 1041409
        %v5555 = vsel %vm5554, %v5547, %v5546
        %vm5556 = vcmask 1042434
        %v5557 = vsel %vm5556, %v5548, %v5555
        %vm5558 = vcmask 1043459
        %v5559 = vsel %vm5558, %v5549, %v5557
        %vm5560 = vcmask 1044484
        %v5561 = vsel %vm5560, %v5550, %v5559
        %vm5562 = vcmask 1045509
        %v5563 = vsel %vm5562, %v5551, %v5561
        %vm5564 = vcmask 1046534
        %v5565 = vsel %vm5564, %v5552, %v5563
        %vm5566 = vcmask 1047559
        %v5567 = vsel %vm5566, %v5553, %v5565
        %v5568 = vpack.c.b16 %v5567, %v5567
        %v5586 = vunpack.c.l.b16 %v5515
        %v5587 = vunpack.c.l.b16 %v5516
        %v5588 = vunpack.c.l.b16 %v5517
        %v5589 = vunpack.c.l.b16 %v5518
        %v5590 = vunpack.c.l.b16 %v5519
        %v5591 = vunpack.c.l.b16 %v5520
        %v5592 = vunpack.c.l.b16 %v5521
        %v5593 = vunpack.c.l.b16 %v5522
        %v5594 = vunpack.c.l.b16 %v5523
        %v5595 = vunpack.c.l.b16 %v5524
        %v5596 = vunpack.c.l.b16 %v5525
        %v5597 = vunpack.c.l.b16 %v5526
        %v5598 = vunpack.c.l.b16 %v5527
        %v5599 = vunpack.c.l.b16 %v5528
        %v5600 = vunpack.c.l.b16 %v5529
        %v5601 = vunpack.c.l.b16 %v5530
        %v5602 = vpack.c.b16 %v5587, %v5586
        %v5603 = vpack.c.b16 %v5589, %v5588
        %v5604 = vpack.c.b16 %v5591, %v5590
        %v5605 = vpack.c.b16 %v5593, %v5592
        %v5606 = vpack.c.b16 %v5595, %v5594
        %v5607 = vpack.c.b16 %v5597, %v5596
        %v5608 = vpack.c.b16 %v5599, %v5598
        %v5609 = vpack.c.b16 %v5601, %v5600
        %5618 = vmatprep.subr.bf16.mxu0 0
        %5619 = vmatpush1.bf16.msra.mxu0 %v5602
        %5620 = vmatprep.subr.bf16.mxu0 0
        %5621 = vmatpush1.bf16.msra.mxu0 %v5603
        %5622 = vmatprep.subr.bf16.mxu0 0
        %5623 = vmatpush1.bf16.msra.mxu0 %v5604
        %5624 = vmatprep.subr.bf16.mxu0 0
        %5625 = vmatpush1.bf16.msra.mxu0 %v5605
        %5626 = vmatprep.subr.bf16.mxu0 0
        %5627 = vmatpush1.bf16.msra.mxu0 %v5606
        %5628 = vmatprep.subr.bf16.mxu0 0
        %5629 = vmatpush1.bf16.msra.mxu0 %v5607
        %5630 = vmatprep.subr.bf16.mxu0 0
        %5631 = vmatpush1.bf16.msra.mxu0 %v5608
        %5632 = vmatprep.subr.bf16.mxu0 0
        %5633 = vmatpush1.bf16.msra.mxu0 %v5609
        %5634 = vmatprep.subr.bf16.mxu0 0
        %5635 = vmatpush1.bf16.msra.mxu0 0
        %5636 = vmatprep.subr.bf16.mxu0 0
        %5637 = vmatpush1.bf16.msra.mxu0 0
        %5638 = vmatprep.subr.bf16.mxu0 0
        %5639 = vmatpush1.bf16.msra.mxu0 0
        %5640 = vmatprep.subr.bf16.mxu0 0
        %5641 = vmatpush1.bf16.msra.mxu0 0
        %5642 = vmatprep.subr.bf16.mxu0 0
        %5643 = vmatpush1.bf16.msra.mxu0 0
        %5644 = vmatprep.subr.bf16.mxu0 0
        %5645 = vmatpush1.bf16.msra.mxu0 0
        %5646 = vmatprep.subr.bf16.mxu0 0
        %5647 = vmatpush1.bf16.msra.mxu0 0
        %5648 = vmatprep.subr.bf16.mxu0 0
        %5649 = vmatpush1.bf16.msra.mxu0 0
        %5650 = vmatprep.mubr.bf16.mxu0 0
        %5651 = vmatmul.mubr.bf16.gmra.mrb[0].mxu0 %v5568
        %v5652 = vpop.f32.mrb[0].mxu0
        %v5653 = vadd.f32 %v5536, %v5652
        %v5654 = vpop.f32.mrb[0].mxu0
        %v5655 = vpop.f32.mrb[0].mxu0
        %v5656 = vpop.f32.mrb[0].mxu0
        %5657 = vdwg.mxu0
        %v5658 = vmax.f32 %v5653, 0.0
        %v5659 = vpack.c.bf16 %v5658, %v5658
        %v5660 = vld [vmem:[#allocation12] sm:$0xf]
        %v5661 = vld [vmem:[#allocation12 + $0x4] sm:$0xf]
        %v5662 = vld [vmem:[#allocation12 + $0x8] sm:$0xf]
        %v5663 = vld [vmem:[#allocation12 + $0xc] sm:$0xf]
        %v5664 = vld [vmem:[#allocation12 + $0x10] sm:$0xf]
        %v5665 = vld [vmem:[#allocation12 + $0x14] sm:$0xf]
        %v5666 = vld [vmem:[#allocation12 + $0x18] sm:$0xf]
        %v5667 = vld [vmem:[#allocation12 + $0x1c] sm:$0xf]
        %v5668 = vld [vmem:[#allocation12 + $0x20] sm:$0xf]
        %v5669 = vld [vmem:[#allocation12 + $0x24] sm:$0xf]
        %v5670 = vld [vmem:[#allocation12 + $0x28] sm:$0xf]
        %v5671 = vld [vmem:[#allocation12 + $0x2c] sm:$0xf]
        %v5672 = vld [vmem:[#allocation12 + $0x30] sm:$0xf]
        %v5673 = vld [vmem:[#allocation12 + $0x34] sm:$0xf]
        %v5674 = vld [vmem:[#allocation12 + $0x38] sm:$0xf]
        %v5675 = vld [vmem:[#allocation12 + $0x3c] sm:$0xf]
        %v5676 = vld [vmem:[%s16] sm:$0x1]
        %v5678 = vlaneseq
        %v5679 = vshrl.u32 %v5678, 7
        %v5680 = vsub.s32 0, %v5679
        %v5681 = vrot.slane %v5676, %v5680
        %v5699 = vunpack.c.l.b16 %v5660
        %v5700 = vunpack.c.l.b16 %v5661
        %v5701 = vunpack.c.l.b16 %v5662
        %v5702 = vunpack.c.l.b16 %v5663
        %v5703 = vunpack.c.l.b16 %v5664
        %v5704 = vunpack.c.l.b16 %v5665
        %v5705 = vunpack.c.l.b16 %v5666
        %v5706 = vunpack.c.l.b16 %v5667
        %v5707 = vunpack.c.l.b16 %v5668
        %v5708 = vunpack.c.l.b16 %v5669
        %v5709 = vunpack.c.l.b16 %v5670
        %v5710 = vunpack.c.l.b16 %v5671
        %v5711 = vunpack.c.l.b16 %v5672
        %v5712 = vunpack.c.l.b16 %v5673
        %v5713 = vunpack.c.l.b16 %v5674
        %v5714 = vunpack.c.l.b16 %v5675
        %v5715 = vpack.c.b16 %v5700, %v5699
        %v5716 = vpack.c.b16 %v5702, %v5701
        %v5717 = vpack.c.b16 %v5704, %v5703
        %v5718 = vpack.c.b16 %v5706, %v5705
        %v5719 = vpack.c.b16 %v5708, %v5707
        %v5720 = vpack.c.b16 %v5710, %v5709
        %v5721 = vpack.c.b16 %v5712, %v5711
        %v5722 = vpack.c.b16 %v5714, %v5713
        %5731 = vmatprep.subr.bf16.mxu0 0
        %5732 = vmatpush1.bf16.msra.mxu0 %v5715
        %5733 = vmatprep.subr.bf16.mxu0 0
        %5734 = vmatpush1.bf16.msra.mxu0 %v5716
        %5735 = vmatprep.subr.bf16.mxu0 0
        %5736 = vmatpush1.bf16.msra.mxu0 %v5717
        %5737 = vmatprep.subr.bf16.mxu0 0
        %5738 = vmatpush1.bf16.msra.mxu0 %v5718
        %5739 = vmatprep.subr.bf16.mxu0 0
        %5740 = vmatpush1.bf16.msra.mxu0 %v5719
        %5741 = vmatprep.subr.bf16.mxu0 0
        %5742 = vmatpush1.bf16.msra.mxu0 %v5720
        %5743 = vmatprep.subr.bf16.mxu0 0
        %5744 = vmatpush1.bf16.msra.mxu0 %v5721
        %5745 = vmatprep.subr.bf16.mxu0 0
        %5746 = vmatpush1.bf16.msra.mxu0 %v5722
        %5747 = vmatprep.subr.bf16.mxu0 0
        %5748 = vmatpush1.bf16.msra.mxu0 0
        %5749 = vmatprep.subr.bf16.mxu0 0
        %5750 = vmatpush1.bf16.msra.mxu0 0
        %5751 = vmatprep.subr.bf16.mxu0 0
        %5752 = vmatpush1.bf16.msra.mxu0 0
        %5753 = vmatprep.subr.bf16.mxu0 0
        %5754 = vmatpush1.bf16.msra.mxu0 0
        %5755 = vmatprep.subr.bf16.mxu0 0
        %5756 = vmatpush1.bf16.msra.mxu0 0
        %5757 = vmatprep.subr.bf16.mxu0 0
        %5758 = vmatpush1.bf16.msra.mxu0 0
        %5759 = vmatprep.subr.bf16.mxu0 0
        %5760 = vmatpush1.bf16.msra.mxu0 0
        %5761 = vmatprep.subr.bf16.mxu0 0
        %5762 = vmatpush1.bf16.msra.mxu0 0
        %5763 = vmatprep.mubr.bf16.mxu0 0
        %5764 = vmatmul.mubr.bf16.gmra.mrb[0].mxu0 %v5659
        %v5765 = vpop.f32.mrb[0].mxu0
        %v5766 = vadd.f32 %v5681, %v5765
        %v5767 = vpop.f32.mrb[0].mxu0
        %v5768 = vpop.f32.mrb[0].mxu0
        %v5769 = vpop.f32.mrb[0].mxu0
        %5770 = vdwg.mxu0
        %5771 = vst [vmem:[%s634] sm:$0xff] %v5766
        %s5772 = sand.u32 %s407, 1
        %s5773 = scalar_lea.sflag [#allocation5], %s5772
        %s5774 = sand.u32 %s407, 1
        %s5775 = smul.addr %s5774, 8
        %s5776 = scalar_lea.vmem [#allocation14], %s5775
        // Predicated region
        $region113: #{tpu_custom_call.1} parent=87 // pred_check
          %p5777 = pneg %p417
        $region114: #{tpu_custom_call.1} parent=87 // pred_check_branch
          %5779 = sbr.rel (%p5777) target = $region116
        $region115: #{tpu_custom_call.1} parent=87 // pred_region
          %s5781 = ssub.s32 128, 128
          %5782 = vsyncadd %s5773, %s5781
          %s5783 = smul.addr %s37, 128
          %s5784 = scalar_lea.hbm %s17, %s5783
          %s5786 = sshll.u32 %s5776, 4
          %s5787 = int_to_ptr.vmem [resolvable:$true] %s5786
          %5789 = dma.vmem_to_hbm [thread:$0]  %s5787, 128, %s5784, %s5773
        $region116: #{tpu_custom_call.1} parent=87 // pred_fallthru
          _
      $region88: #{tpu_custom_call.1} parent=5 // pred_fallthru
        _
      %p5790 = scmp.le.s32.totalorder 2, %s32
      // Predicated region
      $region117: #{tpu_custom_call.1} parent=5 // pred_check
        %p5791 = pneg %p5790
      $region118: #{tpu_custom_call.1} parent=5 // pred_check_branch
        %5793 = sbr.rel (%p5791) target = $region120
      $region119: #{tpu_custom_call.1} parent=5 // pred_region
        %s5794 = ssub.s32 %s32, 2
        // Predicated region
        $region121: #{tpu_custom_call.1} parent=119 // pred_check
          %p5795 = pneg %p423
        $region122: #{tpu_custom_call.1} parent=119 // pred_check_branch
          %5797 = sbr.rel (%p5795) target = $region124
        $region123: #{tpu_custom_call.1} parent=119 // pred_region
          %s5798 = sand.u32 %s408, 1
          %s5799 = scalar_lea.sflag [#allocation5], %s5798
          %s5800 = sand.u32 %s408, 1
          %s5801 = smul.addr %s5800, 8
          %s5802 = scalar_lea.vmem [#allocation14], %s5801
          %5803 = dma.done %s5799, 128
        $region124: #{tpu_custom_call.1} parent=119 // pred_fallthru
          _
      $region120: #{tpu_custom_call.1} parent=5 // pred_fallthru
        _
    $region6: #{tpu_custom_call.1} parent=1 // loop_footer
      %s36 = sadd.s32 1, %s32
    $region7: #{tpu_custom_call.1} parent=1 // loop_footer_branch
      %31 = sbr.rel target = $region3
    $region8: #{tpu_custom_call.1} parent=1 // loop_exit
      _
    %5804 = vsyncpa [#allocation4], 1
    %s5805 = scalar_lea.sflag [#allocation4], 1
    %5806 = vsyncpa %s5805, 1
    %5807 = vsyncpa [#allocation7], 1
    %5808 = vsyncpa [#allocation10], 1
    %5809 = vsyncpa [#allocation13], 1
    %5810 = vsyncpa [#allocation5], 1
    %s5811 = scalar_lea.sflag [#allocation5], 1
    %5812 = vsyncpa %s5811, 1

</llo_original>
